<compile_context>
chip_gen: v5e
topology: v5e:2x2
jax: 0.10.0
libtpu: 0.0.40
codegen_flags: <defaults>
</compile_context>

<pallas_src>
import functools
import math

import numpy as np
import jax
import jax.numpy as jnp
from jax.experimental import pallas as pl
from jax.experimental.pallas import tpu as pltpu

# ----------------------------- model config ---------------------------------
SRC_VOCAB = 50
TGT_VOCAB = 60
EMBED_DIM = 32
NHEAD = 2
HEAD_DIM = EMBED_DIM // NHEAD
NUM_ENC_LAYERS = 2
NUM_DEC_LAYERS = 2
DIM_FF = 64
MAX_SEQ_LEN = 64
LN_EPS = 1e-5                       # PyTorch nn.LayerNorm default
ATTN_SCALE = 1.0 / math.sqrt(HEAD_DIM)
MATMUL_DTYPE = jnp.bfloat16         # MXU operand dtype (accumulate in f32)

# Fixed flattening order of the stacked layer parameters fed to the kernel.
ENC_ORDER = ("wqkv", "bqkv", "wp", "bp", "ln1_g", "ln1_b",
             "w1", "b1", "w2", "b2", "ln2_g", "ln2_b")
DEC_ORDER = ("s_wqkv", "s_bqkv", "s_wp", "s_bp", "ln1_g", "ln1_b",
             "c_wqkv", "c_bqkv", "c_wp", "c_bp", "ln2_g", "ln2_b",
             "w1", "b1", "w2", "b2", "ln3_g", "ln3_b")
_MATMUL_WEIGHTS = {"wqkv", "wp", "w1", "w2", "s_wqkv", "s_wp", "c_wqkv", "c_wp"}


# ------------------------------ fused kernel ---------------------------------
def _fused_transformer_kernel(*refs, has_src_mask, has_tgt_mask):
    refs = list(refs)
    out_ref = refs.pop()                      # single output ref
    it = iter(refs)
    src_ref = next(it)                        # (1, S, E) f32
    tgt_ref = next(it)                        # (1, T, E) f32
    src_mask_ref = next(it) if has_src_mask else None
    tgt_mask_ref = next(it) if has_tgt_mask else None
    enc = {name: next(it) for name in ENC_ORDER}
    dec = {name: next(it) for name in DEC_ORDER}

    E, H, HD = EMBED_DIM, NHEAD, HEAD_DIM

    def dense(x, w, b):
        # x: (M, K) f32, w: (K, N) bf16, b: (1, N) f32  ->  (M, N) f32
        return jnp.dot(x.astype(w.dtype), w,
                       preferred_element_type=jnp.float32) + b

    def layer_norm(x, g, b):
        mu = jnp.mean(x, axis=-1, keepdims=True)
        var = jnp.mean(jnp.square(x - mu), axis=-1, keepdims=True)
        return (x - mu) * jax.lax.rsqrt(var + LN_EPS) * g + b

    def attention(q, k, v, wp, bp, mask_add):
        # q: (S, E), k/v: (T, E) f32.  Heads are a static in-kernel loop; each
        # head's output is folded into the output projection (per-head slab of
        # wp), so no concatenate / transpose is ever materialized.
        y = jnp.zeros((q.shape[0], E), jnp.float32) + bp
        for h in range(H):
            sl = slice(h * HD, (h + 1) * HD)
            qh = q[:, sl].astype(MATMUL_DTYPE)
            kh = k[:, sl].astype(MATMUL_DTYPE)
            vh = v[:, sl].astype(MATMUL_DTYPE)
            s = jnp.einsum("sd,td->st", qh, kh,
                           preferred_element_type=jnp.float32) * ATTN_SCALE
            if mask_add is not None:          # additive mask: 0 / -1e9
                s = s + mask_add
            s = s - jnp.max(s, axis=-1, keepdims=True)
            e = jnp.exp(s)
            p = e / jnp.sum(e, axis=-1, keepdims=True)
            ctx = jnp.dot(p.astype(MATMUL_DTYPE), vh,
                          preferred_element_type=jnp.float32)       # (S, HD)
            y = y + jnp.dot(ctx.astype(MATMUL_DTYPE), wp[sl, :],
                            preferred_element_type=jnp.float32)     # (S, E)
        return y

    def self_attention(x, wqkv, bqkv, wp, bp, mask_add):
        qkv = dense(x, wqkv, bqkv)            # fused QKV: (S, 3E), lane-dense 96
        return attention(qkv[:, :E], qkv[:, E:2 * E], qkv[:, 2 * E:],
                         wp, bp, mask_add)

    def cross_attention(x, mem, wqkv, bqkv, wp, bp):
        q = dense(x, wqkv[:, :E], bqkv[:, :E])        # (T, E)
        kv = dense(mem, wqkv[:, E:], bqkv[:, E:])     # fused KV: (S, 2E)
        return attention(q, kv[:, :E], kv[:, E:], wp, bp, None)

    src_mask_add = src_mask_ref[...] if has_src_mask else None
    tgt_mask_add = tgt_mask_ref[...] if has_tgt_mask else None

    # ------------------------------ encoder ------------------------------
    x = src_ref[0]                                    # (S, E) f32
    for l in range(NUM_ENC_LAYERS):
        attn = self_attention(x, enc["wqkv"][l], enc["bqkv"][l],
                              enc["wp"][l], enc["bp"][l], src_mask_add)
        x = layer_norm(x + attn, enc["ln1_g"][l], enc["ln1_b"][l])
        h = jnp.maximum(dense(x, enc["w1"][l], enc["b1"][l]), 0.0)
        ff = dense(h, enc["w2"][l], enc["b2"][l])
        x = layer_norm(x + ff, enc["ln2_g"][l], enc["ln2_b"][l])
    mem = x                                           # encoder memory, (S, E)

    # ------------------------------ decoder ------------------------------
    y = tgt_ref[0]                                    # (T, E) f32
    for l in range(NUM_DEC_LAYERS):
        sa = self_attention(y, dec["s_wqkv"][l], dec["s_bqkv"][l],
                            dec["s_wp"][l], dec["s_bp"][l], tgt_mask_add)
        y = layer_norm(y + sa, dec["ln1_g"][l], dec["ln1_b"][l])
        ca = cross_attention(y, mem, dec["c_wqkv"][l], dec["c_bqkv"][l],
                             dec["c_wp"][l], dec["c_bp"][l])
        y = layer_norm(y + ca, dec["ln2_g"][l], dec["ln2_b"][l])
        h = jnp.maximum(dense(y, dec["w1"][l], dec["b1"][l]), 0.0)
        ff = dense(h, dec["w2"][l], dec["b2"][l])
        y = layer_norm(y + ff, dec["ln3_g"][l], dec["ln3_b"][l])

    out_ref[0] = y


# ------------------------------ host-side glue --------------------------------
def _whole_spec(shape):
    ndim = len(shape)

    def index_map(i):
        return (0,) * ndim

    return pl.BlockSpec(shape, index_map)


def _batch_spec(seq, emb):
    return pl.BlockSpec((1, seq, emb), lambda i: (i, 0, 0))


def _pack_params(params):
    """Flatten stacked enc/dec params in kernel order, bf16-casting matmul weights."""
    arrs = []
    for name in ENC_ORDER:
        a = params["enc"][name]
        arrs.append(a.astype(MATMUL_DTYPE) if name in _MATMUL_WEIGHTS else a)
    for name in DEC_ORDER:
        a = params["dec"][name]
        arrs.append(a.astype(MATMUL_DTYPE) if name in _MATMUL_WEIGHTS else a)
    return arrs


def embed_pos_encode(ids, table, pe, d_model):
    # Tiny gather + scale + add: left to XLA (fuses with the gather); no kernel launch.
    S = ids.shape[1]
    return jnp.take(table, ids, axis=0) * math.sqrt(d_model) + pe[:, :S, :]


def _additive_mask(mask):
    # PyTorch: masked_fill(scores, mask == 0, -1e9)  ->  additive 0 / -1e9 mask.
    return jnp.where(mask == 0, -1e9, 0.0).astype(jnp.float32)


def transformer_forward(params, src_ids, tgt_ids, src_mask=None, tgt_mask=None):
    # TODO(synk): dropout layers (pos-enc, attention, FFN) are identity (eval mode).
    src_x = embed_pos_encode(src_ids, params["src_emb"], params["pe"], EMBED_DIM)
    tgt_x = embed_pos_encode(tgt_ids, params["tgt_emb"], params["pe"], EMBED_DIM)
    N, S, E = src_x.shape
    T = tgt_x.shape[1]

    has_src_mask = src_mask is not None
    has_tgt_mask = tgt_mask is not None

    inputs = [src_x, tgt_x]
    in_specs = [_batch_spec(S, E), _batch_spec(T, E)]
    if has_src_mask:
        m = _additive_mask(src_mask)
        inputs.append(m)
        in_specs.append(_whole_spec(m.shape))
    if has_tgt_mask:
        m = _additive_mask(tgt_mask)
        inputs.append(m)
        in_specs.append(_whole_spec(m.shape))

    weights = _pack_params(params)
    inputs += weights
    in_specs += [_whole_spec(w.shape) for w in weights]

    kernel = functools.partial(_fused_transformer_kernel,
                               has_src_mask=has_src_mask,
                               has_tgt_mask=has_tgt_mask)

    return pl.pallas_call(
        kernel,
        out_shape=jax.ShapeDtypeStruct((N, T, E), jnp.float32),
        grid=(N,),                                   # batch axis only
        in_specs=in_specs,
        out_specs=_batch_spec(T, E),
        compiler_params=pltpu.CompilerParams(
            dimension_semantics=("parallel",)),      # shard batch on v7x's 2 TCs
    )(*inputs)


# ------------------------------ parameter init -------------------------------
def _init_linear(key, fan_in, fan_out):
    kw, kb = jax.random.split(key)
    bound = 1.0 / math.sqrt(fan_in)
    w = jax.random.uniform(kw, (fan_in, fan_out), jnp.float32, -bound, bound)
    b = jax.random.uniform(kb, (fan_out,), jnp.float32, -bound, bound)
    return w, b


def _init_mha(key, e):
    ks = jax.random.split(key, 4)
    wq, bq = _init_linear(ks[0], e, e)
    wk, bk = _init_linear(ks[1], e, e)
    wv, bv = _init_linear(ks[2], e, e)
    wp, bp = _init_linear(ks[3], e, e)
    wqkv = jnp.concatenate([wq, wk, wv], axis=1)        # fused (E, 3E)
    bqkv = jnp.concatenate([bq, bk, bv])[None, :]       # (1, 3E)
    return wqkv, bqkv, wp, bp[None, :]


def _init_enc_layer(key, e, f):
    k_attn, k1, k2 = jax.random.split(key, 3)
    wqkv, bqkv, wp, bp = _init_mha(k_attn, e)
    w1, b1 = _init_linear(k1, e, f)
    w2, b2 = _init_linear(k2, f, e)
    ones = jnp.ones((1, e), jnp.float32)
    zeros = jnp.zeros((1, e), jnp.float32)
    return dict(wqkv=wqkv, bqkv=bqkv, wp=wp, bp=bp,
                ln1_g=ones, ln1_b=zeros,
                w1=w1, b1=b1[None, :], w2=w2, b2=b2[None, :],
                ln2_g=ones, ln2_b=zeros)


def _init_dec_layer(key, e, f):
    k_sa, k_ca, k1, k2 = jax.random.split(key, 4)
    s_wqkv, s_bqkv, s_wp, s_bp = _init_mha(k_sa, e)
    c_wqkv, c_bqkv, c_wp, c_bp = _init_mha(k_ca, e)
    w1, b1 = _init_linear(k1, e, f)
    w2, b2 = _init_linear(k2, f, e)
    ones = jnp.ones((1, e), jnp.float32)
    zeros = jnp.zeros((1, e), jnp.float32)
    return dict(s_wqkv=s_wqkv, s_bqkv=s_bqkv, s_wp=s_wp, s_bp=s_bp,
                ln1_g=ones, ln1_b=zeros,
                c_wqkv=c_wqkv, c_bqkv=c_bqkv, c_wp=c_wp, c_bp=c_bp,
                ln2_g=ones, ln2_b=zeros,
                w1=w1, b1=b1[None, :], w2=w2, b2=b2[None, :],
                ln3_g=ones, ln3_b=zeros)


def _stack_layers(layer_dicts):
    return {k: jnp.stack([d[k] for d in layer_dicts]) for k in layer_dicts[0]}


def _make_pe(max_len, d):
    i = np.arange(max_len, dtype=np.float64)[:, None]
    j = np.arange(d, dtype=np.float64)[None, :]
    even = (np.arange(d) % 2 == 0)[None, :]
    pe = np.where(
        even,
        np.sin(i * np.power(10000.0, -j / d)),
        np.cos(i * np.power(10000.0, -(j - 1) / d)),
    )
    return jnp.asarray(pe[None, :, :], dtype=jnp.float32)   # (1, max_len, d)


def init_params(key):
    keys = jax.random.split(key, 2 + NUM_ENC_LAYERS + NUM_DEC_LAYERS)
    enc_layers = [_init_enc_layer(keys[2 + i], EMBED_DIM, DIM_FF)
                  for i in range(NUM_ENC_LAYERS)]
    dec_layers = [_init_dec_layer(keys[2 + NUM_ENC_LAYERS + i], EMBED_DIM, DIM_FF)
                  for i in range(NUM_DEC_LAYERS)]
    return dict(
        src_emb=jax.random.normal(keys[0], (SRC_VOCAB, EMBED_DIM), jnp.float32) * 0.05,
        tgt_emb=jax.random.normal(keys[1], (TGT_VOCAB, EMBED_DIM), jnp.float32) * 0.05,
        pe=_make_pe(MAX_SEQ_LEN, EMBED_DIM),
        enc=_stack_layers(enc_layers),
        dec=_stack_layers(dec_layers),
    )


# ----------------------------------- main ------------------------------------
if __name__ == "__main__":
    key = jax.random.PRNGKey(0)
    k_src, k_tgt, k_params = jax.random.split(key, 3)

    N, S_SRC, S_TGT = 2, 8, 8
    src_ids = jax.random.randint(k_src, (N, S_SRC), 0, SRC_VOCAB, dtype=jnp.int32)
    tgt_ids = jax.random.randint(k_tgt, (N, S_TGT), 0, TGT_VOCAB, dtype=jnp.int32)
    tgt_mask = jnp.tril(jnp.ones((S_TGT, S_TGT), jnp.float32))   # causal (T, T)

    params = init_params(k_params)

    fwd = jax.jit(transformer_forward)
    out = fwd(params, src_ids, tgt_ids, None, tgt_mask)
    out = jax.block_until_ready(out)

    assert out.shape == (N, S_TGT, EMBED_DIM) and out.dtype == jnp.float32
    assert bool(jnp.all(jnp.isfinite(out)))
    print("KERNEL_OK")
</pallas_src>

<mosaic_0001>
module attributes {stable_mosaic.version = 11 : i64} {
  func.func @_fused_transformer_kernel(%arg0: i32, %arg1: memref<1x8x32xf32, #tpu.memory_space<vmem>>, %arg2: memref<1x8x32xf32, #tpu.memory_space<vmem>>, %arg3: memref<8x8xf32, #tpu.memory_space<vmem>>, %arg4: memref<2x32x96xbf16, #tpu.memory_space<vmem>>, %arg5: memref<2x1x96xf32, #tpu.memory_space<vmem>>, %arg6: memref<2x32x32xbf16, #tpu.memory_space<vmem>>, %arg7: memref<2x1x32xf32, #tpu.memory_space<vmem>>, %arg8: memref<2x1x32xf32, #tpu.memory_space<vmem>>, %arg9: memref<2x1x32xf32, #tpu.memory_space<vmem>>, %arg10: memref<2x32x64xbf16, #tpu.memory_space<vmem>>, %arg11: memref<2x1x64xf32, #tpu.memory_space<vmem>>, %arg12: memref<2x64x32xbf16, #tpu.memory_space<vmem>>, %arg13: memref<2x1x32xf32, #tpu.memory_space<vmem>>, %arg14: memref<2x1x32xf32, #tpu.memory_space<vmem>>, %arg15: memref<2x1x32xf32, #tpu.memory_space<vmem>>, %arg16: memref<2x32x96xbf16, #tpu.memory_space<vmem>>, %arg17: memref<2x1x96xf32, #tpu.memory_space<vmem>>, %arg18: memref<2x32x32xbf16, #tpu.memory_space<vmem>>, %arg19: memref<2x1x32xf32, #tpu.memory_space<vmem>>, %arg20: memref<2x1x32xf32, #tpu.memory_space<vmem>>, %arg21: memref<2x1x32xf32, #tpu.memory_space<vmem>>, %arg22: memref<2x32x96xbf16, #tpu.memory_space<vmem>>, %arg23: memref<2x1x96xf32, #tpu.memory_space<vmem>>, %arg24: memref<2x32x32xbf16, #tpu.memory_space<vmem>>, %arg25: memref<2x1x32xf32, #tpu.memory_space<vmem>>, %arg26: memref<2x1x32xf32, #tpu.memory_space<vmem>>, %arg27: memref<2x1x32xf32, #tpu.memory_space<vmem>>, %arg28: memref<2x32x64xbf16, #tpu.memory_space<vmem>>, %arg29: memref<2x1x64xf32, #tpu.memory_space<vmem>>, %arg30: memref<2x64x32xbf16, #tpu.memory_space<vmem>>, %arg31: memref<2x1x32xf32, #tpu.memory_space<vmem>>, %arg32: memref<2x1x32xf32, #tpu.memory_space<vmem>>, %arg33: memref<2x1x32xf32, #tpu.memory_space<vmem>>, %arg34: memref<1x8x32xf32, #tpu.memory_space<vmem>>) attributes {dimension_semantics = [#tpu.dimension_semantics<parallel>], iteration_bounds = array<i64: 2>, scalar_prefetch = 0 : i64, scratch_operands = 0 : i64, tpu.core_type = #tpu.core_type<tc>, window_params = [{transform_indices = @transform_0, window_bounds = array<i64: 1, 8, 32>}, {transform_indices = @transform_1, window_bounds = array<i64: 1, 8, 32>}, {pipeline_mode = #tpu.pipeline_mode<synchronous>, transform_indices = @transform_2, window_bounds = array<i64: 8, 8>}, {pipeline_mode = #tpu.pipeline_mode<synchronous>, transform_indices = @transform_3, window_bounds = array<i64: 2, 32, 96>}, {pipeline_mode = #tpu.pipeline_mode<synchronous>, transform_indices = @transform_4, window_bounds = array<i64: 2, 1, 96>}, {pipeline_mode = #tpu.pipeline_mode<synchronous>, transform_indices = @transform_5, window_bounds = array<i64: 2, 32, 32>}, {pipeline_mode = #tpu.pipeline_mode<synchronous>, transform_indices = @transform_6, window_bounds = array<i64: 2, 1, 32>}, {pipeline_mode = #tpu.pipeline_mode<synchronous>, transform_indices = @transform_7, window_bounds = array<i64: 2, 1, 32>}, {pipeline_mode = #tpu.pipeline_mode<synchronous>, transform_indices = @transform_8, window_bounds = array<i64: 2, 1, 32>}, {pipeline_mode = #tpu.pipeline_mode<synchronous>, transform_indices = @transform_9, window_bounds = array<i64: 2, 32, 64>}, {pipeline_mode = #tpu.pipeline_mode<synchronous>, transform_indices = @transform_10, window_bounds = array<i64: 2, 1, 64>}, {pipeline_mode = #tpu.pipeline_mode<synchronous>, transform_indices = @transform_11, window_bounds = array<i64: 2, 64, 32>}, {pipeline_mode = #tpu.pipeline_mode<synchronous>, transform_indices = @transform_12, window_bounds = array<i64: 2, 1, 32>}, {pipeline_mode = #tpu.pipeline_mode<synchronous>, transform_indices = @transform_13, window_bounds = array<i64: 2, 1, 32>}, {pipeline_mode = #tpu.pipeline_mode<synchronous>, transform_indices = @transform_14, window_bounds = array<i64: 2, 1, 32>}, {pipeline_mode = #tpu.pipeline_mode<synchronous>, transform_indices = @transform_15, window_bounds = array<i64: 2, 32, 96>}, {pipeline_mode = #tpu.pipeline_mode<synchronous>, transform_indices = @transform_16, window_bounds = array<i64: 2, 1, 96>}, {pipeline_mode = #tpu.pipeline_mode<synchronous>, transform_indices = @transform_17, window_bounds = array<i64: 2, 32, 32>}, {pipeline_mode = #tpu.pipeline_mode<synchronous>, transform_indices = @transform_18, window_bounds = array<i64: 2, 1, 32>}, {pipeline_mode = #tpu.pipeline_mode<synchronous>, transform_indices = @transform_19, window_bounds = array<i64: 2, 1, 32>}, {pipeline_mode = #tpu.pipeline_mode<synchronous>, transform_indices = @transform_20, window_bounds = array<i64: 2, 1, 32>}, {pipeline_mode = #tpu.pipeline_mode<synchronous>, transform_indices = @transform_21, window_bounds = array<i64: 2, 32, 96>}, {pipeline_mode = #tpu.pipeline_mode<synchronous>, transform_indices = @transform_22, window_bounds = array<i64: 2, 1, 96>}, {pipeline_mode = #tpu.pipeline_mode<synchronous>, transform_indices = @transform_23, window_bounds = array<i64: 2, 32, 32>}, {pipeline_mode = #tpu.pipeline_mode<synchronous>, transform_indices = @transform_24, window_bounds = array<i64: 2, 1, 32>}, {pipeline_mode = #tpu.pipeline_mode<synchronous>, transform_indices = @transform_25, window_bounds = array<i64: 2, 1, 32>}, {pipeline_mode = #tpu.pipeline_mode<synchronous>, transform_indices = @transform_26, window_bounds = array<i64: 2, 1, 32>}, {pipeline_mode = #tpu.pipeline_mode<synchronous>, transform_indices = @transform_27, window_bounds = array<i64: 2, 32, 64>}, {pipeline_mode = #tpu.pipeline_mode<synchronous>, transform_indices = @transform_28, window_bounds = array<i64: 2, 1, 64>}, {pipeline_mode = #tpu.pipeline_mode<synchronous>, transform_indices = @transform_29, window_bounds = array<i64: 2, 64, 32>}, {pipeline_mode = #tpu.pipeline_mode<synchronous>, transform_indices = @transform_30, window_bounds = array<i64: 2, 1, 32>}, {pipeline_mode = #tpu.pipeline_mode<synchronous>, transform_indices = @transform_31, window_bounds = array<i64: 2, 1, 32>}, {pipeline_mode = #tpu.pipeline_mode<synchronous>, transform_indices = @transform_32, window_bounds = array<i64: 2, 1, 32>}, {transform_indices = @transform_33, window_bounds = array<i64: 1, 8, 32>}]} {
    %c0 = arith.constant 0 : index
    %c0_0 = arith.constant 0 : index
    %0 = vector.load %arg3[%c0, %c0_0] : memref<8x8xf32, #tpu.memory_space<vmem>>, vector<8x8xf32>
    %c0_1 = arith.constant 0 : index
    %c0_2 = arith.constant 0 : index
    %c0_3 = arith.constant 0 : index
    %1 = vector.load %arg1[%c0_1, %c0_2, %c0_3] : memref<1x8x32xf32, #tpu.memory_space<vmem>>, vector<1x8x32xf32>
    %2 = vector.shape_cast %1 : vector<1x8x32xf32> to vector<8x32xf32>
    %c0_4 = arith.constant 0 : index
    %c0_5 = arith.constant 0 : index
    %c0_6 = arith.constant 0 : index
    %3 = vector.load %arg4[%c0_4, %c0_5, %c0_6] : memref<2x32x96xbf16, #tpu.memory_space<vmem>>, vector<1x32x96xbf16>
    %4 = vector.shape_cast %3 : vector<1x32x96xbf16> to vector<32x96xbf16>
    %c0_7 = arith.constant 0 : index
    %c0_8 = arith.constant 0 : index
    %c0_9 = arith.constant 0 : index
    %5 = vector.load %arg5[%c0_7, %c0_8, %c0_9] : memref<2x1x96xf32, #tpu.memory_space<vmem>>, vector<1x1x96xf32>
    %6 = vector.shape_cast %5 : vector<1x1x96xf32> to vector<1x96xf32>
    %c0_10 = arith.constant 0 : index
    %c0_11 = arith.constant 0 : index
    %c0_12 = arith.constant 0 : index
    %7 = vector.load %arg6[%c0_10, %c0_11, %c0_12] : memref<2x32x32xbf16, #tpu.memory_space<vmem>>, vector<1x32x32xbf16>
    %8 = vector.shape_cast %7 : vector<1x32x32xbf16> to vector<32x32xbf16>
    %c0_13 = arith.constant 0 : index
    %c0_14 = arith.constant 0 : index
    %c0_15 = arith.constant 0 : index
    %9 = vector.load %arg7[%c0_13, %c0_14, %c0_15] : memref<2x1x32xf32, #tpu.memory_space<vmem>>, vector<1x1x32xf32>
    %10 = vector.shape_cast %9 : vector<1x1x32xf32> to vector<1x32xf32>
    %11 = arith.truncf %2 : vector<8x32xf32> to vector<8x32xbf16>
    %cst = arith.constant dense<0.000000e+00> : vector<8x96xf32>
    %12 = tpu.matmul %11, %4, %cst {dimension_numbers = #tpu.dot_dimension_numbers<[1], [0], [0], [1], [0, 0, 1, 1], [], []>} : vector<8x32xbf16>, vector<32x96xbf16>, vector<8x96xf32> -> vector<8x96xf32>
    %13 = vector.broadcast %6 : vector<1x96xf32> to vector<8x96xf32>
    %14 = arith.addf %12, %13 : vector<8x96xf32>
    %15 = vector.extract_strided_slice %14 {offsets = [0, 0], sizes = [8, 32], strides = [1, 1]} : vector<8x96xf32> to vector<8x32xf32>
    %16 = vector.extract_strided_slice %14 {offsets = [0, 32], sizes = [8, 32], strides = [1, 1]} : vector<8x96xf32> to vector<8x32xf32>
    %17 = vector.extract_strided_slice %14 {offsets = [0, 64], sizes = [8, 32], strides = [1, 1]} : vector<8x96xf32> to vector<8x32xf32>
    %cst_16 = arith.constant 0.000000e+00 : f32
    %18 = vector.broadcast %cst_16 : f32 to vector<8x32xf32>
    %19 = vector.broadcast %10 : vector<1x32xf32> to vector<8x32xf32>
    %20 = arith.addf %18, %19 : vector<8x32xf32>
    %21 = vector.extract_strided_slice %15 {offsets = [0, 0], sizes = [8, 16], strides = [1, 1]} : vector<8x32xf32> to vector<8x16xf32>
    %22 = arith.truncf %21 : vector<8x16xf32> to vector<8x16xbf16>
    %23 = vector.extract_strided_slice %16 {offsets = [0, 0], sizes = [8, 16], strides = [1, 1]} : vector<8x32xf32> to vector<8x16xf32>
    %24 = arith.truncf %23 : vector<8x16xf32> to vector<8x16xbf16>
    %25 = vector.extract_strided_slice %17 {offsets = [0, 0], sizes = [8, 16], strides = [1, 1]} : vector<8x32xf32> to vector<8x16xf32>
    %26 = arith.truncf %25 : vector<8x16xf32> to vector<8x16xbf16>
    "tpu.trace_start"() <{level = 10 : i32, message = "sd,td->st"}> : () -> ()
    %cst_17 = arith.constant dense<0.000000e+00> : vector<8x8xf32>
    %27 = tpu.matmul %22, %24, %cst_17 {dimension_numbers = #tpu.dot_dimension_numbers<[1], [1], [0], [0], [0, 0, 1, 0], [], []>} : vector<8x16xbf16>, vector<8x16xbf16>, vector<8x8xf32> -> vector<8x8xf32>
    "tpu.trace_stop"() : () -> ()
    %cst_18 = arith.constant 2.500000e-01 : f32
    %28 = vector.broadcast %cst_18 : f32 to vector<8x8xf32>
    %29 = arith.mulf %27, %28 : vector<8x8xf32>
    %cst_19 = arith.constant dense<0xFF800000> : vector<8xf32>
    %30 = vector.multi_reduction <maximumf>, %29, %cst_19 [1] : vector<8x8xf32> to vector<8xf32>
    %31 = vector.shape_cast %30 : vector<8xf32> to vector<8x1xf32>
    %32 = vector.broadcast %31 : vector<8x1xf32> to vector<8x8xf32>
    %33 = arith.subf %29, %32 : vector<8x8xf32>
    %34 = math.exp %33 : vector<8x8xf32>
    %cst_20 = arith.constant dense<0.000000e+00> : vector<8xf32>
    %35 = vector.multi_reduction <add>, %34, %cst_20 [1] : vector<8x8xf32> to vector<8xf32>
    %36 = vector.shape_cast %35 : vector<8xf32> to vector<8x1xf32>
    %37 = vector.broadcast %36 : vector<8x1xf32> to vector<8x8xf32>
    %38 = arith.divf %34, %37 : vector<8x8xf32>
    %39 = arith.truncf %38 : vector<8x8xf32> to vector<8x8xbf16>
    %cst_21 = arith.constant dense<0.000000e+00> : vector<8x16xf32>
    %40 = tpu.matmul %39, %26, %cst_21 {dimension_numbers = #tpu.dot_dimension_numbers<[1], [0], [0], [1], [0, 0, 1, 1], [], []>} : vector<8x8xbf16>, vector<8x16xbf16>, vector<8x16xf32> -> vector<8x16xf32>
    %41 = arith.truncf %40 : vector<8x16xf32> to vector<8x16xbf16>
    %42 = vector.extract_strided_slice %8 {offsets = [0, 0], sizes = [16, 32], strides = [1, 1]} : vector<32x32xbf16> to vector<16x32xbf16>
    %cst_22 = arith.constant dense<0.000000e+00> : vector<8x32xf32>
    %43 = tpu.matmul %41, %42, %cst_22 {dimension_numbers = #tpu.dot_dimension_numbers<[1], [0], [0], [1], [0, 0, 1, 1], [], []>} : vector<8x16xbf16>, vector<16x32xbf16>, vector<8x32xf32> -> vector<8x32xf32>
    %44 = arith.addf %20, %43 : vector<8x32xf32>
    %45 = vector.extract_strided_slice %15 {offsets = [0, 16], sizes = [8, 16], strides = [1, 1]} : vector<8x32xf32> to vector<8x16xf32>
    %46 = arith.truncf %45 : vector<8x16xf32> to vector<8x16xbf16>
    %47 = vector.extract_strided_slice %16 {offsets = [0, 16], sizes = [8, 16], strides = [1, 1]} : vector<8x32xf32> to vector<8x16xf32>
    %48 = arith.truncf %47 : vector<8x16xf32> to vector<8x16xbf16>
    %49 = vector.extract_strided_slice %17 {offsets = [0, 16], sizes = [8, 16], strides = [1, 1]} : vector<8x32xf32> to vector<8x16xf32>
    %50 = arith.truncf %49 : vector<8x16xf32> to vector<8x16xbf16>
    "tpu.trace_start"() <{level = 10 : i32, message = "sd,td->st"}> : () -> ()
    %cst_23 = arith.constant dense<0.000000e+00> : vector<8x8xf32>
    %51 = tpu.matmul %46, %48, %cst_23 {dimension_numbers = #tpu.dot_dimension_numbers<[1], [1], [0], [0], [0, 0, 1, 0], [], []>} : vector<8x16xbf16>, vector<8x16xbf16>, vector<8x8xf32> -> vector<8x8xf32>
    "tpu.trace_stop"() : () -> ()
    %cst_24 = arith.constant 2.500000e-01 : f32
    %52 = vector.broadcast %cst_24 : f32 to vector<8x8xf32>
    %53 = arith.mulf %51, %52 : vector<8x8xf32>
    %cst_25 = arith.constant dense<0xFF800000> : vector<8xf32>
    %54 = vector.multi_reduction <maximumf>, %53, %cst_25 [1] : vector<8x8xf32> to vector<8xf32>
    %55 = vector.shape_cast %54 : vector<8xf32> to vector<8x1xf32>
    %56 = vector.broadcast %55 : vector<8x1xf32> to vector<8x8xf32>
    %57 = arith.subf %53, %56 : vector<8x8xf32>
    %58 = math.exp %57 : vector<8x8xf32>
    %cst_26 = arith.constant dense<0.000000e+00> : vector<8xf32>
    %59 = vector.multi_reduction <add>, %58, %cst_26 [1] : vector<8x8xf32> to vector<8xf32>
    %60 = vector.shape_cast %59 : vector<8xf32> to vector<8x1xf32>
    %61 = vector.broadcast %60 : vector<8x1xf32> to vector<8x8xf32>
    %62 = arith.divf %58, %61 : vector<8x8xf32>
    %63 = arith.truncf %62 : vector<8x8xf32> to vector<8x8xbf16>
    %cst_27 = arith.constant dense<0.000000e+00> : vector<8x16xf32>
    %64 = tpu.matmul %63, %50, %cst_27 {dimension_numbers = #tpu.dot_dimension_numbers<[1], [0], [0], [1], [0, 0, 1, 1], [], []>} : vector<8x8xbf16>, vector<8x16xbf16>, vector<8x16xf32> -> vector<8x16xf32>
    %65 = arith.truncf %64 : vector<8x16xf32> to vector<8x16xbf16>
    %66 = vector.extract_strided_slice %8 {offsets = [16, 0], sizes = [16, 32], strides = [1, 1]} : vector<32x32xbf16> to vector<16x32xbf16>
    %cst_28 = arith.constant dense<0.000000e+00> : vector<8x32xf32>
    %67 = tpu.matmul %65, %66, %cst_28 {dimension_numbers = #tpu.dot_dimension_numbers<[1], [0], [0], [1], [0, 0, 1, 1], [], []>} : vector<8x16xbf16>, vector<16x32xbf16>, vector<8x32xf32> -> vector<8x32xf32>
    %68 = arith.addf %44, %67 : vector<8x32xf32>
    %69 = arith.addf %2, %68 : vector<8x32xf32>
    %c0_29 = arith.constant 0 : index
    %c0_30 = arith.constant 0 : index
    %c0_31 = arith.constant 0 : index
    %70 = vector.load %arg8[%c0_29, %c0_30, %c0_31] : memref<2x1x32xf32, #tpu.memory_space<vmem>>, vector<1x1x32xf32>
    %71 = vector.shape_cast %70 : vector<1x1x32xf32> to vector<1x32xf32>
    %c0_32 = arith.constant 0 : index
    %c0_33 = arith.constant 0 : index
    %c0_34 = arith.constant 0 : index
    %72 = vector.load %arg9[%c0_32, %c0_33, %c0_34] : memref<2x1x32xf32, #tpu.memory_space<vmem>>, vector<1x1x32xf32>
    %73 = vector.shape_cast %72 : vector<1x1x32xf32> to vector<1x32xf32>
    %cst_35 = arith.constant dense<0.000000e+00> : vector<8xf32>
    %74 = vector.multi_reduction <add>, %69, %cst_35 [1] : vector<8x32xf32> to vector<8xf32>
    %75 = vector.shape_cast %74 : vector<8xf32> to vector<8x1xf32>
    %cst_36 = arith.constant 3.200000e+01 : f32
    %76 = vector.broadcast %cst_36 : f32 to vector<8x1xf32>
    %77 = arith.divf %75, %76 : vector<8x1xf32>
    %78 = vector.broadcast %77 : vector<8x1xf32> to vector<8x32xf32>
    %79 = arith.subf %69, %78 : vector<8x32xf32>
    %80 = arith.mulf %79, %79 : vector<8x32xf32>
    %cst_37 = arith.constant dense<0.000000e+00> : vector<8xf32>
    %81 = vector.multi_reduction <add>, %80, %cst_37 [1] : vector<8x32xf32> to vector<8xf32>
    %82 = vector.shape_cast %81 : vector<8xf32> to vector<8x1xf32>
    %cst_38 = arith.constant 3.200000e+01 : f32
    %83 = vector.broadcast %cst_38 : f32 to vector<8x1xf32>
    %84 = arith.divf %82, %83 : vector<8x1xf32>
    %85 = vector.broadcast %77 : vector<8x1xf32> to vector<8x32xf32>
    %86 = arith.subf %69, %85 : vector<8x32xf32>
    %cst_39 = arith.constant 9.99999974E-6 : f32
    %87 = vector.broadcast %cst_39 : f32 to vector<8x1xf32>
    %88 = arith.addf %84, %87 : vector<8x1xf32>
    %89 = math.rsqrt %88 : vector<8x1xf32>
    %90 = vector.broadcast %89 : vector<8x1xf32> to vector<8x32xf32>
    %91 = arith.mulf %86, %90 : vector<8x32xf32>
    %92 = vector.broadcast %71 : vector<1x32xf32> to vector<8x32xf32>
    %93 = arith.mulf %91, %92 : vector<8x32xf32>
    %94 = vector.broadcast %73 : vector<1x32xf32> to vector<8x32xf32>
    %95 = arith.addf %93, %94 : vector<8x32xf32>
    %c0_40 = arith.constant 0 : index
    %c0_41 = arith.constant 0 : index
    %c0_42 = arith.constant 0 : index
    %96 = vector.load %arg10[%c0_40, %c0_41, %c0_42] : memref<2x32x64xbf16, #tpu.memory_space<vmem>>, vector<1x32x64xbf16>
    %97 = vector.shape_cast %96 : vector<1x32x64xbf16> to vector<32x64xbf16>
    %c0_43 = arith.constant 0 : index
    %c0_44 = arith.constant 0 : index
    %c0_45 = arith.constant 0 : index
    %98 = vector.load %arg11[%c0_43, %c0_44, %c0_45] : memref<2x1x64xf32, #tpu.memory_space<vmem>>, vector<1x1x64xf32>
    %99 = vector.shape_cast %98 : vector<1x1x64xf32> to vector<1x64xf32>
    %100 = arith.truncf %95 : vector<8x32xf32> to vector<8x32xbf16>
    %cst_46 = arith.constant dense<0.000000e+00> : vector<8x64xf32>
    %101 = tpu.matmul %100, %97, %cst_46 {dimension_numbers = #tpu.dot_dimension_numbers<[1], [0], [0], [1], [0, 0, 1, 1], [], []>} : vector<8x32xbf16>, vector<32x64xbf16>, vector<8x64xf32> -> vector<8x64xf32>
    %102 = vector.broadcast %99 : vector<1x64xf32> to vector<8x64xf32>
    %103 = arith.addf %101, %102 : vector<8x64xf32>
    %cst_47 = arith.constant 0.000000e+00 : f32
    %104 = vector.broadcast %cst_47 : f32 to vector<8x64xf32>
    %105 = arith.maximumf %103, %104 : vector<8x64xf32>
    %c0_48 = arith.constant 0 : index
    %c0_49 = arith.constant 0 : index
    %c0_50 = arith.constant 0 : index
    %106 = vector.load %arg12[%c0_48, %c0_49, %c0_50] : memref<2x64x32xbf16, #tpu.memory_space<vmem>>, vector<1x64x32xbf16>
    %107 = vector.shape_cast %106 : vector<1x64x32xbf16> to vector<64x32xbf16>
    %c0_51 = arith.constant 0 : index
    %c0_52 = arith.constant 0 : index
    %c0_53 = arith.constant 0 : index
    %108 = vector.load %arg13[%c0_51, %c0_52, %c0_53] : memref<2x1x32xf32, #tpu.memory_space<vmem>>, vector<1x1x32xf32>
    %109 = vector.shape_cast %108 : vector<1x1x32xf32> to vector<1x32xf32>
    %110 = arith.truncf %105 : vector<8x64xf32> to vector<8x64xbf16>
    %cst_54 = arith.constant dense<0.000000e+00> : vector<8x32xf32>
    %111 = tpu.matmul %110, %107, %cst_54 {dimension_numbers = #tpu.dot_dimension_numbers<[1], [0], [0], [1], [0, 0, 1, 1], [], []>} : vector<8x64xbf16>, vector<64x32xbf16>, vector<8x32xf32> -> vector<8x32xf32>
    %112 = vector.broadcast %109 : vector<1x32xf32> to vector<8x32xf32>
    %113 = arith.addf %111, %112 : vector<8x32xf32>
    %114 = arith.addf %95, %113 : vector<8x32xf32>
    %c0_55 = arith.constant 0 : index
    %c0_56 = arith.constant 0 : index
    %c0_57 = arith.constant 0 : index
    %115 = vector.load %arg14[%c0_55, %c0_56, %c0_57] : memref<2x1x32xf32, #tpu.memory_space<vmem>>, vector<1x1x32xf32>
    %116 = vector.shape_cast %115 : vector<1x1x32xf32> to vector<1x32xf32>
    %c0_58 = arith.constant 0 : index
    %c0_59 = arith.constant 0 : index
    %c0_60 = arith.constant 0 : index
    %117 = vector.load %arg15[%c0_58, %c0_59, %c0_60] : memref<2x1x32xf32, #tpu.memory_space<vmem>>, vector<1x1x32xf32>
    %118 = vector.shape_cast %117 : vector<1x1x32xf32> to vector<1x32xf32>
    %cst_61 = arith.constant dense<0.000000e+00> : vector<8xf32>
    %119 = vector.multi_reduction <add>, %114, %cst_61 [1] : vector<8x32xf32> to vector<8xf32>
    %120 = vector.shape_cast %119 : vector<8xf32> to vector<8x1xf32>
    %cst_62 = arith.constant 3.200000e+01 : f32
    %121 = vector.broadcast %cst_62 : f32 to vector<8x1xf32>
    %122 = arith.divf %120, %121 : vector<8x1xf32>
    %123 = vector.broadcast %122 : vector<8x1xf32> to vector<8x32xf32>
    %124 = arith.subf %114, %123 : vector<8x32xf32>
    %125 = arith.mulf %124, %124 : vector<8x32xf32>
    %cst_63 = arith.constant dense<0.000000e+00> : vector<8xf32>
    %126 = vector.multi_reduction <add>, %125, %cst_63 [1] : vector<8x32xf32> to vector<8xf32>
    %127 = vector.shape_cast %126 : vector<8xf32> to vector<8x1xf32>
    %cst_64 = arith.constant 3.200000e+01 : f32
    %128 = vector.broadcast %cst_64 : f32 to vector<8x1xf32>
    %129 = arith.divf %127, %128 : vector<8x1xf32>
    %130 = vector.broadcast %122 : vector<8x1xf32> to vector<8x32xf32>
    %131 = arith.subf %114, %130 : vector<8x32xf32>
    %cst_65 = arith.constant 9.99999974E-6 : f32
    %132 = vector.broadcast %cst_65 : f32 to vector<8x1xf32>
    %133 = arith.addf %129, %132 : vector<8x1xf32>
    %134 = math.rsqrt %133 : vector<8x1xf32>
    %135 = vector.broadcast %134 : vector<8x1xf32> to vector<8x32xf32>
    %136 = arith.mulf %131, %135 : vector<8x32xf32>
    %137 = vector.broadcast %116 : vector<1x32xf32> to vector<8x32xf32>
    %138 = arith.mulf %136, %137 : vector<8x32xf32>
    %139 = vector.broadcast %118 : vector<1x32xf32> to vector<8x32xf32>
    %140 = arith.addf %138, %139 : vector<8x32xf32>
    %c1 = arith.constant 1 : index
    %c0_66 = arith.constant 0 : index
    %c0_67 = arith.constant 0 : index
    %141 = vector.load %arg4[%c1, %c0_66, %c0_67] : memref<2x32x96xbf16, #tpu.memory_space<vmem>>, vector<1x32x96xbf16>
    %142 = vector.shape_cast %141 : vector<1x32x96xbf16> to vector<32x96xbf16>
    %c1_68 = arith.constant 1 : index
    %c0_69 = arith.constant 0 : index
    %c0_70 = arith.constant 0 : index
    %143 = vector.load %arg5[%c1_68, %c0_69, %c0_70] : memref<2x1x96xf32, #tpu.memory_space<vmem>>, vector<1x1x96xf32>
    %144 = vector.shape_cast %143 : vector<1x1x96xf32> to vector<1x96xf32>
    %c1_71 = arith.constant 1 : index
    %c0_72 = arith.constant 0 : index
    %c0_73 = arith.constant 0 : index
    %145 = vector.load %arg6[%c1_71, %c0_72, %c0_73] : memref<2x32x32xbf16, #tpu.memory_space<vmem>>, vector<1x32x32xbf16>
    %146 = vector.shape_cast %145 : vector<1x32x32xbf16> to vector<32x32xbf16>
    %c1_74 = arith.constant 1 : index
    %c0_75 = arith.constant 0 : index
    %c0_76 = arith.constant 0 : index
    %147 = vector.load %arg7[%c1_74, %c0_75, %c0_76] : memref<2x1x32xf32, #tpu.memory_space<vmem>>, vector<1x1x32xf32>
    %148 = vector.shape_cast %147 : vector<1x1x32xf32> to vector<1x32xf32>
    %149 = arith.truncf %140 : vector<8x32xf32> to vector<8x32xbf16>
    %cst_77 = arith.constant dense<0.000000e+00> : vector<8x96xf32>
    %150 = tpu.matmul %149, %142, %cst_77 {dimension_numbers = #tpu.dot_dimension_numbers<[1], [0], [0], [1], [0, 0, 1, 1], [], []>} : vector<8x32xbf16>, vector<32x96xbf16>, vector<8x96xf32> -> vector<8x96xf32>
    %151 = vector.broadcast %144 : vector<1x96xf32> to vector<8x96xf32>
    %152 = arith.addf %150, %151 : vector<8x96xf32>
    %153 = vector.extract_strided_slice %152 {offsets = [0, 0], sizes = [8, 32], strides = [1, 1]} : vector<8x96xf32> to vector<8x32xf32>
    %154 = vector.extract_strided_slice %152 {offsets = [0, 32], sizes = [8, 32], strides = [1, 1]} : vector<8x96xf32> to vector<8x32xf32>
    %155 = vector.extract_strided_slice %152 {offsets = [0, 64], sizes = [8, 32], strides = [1, 1]} : vector<8x96xf32> to vector<8x32xf32>
    %cst_78 = arith.constant 0.000000e+00 : f32
    %156 = vector.broadcast %cst_78 : f32 to vector<8x32xf32>
    %157 = vector.broadcast %148 : vector<1x32xf32> to vector<8x32xf32>
    %158 = arith.addf %156, %157 : vector<8x32xf32>
    %159 = vector.extract_strided_slice %153 {offsets = [0, 0], sizes = [8, 16], strides = [1, 1]} : vector<8x32xf32> to vector<8x16xf32>
    %160 = arith.truncf %159 : vector<8x16xf32> to vector<8x16xbf16>
    %161 = vector.extract_strided_slice %154 {offsets = [0, 0], sizes = [8, 16], strides = [1, 1]} : vector<8x32xf32> to vector<8x16xf32>
    %162 = arith.truncf %161 : vector<8x16xf32> to vector<8x16xbf16>
    %163 = vector.extract_strided_slice %155 {offsets = [0, 0], sizes = [8, 16], strides = [1, 1]} : vector<8x32xf32> to vector<8x16xf32>
    %164 = arith.truncf %163 : vector<8x16xf32> to vector<8x16xbf16>
    "tpu.trace_start"() <{level = 10 : i32, message = "sd,td->st"}> : () -> ()
    %cst_79 = arith.constant dense<0.000000e+00> : vector<8x8xf32>
    %165 = tpu.matmul %160, %162, %cst_79 {dimension_numbers = #tpu.dot_dimension_numbers<[1], [1], [0], [0], [0, 0, 1, 0], [], []>} : vector<8x16xbf16>, vector<8x16xbf16>, vector<8x8xf32> -> vector<8x8xf32>
    "tpu.trace_stop"() : () -> ()
    %cst_80 = arith.constant 2.500000e-01 : f32
    %166 = vector.broadcast %cst_80 : f32 to vector<8x8xf32>
    %167 = arith.mulf %165, %166 : vector<8x8xf32>
    %cst_81 = arith.constant dense<0xFF800000> : vector<8xf32>
    %168 = vector.multi_reduction <maximumf>, %167, %cst_81 [1] : vector<8x8xf32> to vector<8xf32>
    %169 = vector.shape_cast %168 : vector<8xf32> to vector<8x1xf32>
    %170 = vector.broadcast %169 : vector<8x1xf32> to vector<8x8xf32>
    %171 = arith.subf %167, %170 : vector<8x8xf32>
    %172 = math.exp %171 : vector<8x8xf32>
    %cst_82 = arith.constant dense<0.000000e+00> : vector<8xf32>
    %173 = vector.multi_reduction <add>, %172, %cst_82 [1] : vector<8x8xf32> to vector<8xf32>
    %174 = vector.shape_cast %173 : vector<8xf32> to vector<8x1xf32>
    %175 = vector.broadcast %174 : vector<8x1xf32> to vector<8x8xf32>
    %176 = arith.divf %172, %175 : vector<8x8xf32>
    %177 = arith.truncf %176 : vector<8x8xf32> to vector<8x8xbf16>
    %cst_83 = arith.constant dense<0.000000e+00> : vector<8x16xf32>
    %178 = tpu.matmul %177, %164, %cst_83 {dimension_numbers = #tpu.dot_dimension_numbers<[1], [0], [0], [1], [0, 0, 1, 1], [], []>} : vector<8x8xbf16>, vector<8x16xbf16>, vector<8x16xf32> -> vector<8x16xf32>
    %179 = arith.truncf %178 : vector<8x16xf32> to vector<8x16xbf16>
    %180 = vector.extract_strided_slice %146 {offsets = [0, 0], sizes = [16, 32], strides = [1, 1]} : vector<32x32xbf16> to vector<16x32xbf16>
    %cst_84 = arith.constant dense<0.000000e+00> : vector<8x32xf32>
    %181 = tpu.matmul %179, %180, %cst_84 {dimension_numbers = #tpu.dot_dimension_numbers<[1], [0], [0], [1], [0, 0, 1, 1], [], []>} : vector<8x16xbf16>, vector<16x32xbf16>, vector<8x32xf32> -> vector<8x32xf32>
    %182 = arith.addf %158, %181 : vector<8x32xf32>
    %183 = vector.extract_strided_slice %153 {offsets = [0, 16], sizes = [8, 16], strides = [1, 1]} : vector<8x32xf32> to vector<8x16xf32>
    %184 = arith.truncf %183 : vector<8x16xf32> to vector<8x16xbf16>
    %185 = vector.extract_strided_slice %154 {offsets = [0, 16], sizes = [8, 16], strides = [1, 1]} : vector<8x32xf32> to vector<8x16xf32>
    %186 = arith.truncf %185 : vector<8x16xf32> to vector<8x16xbf16>
    %187 = vector.extract_strided_slice %155 {offsets = [0, 16], sizes = [8, 16], strides = [1, 1]} : vector<8x32xf32> to vector<8x16xf32>
    %188 = arith.truncf %187 : vector<8x16xf32> to vector<8x16xbf16>
    "tpu.trace_start"() <{level = 10 : i32, message = "sd,td->st"}> : () -> ()
    %cst_85 = arith.constant dense<0.000000e+00> : vector<8x8xf32>
    %189 = tpu.matmul %184, %186, %cst_85 {dimension_numbers = #tpu.dot_dimension_numbers<[1], [1], [0], [0], [0, 0, 1, 0], [], []>} : vector<8x16xbf16>, vector<8x16xbf16>, vector<8x8xf32> -> vector<8x8xf32>
    "tpu.trace_stop"() : () -> ()
    %cst_86 = arith.constant 2.500000e-01 : f32
    %190 = vector.broadcast %cst_86 : f32 to vector<8x8xf32>
    %191 = arith.mulf %189, %190 : vector<8x8xf32>
    %cst_87 = arith.constant dense<0xFF800000> : vector<8xf32>
    %192 = vector.multi_reduction <maximumf>, %191, %cst_87 [1] : vector<8x8xf32> to vector<8xf32>
    %193 = vector.shape_cast %192 : vector<8xf32> to vector<8x1xf32>
    %194 = vector.broadcast %193 : vector<8x1xf32> to vector<8x8xf32>
    %195 = arith.subf %191, %194 : vector<8x8xf32>
    %196 = math.exp %195 : vector<8x8xf32>
    %cst_88 = arith.constant dense<0.000000e+00> : vector<8xf32>
    %197 = vector.multi_reduction <add>, %196, %cst_88 [1] : vector<8x8xf32> to vector<8xf32>
    %198 = vector.shape_cast %197 : vector<8xf32> to vector<8x1xf32>
    %199 = vector.broadcast %198 : vector<8x1xf32> to vector<8x8xf32>
    %200 = arith.divf %196, %199 : vector<8x8xf32>
    %201 = arith.truncf %200 : vector<8x8xf32> to vector<8x8xbf16>
    %cst_89 = arith.constant dense<0.000000e+00> : vector<8x16xf32>
    %202 = tpu.matmul %201, %188, %cst_89 {dimension_numbers = #tpu.dot_dimension_numbers<[1], [0], [0], [1], [0, 0, 1, 1], [], []>} : vector<8x8xbf16>, vector<8x16xbf16>, vector<8x16xf32> -> vector<8x16xf32>
    %203 = arith.truncf %202 : vector<8x16xf32> to vector<8x16xbf16>
    %204 = vector.extract_strided_slice %146 {offsets = [16, 0], sizes = [16, 32], strides = [1, 1]} : vector<32x32xbf16> to vector<16x32xbf16>
    %cst_90 = arith.constant dense<0.000000e+00> : vector<8x32xf32>
    %205 = tpu.matmul %203, %204, %cst_90 {dimension_numbers = #tpu.dot_dimension_numbers<[1], [0], [0], [1], [0, 0, 1, 1], [], []>} : vector<8x16xbf16>, vector<16x32xbf16>, vector<8x32xf32> -> vector<8x32xf32>
    %206 = arith.addf %182, %205 : vector<8x32xf32>
    %207 = arith.addf %140, %206 : vector<8x32xf32>
    %c1_91 = arith.constant 1 : index
    %c0_92 = arith.constant 0 : index
    %c0_93 = arith.constant 0 : index
    %208 = vector.load %arg8[%c1_91, %c0_92, %c0_93] : memref<2x1x32xf32, #tpu.memory_space<vmem>>, vector<1x1x32xf32>
    %209 = vector.shape_cast %208 : vector<1x1x32xf32> to vector<1x32xf32>
    %c1_94 = arith.constant 1 : index
    %c0_95 = arith.constant 0 : index
    %c0_96 = arith.constant 0 : index
    %210 = vector.load %arg9[%c1_94, %c0_95, %c0_96] : memref<2x1x32xf32, #tpu.memory_space<vmem>>, vector<1x1x32xf32>
    %211 = vector.shape_cast %210 : vector<1x1x32xf32> to vector<1x32xf32>
    %cst_97 = arith.constant dense<0.000000e+00> : vector<8xf32>
    %212 = vector.multi_reduction <add>, %207, %cst_97 [1] : vector<8x32xf32> to vector<8xf32>
    %213 = vector.shape_cast %212 : vector<8xf32> to vector<8x1xf32>
    %cst_98 = arith.constant 3.200000e+01 : f32
    %214 = vector.broadcast %cst_98 : f32 to vector<8x1xf32>
    %215 = arith.divf %213, %214 : vector<8x1xf32>
    %216 = vector.broadcast %215 : vector<8x1xf32> to vector<8x32xf32>
    %217 = arith.subf %207, %216 : vector<8x32xf32>
    %218 = arith.mulf %217, %217 : vector<8x32xf32>
    %cst_99 = arith.constant dense<0.000000e+00> : vector<8xf32>
    %219 = vector.multi_reduction <add>, %218, %cst_99 [1] : vector<8x32xf32> to vector<8xf32>
    %220 = vector.shape_cast %219 : vector<8xf32> to vector<8x1xf32>
    %cst_100 = arith.constant 3.200000e+01 : f32
    %221 = vector.broadcast %cst_100 : f32 to vector<8x1xf32>
    %222 = arith.divf %220, %221 : vector<8x1xf32>
    %223 = vector.broadcast %215 : vector<8x1xf32> to vector<8x32xf32>
    %224 = arith.subf %207, %223 : vector<8x32xf32>
    %cst_101 = arith.constant 9.99999974E-6 : f32
    %225 = vector.broadcast %cst_101 : f32 to vector<8x1xf32>
    %226 = arith.addf %222, %225 : vector<8x1xf32>
    %227 = math.rsqrt %226 : vector<8x1xf32>
    %228 = vector.broadcast %227 : vector<8x1xf32> to vector<8x32xf32>
    %229 = arith.mulf %224, %228 : vector<8x32xf32>
    %230 = vector.broadcast %209 : vector<1x32xf32> to vector<8x32xf32>
    %231 = arith.mulf %229, %230 : vector<8x32xf32>
    %232 = vector.broadcast %211 : vector<1x32xf32> to vector<8x32xf32>
    %233 = arith.addf %231, %232 : vector<8x32xf32>
    %c1_102 = arith.constant 1 : index
    %c0_103 = arith.constant 0 : index
    %c0_104 = arith.constant 0 : index
    %234 = vector.load %arg10[%c1_102, %c0_103, %c0_104] : memref<2x32x64xbf16, #tpu.memory_space<vmem>>, vector<1x32x64xbf16>
    %235 = vector.shape_cast %234 : vector<1x32x64xbf16> to vector<32x64xbf16>
    %c1_105 = arith.constant 1 : index
    %c0_106 = arith.constant 0 : index
    %c0_107 = arith.constant 0 : index
    %236 = vector.load %arg11[%c1_105, %c0_106, %c0_107] : memref<2x1x64xf32, #tpu.memory_space<vmem>>, vector<1x1x64xf32>
    %237 = vector.shape_cast %236 : vector<1x1x64xf32> to vector<1x64xf32>
    %238 = arith.truncf %233 : vector<8x32xf32> to vector<8x32xbf16>
    %cst_108 = arith.constant dense<0.000000e+00> : vector<8x64xf32>
    %239 = tpu.matmul %238, %235, %cst_108 {dimension_numbers = #tpu.dot_dimension_numbers<[1], [0], [0], [1], [0, 0, 1, 1], [], []>} : vector<8x32xbf16>, vector<32x64xbf16>, vector<8x64xf32> -> vector<8x64xf32>
    %240 = vector.broadcast %237 : vector<1x64xf32> to vector<8x64xf32>
    %241 = arith.addf %239, %240 : vector<8x64xf32>
    %cst_109 = arith.constant 0.000000e+00 : f32
    %242 = vector.broadcast %cst_109 : f32 to vector<8x64xf32>
    %243 = arith.maximumf %241, %242 : vector<8x64xf32>
    %c1_110 = arith.constant 1 : index
    %c0_111 = arith.constant 0 : index
    %c0_112 = arith.constant 0 : index
    %244 = vector.load %arg12[%c1_110, %c0_111, %c0_112] : memref<2x64x32xbf16, #tpu.memory_space<vmem>>, vector<1x64x32xbf16>
    %245 = vector.shape_cast %244 : vector<1x64x32xbf16> to vector<64x32xbf16>
    %c1_113 = arith.constant 1 : index
    %c0_114 = arith.constant 0 : index
    %c0_115 = arith.constant 0 : index
    %246 = vector.load %arg13[%c1_113, %c0_114, %c0_115] : memref<2x1x32xf32, #tpu.memory_space<vmem>>, vector<1x1x32xf32>
    %247 = vector.shape_cast %246 : vector<1x1x32xf32> to vector<1x32xf32>
    %248 = arith.truncf %243 : vector<8x64xf32> to vector<8x64xbf16>
    %cst_116 = arith.constant dense<0.000000e+00> : vector<8x32xf32>
    %249 = tpu.matmul %248, %245, %cst_116 {dimension_numbers = #tpu.dot_dimension_numbers<[1], [0], [0], [1], [0, 0, 1, 1], [], []>} : vector<8x64xbf16>, vector<64x32xbf16>, vector<8x32xf32> -> vector<8x32xf32>
    %250 = vector.broadcast %247 : vector<1x32xf32> to vector<8x32xf32>
    %251 = arith.addf %249, %250 : vector<8x32xf32>
    %252 = arith.addf %233, %251 : vector<8x32xf32>
    %c1_117 = arith.constant 1 : index
    %c0_118 = arith.constant 0 : index
    %c0_119 = arith.constant 0 : index
    %253 = vector.load %arg14[%c1_117, %c0_118, %c0_119] : memref<2x1x32xf32, #tpu.memory_space<vmem>>, vector<1x1x32xf32>
    %254 = vector.shape_cast %253 : vector<1x1x32xf32> to vector<1x32xf32>
    %c1_120 = arith.constant 1 : index
    %c0_121 = arith.constant 0 : index
    %c0_122 = arith.constant 0 : index
    %255 = vector.load %arg15[%c1_120, %c0_121, %c0_122] : memref<2x1x32xf32, #tpu.memory_space<vmem>>, vector<1x1x32xf32>
    %256 = vector.shape_cast %255 : vector<1x1x32xf32> to vector<1x32xf32>
    %cst_123 = arith.constant dense<0.000000e+00> : vector<8xf32>
    %257 = vector.multi_reduction <add>, %252, %cst_123 [1] : vector<8x32xf32> to vector<8xf32>
    %258 = vector.shape_cast %257 : vector<8xf32> to vector<8x1xf32>
    %cst_124 = arith.constant 3.200000e+01 : f32
    %259 = vector.broadcast %cst_124 : f32 to vector<8x1xf32>
    %260 = arith.divf %258, %259 : vector<8x1xf32>
    %261 = vector.broadcast %260 : vector<8x1xf32> to vector<8x32xf32>
    %262 = arith.subf %252, %261 : vector<8x32xf32>
    %263 = arith.mulf %262, %262 : vector<8x32xf32>
    %cst_125 = arith.constant dense<0.000000e+00> : vector<8xf32>
    %264 = vector.multi_reduction <add>, %263, %cst_125 [1] : vector<8x32xf32> to vector<8xf32>
    %265 = vector.shape_cast %264 : vector<8xf32> to vector<8x1xf32>
    %cst_126 = arith.constant 3.200000e+01 : f32
    %266 = vector.broadcast %cst_126 : f32 to vector<8x1xf32>
    %267 = arith.divf %265, %266 : vector<8x1xf32>
    %268 = vector.broadcast %260 : vector<8x1xf32> to vector<8x32xf32>
    %269 = arith.subf %252, %268 : vector<8x32xf32>
    %cst_127 = arith.constant 9.99999974E-6 : f32
    %270 = vector.broadcast %cst_127 : f32 to vector<8x1xf32>
    %271 = arith.addf %267, %270 : vector<8x1xf32>
    %272 = math.rsqrt %271 : vector<8x1xf32>
    %273 = vector.broadcast %272 : vector<8x1xf32> to vector<8x32xf32>
    %274 = arith.mulf %269, %273 : vector<8x32xf32>
    %275 = vector.broadcast %254 : vector<1x32xf32> to vector<8x32xf32>
    %276 = arith.mulf %274, %275 : vector<8x32xf32>
    %277 = vector.broadcast %256 : vector<1x32xf32> to vector<8x32xf32>
    %278 = arith.addf %276, %277 : vector<8x32xf32>
    %c0_128 = arith.constant 0 : index
    %c0_129 = arith.constant 0 : index
    %c0_130 = arith.constant 0 : index
    %279 = vector.load %arg2[%c0_128, %c0_129, %c0_130] : memref<1x8x32xf32, #tpu.memory_space<vmem>>, vector<1x8x32xf32>
    %280 = vector.shape_cast %279 : vector<1x8x32xf32> to vector<8x32xf32>
    %c0_131 = arith.constant 0 : index
    %c0_132 = arith.constant 0 : index
    %c0_133 = arith.constant 0 : index
    %281 = vector.load %arg16[%c0_131, %c0_132, %c0_133] : memref<2x32x96xbf16, #tpu.memory_space<vmem>>, vector<1x32x96xbf16>
    %282 = vector.shape_cast %281 : vector<1x32x96xbf16> to vector<32x96xbf16>
    %c0_134 = arith.constant 0 : index
    %c0_135 = arith.constant 0 : index
    %c0_136 = arith.constant 0 : index
    %283 = vector.load %arg17[%c0_134, %c0_135, %c0_136] : memref<2x1x96xf32, #tpu.memory_space<vmem>>, vector<1x1x96xf32>
    %284 = vector.shape_cast %283 : vector<1x1x96xf32> to vector<1x96xf32>
    %c0_137 = arith.constant 0 : index
    %c0_138 = arith.constant 0 : index
    %c0_139 = arith.constant 0 : index
    %285 = vector.load %arg18[%c0_137, %c0_138, %c0_139] : memref<2x32x32xbf16, #tpu.memory_space<vmem>>, vector<1x32x32xbf16>
    %286 = vector.shape_cast %285 : vector<1x32x32xbf16> to vector<32x32xbf16>
    %c0_140 = arith.constant 0 : index
    %c0_141 = arith.constant 0 : index
    %c0_142 = arith.constant 0 : index
    %287 = vector.load %arg19[%c0_140, %c0_141, %c0_142] : memref<2x1x32xf32, #tpu.memory_space<vmem>>, vector<1x1x32xf32>
    %288 = vector.shape_cast %287 : vector<1x1x32xf32> to vector<1x32xf32>
    %289 = arith.truncf %280 : vector<8x32xf32> to vector<8x32xbf16>
    %cst_143 = arith.constant dense<0.000000e+00> : vector<8x96xf32>
    %290 = tpu.matmul %289, %282, %cst_143 {dimension_numbers = #tpu.dot_dimension_numbers<[1], [0], [0], [1], [0, 0, 1, 1], [], []>} : vector<8x32xbf16>, vector<32x96xbf16>, vector<8x96xf32> -> vector<8x96xf32>
    %291 = vector.broadcast %284 : vector<1x96xf32> to vector<8x96xf32>
    %292 = arith.addf %290, %291 : vector<8x96xf32>
    %293 = vector.extract_strided_slice %292 {offsets = [0, 0], sizes = [8, 32], strides = [1, 1]} : vector<8x96xf32> to vector<8x32xf32>
    %294 = vector.extract_strided_slice %292 {offsets = [0, 32], sizes = [8, 32], strides = [1, 1]} : vector<8x96xf32> to vector<8x32xf32>
    %295 = vector.extract_strided_slice %292 {offsets = [0, 64], sizes = [8, 32], strides = [1, 1]} : vector<8x96xf32> to vector<8x32xf32>
    %cst_144 = arith.constant 0.000000e+00 : f32
    %296 = vector.broadcast %cst_144 : f32 to vector<8x32xf32>
    %297 = vector.broadcast %288 : vector<1x32xf32> to vector<8x32xf32>
    %298 = arith.addf %296, %297 : vector<8x32xf32>
    %299 = vector.extract_strided_slice %293 {offsets = [0, 0], sizes = [8, 16], strides = [1, 1]} : vector<8x32xf32> to vector<8x16xf32>
    %300 = arith.truncf %299 : vector<8x16xf32> to vector<8x16xbf16>
    %301 = vector.extract_strided_slice %294 {offsets = [0, 0], sizes = [8, 16], strides = [1, 1]} : vector<8x32xf32> to vector<8x16xf32>
    %302 = arith.truncf %301 : vector<8x16xf32> to vector<8x16xbf16>
    %303 = vector.extract_strided_slice %295 {offsets = [0, 0], sizes = [8, 16], strides = [1, 1]} : vector<8x32xf32> to vector<8x16xf32>
    %304 = arith.truncf %303 : vector<8x16xf32> to vector<8x16xbf16>
    "tpu.trace_start"() <{level = 10 : i32, message = "sd,td->st"}> : () -> ()
    %cst_145 = arith.constant dense<0.000000e+00> : vector<8x8xf32>
    %305 = tpu.matmul %300, %302, %cst_145 {dimension_numbers = #tpu.dot_dimension_numbers<[1], [1], [0], [0], [0, 0, 1, 0], [], []>} : vector<8x16xbf16>, vector<8x16xbf16>, vector<8x8xf32> -> vector<8x8xf32>
    "tpu.trace_stop"() : () -> ()
    %cst_146 = arith.constant 2.500000e-01 : f32
    %306 = vector.broadcast %cst_146 : f32 to vector<8x8xf32>
    %307 = arith.mulf %305, %306 : vector<8x8xf32>
    %308 = arith.addf %307, %0 : vector<8x8xf32>
    %cst_147 = arith.constant dense<0xFF800000> : vector<8xf32>
    %309 = vector.multi_reduction <maximumf>, %308, %cst_147 [1] : vector<8x8xf32> to vector<8xf32>
    %310 = vector.shape_cast %309 : vector<8xf32> to vector<8x1xf32>
    %311 = vector.broadcast %310 : vector<8x1xf32> to vector<8x8xf32>
    %312 = arith.subf %308, %311 : vector<8x8xf32>
    %313 = math.exp %312 : vector<8x8xf32>
    %cst_148 = arith.constant dense<0.000000e+00> : vector<8xf32>
    %314 = vector.multi_reduction <add>, %313, %cst_148 [1] : vector<8x8xf32> to vector<8xf32>
    %315 = vector.shape_cast %314 : vector<8xf32> to vector<8x1xf32>
    %316 = vector.broadcast %315 : vector<8x1xf32> to vector<8x8xf32>
    %317 = arith.divf %313, %316 : vector<8x8xf32>
    %318 = arith.truncf %317 : vector<8x8xf32> to vector<8x8xbf16>
    %cst_149 = arith.constant dense<0.000000e+00> : vector<8x16xf32>
    %319 = tpu.matmul %318, %304, %cst_149 {dimension_numbers = #tpu.dot_dimension_numbers<[1], [0], [0], [1], [0, 0, 1, 1], [], []>} : vector<8x8xbf16>, vector<8x16xbf16>, vector<8x16xf32> -> vector<8x16xf32>
    %320 = arith.truncf %319 : vector<8x16xf32> to vector<8x16xbf16>
    %321 = vector.extract_strided_slice %286 {offsets = [0, 0], sizes = [16, 32], strides = [1, 1]} : vector<32x32xbf16> to vector<16x32xbf16>
    %cst_150 = arith.constant dense<0.000000e+00> : vector<8x32xf32>
    %322 = tpu.matmul %320, %321, %cst_150 {dimension_numbers = #tpu.dot_dimension_numbers<[1], [0], [0], [1], [0, 0, 1, 1], [], []>} : vector<8x16xbf16>, vector<16x32xbf16>, vector<8x32xf32> -> vector<8x32xf32>
    %323 = arith.addf %298, %322 : vector<8x32xf32>
    %324 = vector.extract_strided_slice %293 {offsets = [0, 16], sizes = [8, 16], strides = [1, 1]} : vector<8x32xf32> to vector<8x16xf32>
    %325 = arith.truncf %324 : vector<8x16xf32> to vector<8x16xbf16>
    %326 = vector.extract_strided_slice %294 {offsets = [0, 16], sizes = [8, 16], strides = [1, 1]} : vector<8x32xf32> to vector<8x16xf32>
    %327 = arith.truncf %326 : vector<8x16xf32> to vector<8x16xbf16>
    %328 = vector.extract_strided_slice %295 {offsets = [0, 16], sizes = [8, 16], strides = [1, 1]} : vector<8x32xf32> to vector<8x16xf32>
    %329 = arith.truncf %328 : vector<8x16xf32> to vector<8x16xbf16>
    "tpu.trace_start"() <{level = 10 : i32, message = "sd,td->st"}> : () -> ()
    %cst_151 = arith.constant dense<0.000000e+00> : vector<8x8xf32>
    %330 = tpu.matmul %325, %327, %cst_151 {dimension_numbers = #tpu.dot_dimension_numbers<[1], [1], [0], [0], [0, 0, 1, 0], [], []>} : vector<8x16xbf16>, vector<8x16xbf16>, vector<8x8xf32> -> vector<8x8xf32>
    "tpu.trace_stop"() : () -> ()
    %cst_152 = arith.constant 2.500000e-01 : f32
    %331 = vector.broadcast %cst_152 : f32 to vector<8x8xf32>
    %332 = arith.mulf %330, %331 : vector<8x8xf32>
    %333 = arith.addf %332, %0 : vector<8x8xf32>
    %cst_153 = arith.constant dense<0xFF800000> : vector<8xf32>
    %334 = vector.multi_reduction <maximumf>, %333, %cst_153 [1] : vector<8x8xf32> to vector<8xf32>
    %335 = vector.shape_cast %334 : vector<8xf32> to vector<8x1xf32>
    %336 = vector.broadcast %335 : vector<8x1xf32> to vector<8x8xf32>
    %337 = arith.subf %333, %336 : vector<8x8xf32>
    %338 = math.exp %337 : vector<8x8xf32>
    %cst_154 = arith.constant dense<0.000000e+00> : vector<8xf32>
    %339 = vector.multi_reduction <add>, %338, %cst_154 [1] : vector<8x8xf32> to vector<8xf32>
    %340 = vector.shape_cast %339 : vector<8xf32> to vector<8x1xf32>
    %341 = vector.broadcast %340 : vector<8x1xf32> to vector<8x8xf32>
    %342 = arith.divf %338, %341 : vector<8x8xf32>
    %343 = arith.truncf %342 : vector<8x8xf32> to vector<8x8xbf16>
    %cst_155 = arith.constant dense<0.000000e+00> : vector<8x16xf32>
    %344 = tpu.matmul %343, %329, %cst_155 {dimension_numbers = #tpu.dot_dimension_numbers<[1], [0], [0], [1], [0, 0, 1, 1], [], []>} : vector<8x8xbf16>, vector<8x16xbf16>, vector<8x16xf32> -> vector<8x16xf32>
    %345 = arith.truncf %344 : vector<8x16xf32> to vector<8x16xbf16>
    %346 = vector.extract_strided_slice %286 {offsets = [16, 0], sizes = [16, 32], strides = [1, 1]} : vector<32x32xbf16> to vector<16x32xbf16>
    %cst_156 = arith.constant dense<0.000000e+00> : vector<8x32xf32>
    %347 = tpu.matmul %345, %346, %cst_156 {dimension_numbers = #tpu.dot_dimension_numbers<[1], [0], [0], [1], [0, 0, 1, 1], [], []>} : vector<8x16xbf16>, vector<16x32xbf16>, vector<8x32xf32> -> vector<8x32xf32>
    %348 = arith.addf %323, %347 : vector<8x32xf32>
    %349 = arith.addf %280, %348 : vector<8x32xf32>
    %c0_157 = arith.constant 0 : index
    %c0_158 = arith.constant 0 : index
    %c0_159 = arith.constant 0 : index
    %350 = vector.load %arg20[%c0_157, %c0_158, %c0_159] : memref<2x1x32xf32, #tpu.memory_space<vmem>>, vector<1x1x32xf32>
    %351 = vector.shape_cast %350 : vector<1x1x32xf32> to vector<1x32xf32>
    %c0_160 = arith.constant 0 : index
    %c0_161 = arith.constant 0 : index
    %c0_162 = arith.constant 0 : index
    %352 = vector.load %arg21[%c0_160, %c0_161, %c0_162] : memref<2x1x32xf32, #tpu.memory_space<vmem>>, vector<1x1x32xf32>
    %353 = vector.shape_cast %352 : vector<1x1x32xf32> to vector<1x32xf32>
    %cst_163 = arith.constant dense<0.000000e+00> : vector<8xf32>
    %354 = vector.multi_reduction <add>, %349, %cst_163 [1] : vector<8x32xf32> to vector<8xf32>
    %355 = vector.shape_cast %354 : vector<8xf32> to vector<8x1xf32>
    %cst_164 = arith.constant 3.200000e+01 : f32
    %356 = vector.broadcast %cst_164 : f32 to vector<8x1xf32>
    %357 = arith.divf %355, %356 : vector<8x1xf32>
    %358 = vector.broadcast %357 : vector<8x1xf32> to vector<8x32xf32>
    %359 = arith.subf %349, %358 : vector<8x32xf32>
    %360 = arith.mulf %359, %359 : vector<8x32xf32>
    %cst_165 = arith.constant dense<0.000000e+00> : vector<8xf32>
    %361 = vector.multi_reduction <add>, %360, %cst_165 [1] : vector<8x32xf32> to vector<8xf32>
    %362 = vector.shape_cast %361 : vector<8xf32> to vector<8x1xf32>
    %cst_166 = arith.constant 3.200000e+01 : f32
    %363 = vector.broadcast %cst_166 : f32 to vector<8x1xf32>
    %364 = arith.divf %362, %363 : vector<8x1xf32>
    %365 = vector.broadcast %357 : vector<8x1xf32> to vector<8x32xf32>
    %366 = arith.subf %349, %365 : vector<8x32xf32>
    %cst_167 = arith.constant 9.99999974E-6 : f32
    %367 = vector.broadcast %cst_167 : f32 to vector<8x1xf32>
    %368 = arith.addf %364, %367 : vector<8x1xf32>
    %369 = math.rsqrt %368 : vector<8x1xf32>
    %370 = vector.broadcast %369 : vector<8x1xf32> to vector<8x32xf32>
    %371 = arith.mulf %366, %370 : vector<8x32xf32>
    %372 = vector.broadcast %351 : vector<1x32xf32> to vector<8x32xf32>
    %373 = arith.mulf %371, %372 : vector<8x32xf32>
    %374 = vector.broadcast %353 : vector<1x32xf32> to vector<8x32xf32>
    %375 = arith.addf %373, %374 : vector<8x32xf32>
    %c0_168 = arith.constant 0 : index
    %c0_169 = arith.constant 0 : index
    %c0_170 = arith.constant 0 : index
    %376 = vector.load %arg22[%c0_168, %c0_169, %c0_170] : memref<2x32x96xbf16, #tpu.memory_space<vmem>>, vector<1x32x96xbf16>
    %377 = vector.shape_cast %376 : vector<1x32x96xbf16> to vector<32x96xbf16>
    %c0_171 = arith.constant 0 : index
    %c0_172 = arith.constant 0 : index
    %c0_173 = arith.constant 0 : index
    %378 = vector.load %arg23[%c0_171, %c0_172, %c0_173] : memref<2x1x96xf32, #tpu.memory_space<vmem>>, vector<1x1x96xf32>
    %379 = vector.shape_cast %378 : vector<1x1x96xf32> to vector<1x96xf32>
    %c0_174 = arith.constant 0 : index
    %c0_175 = arith.constant 0 : index
    %c0_176 = arith.constant 0 : index
    %380 = vector.load %arg24[%c0_174, %c0_175, %c0_176] : memref<2x32x32xbf16, #tpu.memory_space<vmem>>, vector<1x32x32xbf16>
    %381 = vector.shape_cast %380 : vector<1x32x32xbf16> to vector<32x32xbf16>
    %c0_177 = arith.constant 0 : index
    %c0_178 = arith.constant 0 : index
    %c0_179 = arith.constant 0 : index
    %382 = vector.load %arg25[%c0_177, %c0_178, %c0_179] : memref<2x1x32xf32, #tpu.memory_space<vmem>>, vector<1x1x32xf32>
    %383 = vector.shape_cast %382 : vector<1x1x32xf32> to vector<1x32xf32>
    %384 = vector.extract_strided_slice %377 {offsets = [0, 0], sizes = [32, 32], strides = [1, 1]} : vector<32x96xbf16> to vector<32x32xbf16>
    %385 = vector.extract_strided_slice %379 {offsets = [0, 0], sizes = [1, 32], strides = [1, 1]} : vector<1x96xf32> to vector<1x32xf32>
    %386 = arith.truncf %375 : vector<8x32xf32> to vector<8x32xbf16>
    %cst_180 = arith.constant dense<0.000000e+00> : vector<8x32xf32>
    %387 = tpu.matmul %386, %384, %cst_180 {dimension_numbers = #tpu.dot_dimension_numbers<[1], [0], [0], [1], [0, 0, 1, 1], [], []>} : vector<8x32xbf16>, vector<32x32xbf16>, vector<8x32xf32> -> vector<8x32xf32>
    %388 = vector.broadcast %385 : vector<1x32xf32> to vector<8x32xf32>
    %389 = arith.addf %387, %388 : vector<8x32xf32>
    %390 = vector.extract_strided_slice %377 {offsets = [0, 32], sizes = [32, 64], strides = [1, 1]} : vector<32x96xbf16> to vector<32x64xbf16>
    %391 = vector.extract_strided_slice %379 {offsets = [0, 32], sizes = [1, 64], strides = [1, 1]} : vector<1x96xf32> to vector<1x64xf32>
    %392 = arith.truncf %278 : vector<8x32xf32> to vector<8x32xbf16>
    %cst_181 = arith.constant dense<0.000000e+00> : vector<8x64xf32>
    %393 = tpu.matmul %392, %390, %cst_181 {dimension_numbers = #tpu.dot_dimension_numbers<[1], [0], [0], [1], [0, 0, 1, 1], [], []>} : vector<8x32xbf16>, vector<32x64xbf16>, vector<8x64xf32> -> vector<8x64xf32>
    %394 = vector.broadcast %391 : vector<1x64xf32> to vector<8x64xf32>
    %395 = arith.addf %393, %394 : vector<8x64xf32>
    %396 = vector.extract_strided_slice %395 {offsets = [0, 0], sizes = [8, 32], strides = [1, 1]} : vector<8x64xf32> to vector<8x32xf32>
    %397 = vector.extract_strided_slice %395 {offsets = [0, 32], sizes = [8, 32], strides = [1, 1]} : vector<8x64xf32> to vector<8x32xf32>
    %cst_182 = arith.constant 0.000000e+00 : f32
    %398 = vector.broadcast %cst_182 : f32 to vector<8x32xf32>
    %399 = vector.broadcast %383 : vector<1x32xf32> to vector<8x32xf32>
    %400 = arith.addf %398, %399 : vector<8x32xf32>
    %401 = vector.extract_strided_slice %389 {offsets = [0, 0], sizes = [8, 16], strides = [1, 1]} : vector<8x32xf32> to vector<8x16xf32>
    %402 = arith.truncf %401 : vector<8x16xf32> to vector<8x16xbf16>
    %403 = vector.extract_strided_slice %396 {offsets = [0, 0], sizes = [8, 16], strides = [1, 1]} : vector<8x32xf32> to vector<8x16xf32>
    %404 = arith.truncf %403 : vector<8x16xf32> to vector<8x16xbf16>
    %405 = vector.extract_strided_slice %397 {offsets = [0, 0], sizes = [8, 16], strides = [1, 1]} : vector<8x32xf32> to vector<8x16xf32>
    %406 = arith.truncf %405 : vector<8x16xf32> to vector<8x16xbf16>
    "tpu.trace_start"() <{level = 10 : i32, message = "sd,td->st"}> : () -> ()
    %cst_183 = arith.constant dense<0.000000e+00> : vector<8x8xf32>
    %407 = tpu.matmul %402, %404, %cst_183 {dimension_numbers = #tpu.dot_dimension_numbers<[1], [1], [0], [0], [0, 0, 1, 0], [], []>} : vector<8x16xbf16>, vector<8x16xbf16>, vector<8x8xf32> -> vector<8x8xf32>
    "tpu.trace_stop"() : () -> ()
    %cst_184 = arith.constant 2.500000e-01 : f32
    %408 = vector.broadcast %cst_184 : f32 to vector<8x8xf32>
    %409 = arith.mulf %407, %408 : vector<8x8xf32>
    %cst_185 = arith.constant dense<0xFF800000> : vector<8xf32>
    %410 = vector.multi_reduction <maximumf>, %409, %cst_185 [1] : vector<8x8xf32> to vector<8xf32>
    %411 = vector.shape_cast %410 : vector<8xf32> to vector<8x1xf32>
    %412 = vector.broadcast %411 : vector<8x1xf32> to vector<8x8xf32>
    %413 = arith.subf %409, %412 : vector<8x8xf32>
    %414 = math.exp %413 : vector<8x8xf32>
    %cst_186 = arith.constant dense<0.000000e+00> : vector<8xf32>
    %415 = vector.multi_reduction <add>, %414, %cst_186 [1] : vector<8x8xf32> to vector<8xf32>
    %416 = vector.shape_cast %415 : vector<8xf32> to vector<8x1xf32>
    %417 = vector.broadcast %416 : vector<8x1xf32> to vector<8x8xf32>
    %418 = arith.divf %414, %417 : vector<8x8xf32>
    %419 = arith.truncf %418 : vector<8x8xf32> to vector<8x8xbf16>
    %cst_187 = arith.constant dense<0.000000e+00> : vector<8x16xf32>
    %420 = tpu.matmul %419, %406, %cst_187 {dimension_numbers = #tpu.dot_dimension_numbers<[1], [0], [0], [1], [0, 0, 1, 1], [], []>} : vector<8x8xbf16>, vector<8x16xbf16>, vector<8x16xf32> -> vector<8x16xf32>
    %421 = arith.truncf %420 : vector<8x16xf32> to vector<8x16xbf16>
    %422 = vector.extract_strided_slice %381 {offsets = [0, 0], sizes = [16, 32], strides = [1, 1]} : vector<32x32xbf16> to vector<16x32xbf16>
    %cst_188 = arith.constant dense<0.000000e+00> : vector<8x32xf32>
    %423 = tpu.matmul %421, %422, %cst_188 {dimension_numbers = #tpu.dot_dimension_numbers<[1], [0], [0], [1], [0, 0, 1, 1], [], []>} : vector<8x16xbf16>, vector<16x32xbf16>, vector<8x32xf32> -> vector<8x32xf32>
    %424 = arith.addf %400, %423 : vector<8x32xf32>
    %425 = vector.extract_strided_slice %389 {offsets = [0, 16], sizes = [8, 16], strides = [1, 1]} : vector<8x32xf32> to vector<8x16xf32>
    %426 = arith.truncf %425 : vector<8x16xf32> to vector<8x16xbf16>
    %427 = vector.extract_strided_slice %396 {offsets = [0, 16], sizes = [8, 16], strides = [1, 1]} : vector<8x32xf32> to vector<8x16xf32>
    %428 = arith.truncf %427 : vector<8x16xf32> to vector<8x16xbf16>
    %429 = vector.extract_strided_slice %397 {offsets = [0, 16], sizes = [8, 16], strides = [1, 1]} : vector<8x32xf32> to vector<8x16xf32>
    %430 = arith.truncf %429 : vector<8x16xf32> to vector<8x16xbf16>
    "tpu.trace_start"() <{level = 10 : i32, message = "sd,td->st"}> : () -> ()
    %cst_189 = arith.constant dense<0.000000e+00> : vector<8x8xf32>
    %431 = tpu.matmul %426, %428, %cst_189 {dimension_numbers = #tpu.dot_dimension_numbers<[1], [1], [0], [0], [0, 0, 1, 0], [], []>} : vector<8x16xbf16>, vector<8x16xbf16>, vector<8x8xf32> -> vector<8x8xf32>
    "tpu.trace_stop"() : () -> ()
    %cst_190 = arith.constant 2.500000e-01 : f32
    %432 = vector.broadcast %cst_190 : f32 to vector<8x8xf32>
    %433 = arith.mulf %431, %432 : vector<8x8xf32>
    %cst_191 = arith.constant dense<0xFF800000> : vector<8xf32>
    %434 = vector.multi_reduction <maximumf>, %433, %cst_191 [1] : vector<8x8xf32> to vector<8xf32>
    %435 = vector.shape_cast %434 : vector<8xf32> to vector<8x1xf32>
    %436 = vector.broadcast %435 : vector<8x1xf32> to vector<8x8xf32>
    %437 = arith.subf %433, %436 : vector<8x8xf32>
    %438 = math.exp %437 : vector<8x8xf32>
    %cst_192 = arith.constant dense<0.000000e+00> : vector<8xf32>
    %439 = vector.multi_reduction <add>, %438, %cst_192 [1] : vector<8x8xf32> to vector<8xf32>
    %440 = vector.shape_cast %439 : vector<8xf32> to vector<8x1xf32>
    %441 = vector.broadcast %440 : vector<8x1xf32> to vector<8x8xf32>
    %442 = arith.divf %438, %441 : vector<8x8xf32>
    %443 = arith.truncf %442 : vector<8x8xf32> to vector<8x8xbf16>
    %cst_193 = arith.constant dense<0.000000e+00> : vector<8x16xf32>
    %444 = tpu.matmul %443, %430, %cst_193 {dimension_numbers = #tpu.dot_dimension_numbers<[1], [0], [0], [1], [0, 0, 1, 1], [], []>} : vector<8x8xbf16>, vector<8x16xbf16>, vector<8x16xf32> -> vector<8x16xf32>
    %445 = arith.truncf %444 : vector<8x16xf32> to vector<8x16xbf16>
    %446 = vector.extract_strided_slice %381 {offsets = [16, 0], sizes = [16, 32], strides = [1, 1]} : vector<32x32xbf16> to vector<16x32xbf16>
    %cst_194 = arith.constant dense<0.000000e+00> : vector<8x32xf32>
    %447 = tpu.matmul %445, %446, %cst_194 {dimension_numbers = #tpu.dot_dimension_numbers<[1], [0], [0], [1], [0, 0, 1, 1], [], []>} : vector<8x16xbf16>, vector<16x32xbf16>, vector<8x32xf32> -> vector<8x32xf32>
    %448 = arith.addf %424, %447 : vector<8x32xf32>
    %449 = arith.addf %375, %448 : vector<8x32xf32>
    %c0_195 = arith.constant 0 : index
    %c0_196 = arith.constant 0 : index
    %c0_197 = arith.constant 0 : index
    %450 = vector.load %arg26[%c0_195, %c0_196, %c0_197] : memref<2x1x32xf32, #tpu.memory_space<vmem>>, vector<1x1x32xf32>
    %451 = vector.shape_cast %450 : vector<1x1x32xf32> to vector<1x32xf32>
    %c0_198 = arith.constant 0 : index
    %c0_199 = arith.constant 0 : index
    %c0_200 = arith.constant 0 : index
    %452 = vector.load %arg27[%c0_198, %c0_199, %c0_200] : memref<2x1x32xf32, #tpu.memory_space<vmem>>, vector<1x1x32xf32>
    %453 = vector.shape_cast %452 : vector<1x1x32xf32> to vector<1x32xf32>
    %cst_201 = arith.constant dense<0.000000e+00> : vector<8xf32>
    %454 = vector.multi_reduction <add>, %449, %cst_201 [1] : vector<8x32xf32> to vector<8xf32>
    %455 = vector.shape_cast %454 : vector<8xf32> to vector<8x1xf32>
    %cst_202 = arith.constant 3.200000e+01 : f32
    %456 = vector.broadcast %cst_202 : f32 to vector<8x1xf32>
    %457 = arith.divf %455, %456 : vector<8x1xf32>
    %458 = vector.broadcast %457 : vector<8x1xf32> to vector<8x32xf32>
    %459 = arith.subf %449, %458 : vector<8x32xf32>
    %460 = arith.mulf %459, %459 : vector<8x32xf32>
    %cst_203 = arith.constant dense<0.000000e+00> : vector<8xf32>
    %461 = vector.multi_reduction <add>, %460, %cst_203 [1] : vector<8x32xf32> to vector<8xf32>
    %462 = vector.shape_cast %461 : vector<8xf32> to vector<8x1xf32>
    %cst_204 = arith.constant 3.200000e+01 : f32
    %463 = vector.broadcast %cst_204 : f32 to vector<8x1xf32>
    %464 = arith.divf %462, %463 : vector<8x1xf32>
    %465 = vector.broadcast %457 : vector<8x1xf32> to vector<8x32xf32>
    %466 = arith.subf %449, %465 : vector<8x32xf32>
    %cst_205 = arith.constant 9.99999974E-6 : f32
    %467 = vector.broadcast %cst_205 : f32 to vector<8x1xf32>
    %468 = arith.addf %464, %467 : vector<8x1xf32>
    %469 = math.rsqrt %468 : vector<8x1xf32>
    %470 = vector.broadcast %469 : vector<8x1xf32> to vector<8x32xf32>
    %471 = arith.mulf %466, %470 : vector<8x32xf32>
    %472 = vector.broadcast %451 : vector<1x32xf32> to vector<8x32xf32>
    %473 = arith.mulf %471, %472 : vector<8x32xf32>
    %474 = vector.broadcast %453 : vector<1x32xf32> to vector<8x32xf32>
    %475 = arith.addf %473, %474 : vector<8x32xf32>
    %c0_206 = arith.constant 0 : index
    %c0_207 = arith.constant 0 : index
    %c0_208 = arith.constant 0 : index
    %476 = vector.load %arg28[%c0_206, %c0_207, %c0_208] : memref<2x32x64xbf16, #tpu.memory_space<vmem>>, vector<1x32x64xbf16>
    %477 = vector.shape_cast %476 : vector<1x32x64xbf16> to vector<32x64xbf16>
    %c0_209 = arith.constant 0 : index
    %c0_210 = arith.constant 0 : index
    %c0_211 = arith.constant 0 : index
    %478 = vector.load %arg29[%c0_209, %c0_210, %c0_211] : memref<2x1x64xf32, #tpu.memory_space<vmem>>, vector<1x1x64xf32>
    %479 = vector.shape_cast %478 : vector<1x1x64xf32> to vector<1x64xf32>
    %480 = arith.truncf %475 : vector<8x32xf32> to vector<8x32xbf16>
    %cst_212 = arith.constant dense<0.000000e+00> : vector<8x64xf32>
    %481 = tpu.matmul %480, %477, %cst_212 {dimension_numbers = #tpu.dot_dimension_numbers<[1], [0], [0], [1], [0, 0, 1, 1], [], []>} : vector<8x32xbf16>, vector<32x64xbf16>, vector<8x64xf32> -> vector<8x64xf32>
    %482 = vector.broadcast %479 : vector<1x64xf32> to vector<8x64xf32>
    %483 = arith.addf %481, %482 : vector<8x64xf32>
    %cst_213 = arith.constant 0.000000e+00 : f32
    %484 = vector.broadcast %cst_213 : f32 to vector<8x64xf32>
    %485 = arith.maximumf %483, %484 : vector<8x64xf32>
    %c0_214 = arith.constant 0 : index
    %c0_215 = arith.constant 0 : index
    %c0_216 = arith.constant 0 : index
    %486 = vector.load %arg30[%c0_214, %c0_215, %c0_216] : memref<2x64x32xbf16, #tpu.memory_space<vmem>>, vector<1x64x32xbf16>
    %487 = vector.shape_cast %486 : vector<1x64x32xbf16> to vector<64x32xbf16>
    %c0_217 = arith.constant 0 : index
    %c0_218 = arith.constant 0 : index
    %c0_219 = arith.constant 0 : index
    %488 = vector.load %arg31[%c0_217, %c0_218, %c0_219] : memref<2x1x32xf32, #tpu.memory_space<vmem>>, vector<1x1x32xf32>
    %489 = vector.shape_cast %488 : vector<1x1x32xf32> to vector<1x32xf32>
    %490 = arith.truncf %485 : vector<8x64xf32> to vector<8x64xbf16>
    %cst_220 = arith.constant dense<0.000000e+00> : vector<8x32xf32>
    %491 = tpu.matmul %490, %487, %cst_220 {dimension_numbers = #tpu.dot_dimension_numbers<[1], [0], [0], [1], [0, 0, 1, 1], [], []>} : vector<8x64xbf16>, vector<64x32xbf16>, vector<8x32xf32> -> vector<8x32xf32>
    %492 = vector.broadcast %489 : vector<1x32xf32> to vector<8x32xf32>
    %493 = arith.addf %491, %492 : vector<8x32xf32>
    %494 = arith.addf %475, %493 : vector<8x32xf32>
    %c0_221 = arith.constant 0 : index
    %c0_222 = arith.constant 0 : index
    %c0_223 = arith.constant 0 : index
    %495 = vector.load %arg32[%c0_221, %c0_222, %c0_223] : memref<2x1x32xf32, #tpu.memory_space<vmem>>, vector<1x1x32xf32>
    %496 = vector.shape_cast %495 : vector<1x1x32xf32> to vector<1x32xf32>
    %c0_224 = arith.constant 0 : index
    %c0_225 = arith.constant 0 : index
    %c0_226 = arith.constant 0 : index
    %497 = vector.load %arg33[%c0_224, %c0_225, %c0_226] : memref<2x1x32xf32, #tpu.memory_space<vmem>>, vector<1x1x32xf32>
    %498 = vector.shape_cast %497 : vector<1x1x32xf32> to vector<1x32xf32>
    %cst_227 = arith.constant dense<0.000000e+00> : vector<8xf32>
    %499 = vector.multi_reduction <add>, %494, %cst_227 [1] : vector<8x32xf32> to vector<8xf32>
    %500 = vector.shape_cast %499 : vector<8xf32> to vector<8x1xf32>
    %cst_228 = arith.constant 3.200000e+01 : f32
    %501 = vector.broadcast %cst_228 : f32 to vector<8x1xf32>
    %502 = arith.divf %500, %501 : vector<8x1xf32>
    %503 = vector.broadcast %502 : vector<8x1xf32> to vector<8x32xf32>
    %504 = arith.subf %494, %503 : vector<8x32xf32>
    %505 = arith.mulf %504, %504 : vector<8x32xf32>
    %cst_229 = arith.constant dense<0.000000e+00> : vector<8xf32>
    %506 = vector.multi_reduction <add>, %505, %cst_229 [1] : vector<8x32xf32> to vector<8xf32>
    %507 = vector.shape_cast %506 : vector<8xf32> to vector<8x1xf32>
    %cst_230 = arith.constant 3.200000e+01 : f32
    %508 = vector.broadcast %cst_230 : f32 to vector<8x1xf32>
    %509 = arith.divf %507, %508 : vector<8x1xf32>
    %510 = vector.broadcast %502 : vector<8x1xf32> to vector<8x32xf32>
    %511 = arith.subf %494, %510 : vector<8x32xf32>
    %cst_231 = arith.constant 9.99999974E-6 : f32
    %512 = vector.broadcast %cst_231 : f32 to vector<8x1xf32>
    %513 = arith.addf %509, %512 : vector<8x1xf32>
    %514 = math.rsqrt %513 : vector<8x1xf32>
    %515 = vector.broadcast %514 : vector<8x1xf32> to vector<8x32xf32>
    %516 = arith.mulf %511, %515 : vector<8x32xf32>
    %517 = vector.broadcast %496 : vector<1x32xf32> to vector<8x32xf32>
    %518 = arith.mulf %516, %517 : vector<8x32xf32>
    %519 = vector.broadcast %498 : vector<1x32xf32> to vector<8x32xf32>
    %520 = arith.addf %518, %519 : vector<8x32xf32>
    %c1_232 = arith.constant 1 : index
    %c0_233 = arith.constant 0 : index
    %c0_234 = arith.constant 0 : index
    %521 = vector.load %arg16[%c1_232, %c0_233, %c0_234] : memref<2x32x96xbf16, #tpu.memory_space<vmem>>, vector<1x32x96xbf16>
    %522 = vector.shape_cast %521 : vector<1x32x96xbf16> to vector<32x96xbf16>
    %c1_235 = arith.constant 1 : index
    %c0_236 = arith.constant 0 : index
    %c0_237 = arith.constant 0 : index
    %523 = vector.load %arg17[%c1_235, %c0_236, %c0_237] : memref<2x1x96xf32, #tpu.memory_space<vmem>>, vector<1x1x96xf32>
    %524 = vector.shape_cast %523 : vector<1x1x96xf32> to vector<1x96xf32>
    %c1_238 = arith.constant 1 : index
    %c0_239 = arith.constant 0 : index
    %c0_240 = arith.constant 0 : index
    %525 = vector.load %arg18[%c1_238, %c0_239, %c0_240] : memref<2x32x32xbf16, #tpu.memory_space<vmem>>, vector<1x32x32xbf16>
    %526 = vector.shape_cast %525 : vector<1x32x32xbf16> to vector<32x32xbf16>
    %c1_241 = arith.constant 1 : index
    %c0_242 = arith.constant 0 : index
    %c0_243 = arith.constant 0 : index
    %527 = vector.load %arg19[%c1_241, %c0_242, %c0_243] : memref<2x1x32xf32, #tpu.memory_space<vmem>>, vector<1x1x32xf32>
    %528 = vector.shape_cast %527 : vector<1x1x32xf32> to vector<1x32xf32>
    %529 = arith.truncf %520 : vector<8x32xf32> to vector<8x32xbf16>
    %cst_244 = arith.constant dense<0.000000e+00> : vector<8x96xf32>
    %530 = tpu.matmul %529, %522, %cst_244 {dimension_numbers = #tpu.dot_dimension_numbers<[1], [0], [0], [1], [0, 0, 1, 1], [], []>} : vector<8x32xbf16>, vector<32x96xbf16>, vector<8x96xf32> -> vector<8x96xf32>
    %531 = vector.broadcast %524 : vector<1x96xf32> to vector<8x96xf32>
    %532 = arith.addf %530, %531 : vector<8x96xf32>
    %533 = vector.extract_strided_slice %532 {offsets = [0, 0], sizes = [8, 32], strides = [1, 1]} : vector<8x96xf32> to vector<8x32xf32>
    %534 = vector.extract_strided_slice %532 {offsets = [0, 32], sizes = [8, 32], strides = [1, 1]} : vector<8x96xf32> to vector<8x32xf32>
    %535 = vector.extract_strided_slice %532 {offsets = [0, 64], sizes = [8, 32], strides = [1, 1]} : vector<8x96xf32> to vector<8x32xf32>
    %cst_245 = arith.constant 0.000000e+00 : f32
    %536 = vector.broadcast %cst_245 : f32 to vector<8x32xf32>
    %537 = vector.broadcast %528 : vector<1x32xf32> to vector<8x32xf32>
    %538 = arith.addf %536, %537 : vector<8x32xf32>
    %539 = vector.extract_strided_slice %533 {offsets = [0, 0], sizes = [8, 16], strides = [1, 1]} : vector<8x32xf32> to vector<8x16xf32>
    %540 = arith.truncf %539 : vector<8x16xf32> to vector<8x16xbf16>
    %541 = vector.extract_strided_slice %534 {offsets = [0, 0], sizes = [8, 16], strides = [1, 1]} : vector<8x32xf32> to vector<8x16xf32>
    %542 = arith.truncf %541 : vector<8x16xf32> to vector<8x16xbf16>
    %543 = vector.extract_strided_slice %535 {offsets = [0, 0], sizes = [8, 16], strides = [1, 1]} : vector<8x32xf32> to vector<8x16xf32>
    %544 = arith.truncf %543 : vector<8x16xf32> to vector<8x16xbf16>
    "tpu.trace_start"() <{level = 10 : i32, message = "sd,td->st"}> : () -> ()
    %cst_246 = arith.constant dense<0.000000e+00> : vector<8x8xf32>
    %545 = tpu.matmul %540, %542, %cst_246 {dimension_numbers = #tpu.dot_dimension_numbers<[1], [1], [0], [0], [0, 0, 1, 0], [], []>} : vector<8x16xbf16>, vector<8x16xbf16>, vector<8x8xf32> -> vector<8x8xf32>
    "tpu.trace_stop"() : () -> ()
    %cst_247 = arith.constant 2.500000e-01 : f32
    %546 = vector.broadcast %cst_247 : f32 to vector<8x8xf32>
    %547 = arith.mulf %545, %546 : vector<8x8xf32>
    %548 = arith.addf %547, %0 : vector<8x8xf32>
    %cst_248 = arith.constant dense<0xFF800000> : vector<8xf32>
    %549 = vector.multi_reduction <maximumf>, %548, %cst_248 [1] : vector<8x8xf32> to vector<8xf32>
    %550 = vector.shape_cast %549 : vector<8xf32> to vector<8x1xf32>
    %551 = vector.broadcast %550 : vector<8x1xf32> to vector<8x8xf32>
    %552 = arith.subf %548, %551 : vector<8x8xf32>
    %553 = math.exp %552 : vector<8x8xf32>
    %cst_249 = arith.constant dense<0.000000e+00> : vector<8xf32>
    %554 = vector.multi_reduction <add>, %553, %cst_249 [1] : vector<8x8xf32> to vector<8xf32>
    %555 = vector.shape_cast %554 : vector<8xf32> to vector<8x1xf32>
    %556 = vector.broadcast %555 : vector<8x1xf32> to vector<8x8xf32>
    %557 = arith.divf %553, %556 : vector<8x8xf32>
    %558 = arith.truncf %557 : vector<8x8xf32> to vector<8x8xbf16>
    %cst_250 = arith.constant dense<0.000000e+00> : vector<8x16xf32>
    %559 = tpu.matmul %558, %544, %cst_250 {dimension_numbers = #tpu.dot_dimension_numbers<[1], [0], [0], [1], [0, 0, 1, 1], [], []>} : vector<8x8xbf16>, vector<8x16xbf16>, vector<8x16xf32> -> vector<8x16xf32>
    %560 = arith.truncf %559 : vector<8x16xf32> to vector<8x16xbf16>
    %561 = vector.extract_strided_slice %526 {offsets = [0, 0], sizes = [16, 32], strides = [1, 1]} : vector<32x32xbf16> to vector<16x32xbf16>
    %cst_251 = arith.constant dense<0.000000e+00> : vector<8x32xf32>
    %562 = tpu.matmul %560, %561, %cst_251 {dimension_numbers = #tpu.dot_dimension_numbers<[1], [0], [0], [1], [0, 0, 1, 1], [], []>} : vector<8x16xbf16>, vector<16x32xbf16>, vector<8x32xf32> -> vector<8x32xf32>
    %563 = arith.addf %538, %562 : vector<8x32xf32>
    %564 = vector.extract_strided_slice %533 {offsets = [0, 16], sizes = [8, 16], strides = [1, 1]} : vector<8x32xf32> to vector<8x16xf32>
    %565 = arith.truncf %564 : vector<8x16xf32> to vector<8x16xbf16>
    %566 = vector.extract_strided_slice %534 {offsets = [0, 16], sizes = [8, 16], strides = [1, 1]} : vector<8x32xf32> to vector<8x16xf32>
    %567 = arith.truncf %566 : vector<8x16xf32> to vector<8x16xbf16>
    %568 = vector.extract_strided_slice %535 {offsets = [0, 16], sizes = [8, 16], strides = [1, 1]} : vector<8x32xf32> to vector<8x16xf32>
    %569 = arith.truncf %568 : vector<8x16xf32> to vector<8x16xbf16>
    "tpu.trace_start"() <{level = 10 : i32, message = "sd,td->st"}> : () -> ()
    %cst_252 = arith.constant dense<0.000000e+00> : vector<8x8xf32>
    %570 = tpu.matmul %565, %567, %cst_252 {dimension_numbers = #tpu.dot_dimension_numbers<[1], [1], [0], [0], [0, 0, 1, 0], [], []>} : vector<8x16xbf16>, vector<8x16xbf16>, vector<8x8xf32> -> vector<8x8xf32>
    "tpu.trace_stop"() : () -> ()
    %cst_253 = arith.constant 2.500000e-01 : f32
    %571 = vector.broadcast %cst_253 : f32 to vector<8x8xf32>
    %572 = arith.mulf %570, %571 : vector<8x8xf32>
    %573 = arith.addf %572, %0 : vector<8x8xf32>
    %cst_254 = arith.constant dense<0xFF800000> : vector<8xf32>
    %574 = vector.multi_reduction <maximumf>, %573, %cst_254 [1] : vector<8x8xf32> to vector<8xf32>
    %575 = vector.shape_cast %574 : vector<8xf32> to vector<8x1xf32>
    %576 = vector.broadcast %575 : vector<8x1xf32> to vector<8x8xf32>
    %577 = arith.subf %573, %576 : vector<8x8xf32>
    %578 = math.exp %577 : vector<8x8xf32>
    %cst_255 = arith.constant dense<0.000000e+00> : vector<8xf32>
    %579 = vector.multi_reduction <add>, %578, %cst_255 [1] : vector<8x8xf32> to vector<8xf32>
    %580 = vector.shape_cast %579 : vector<8xf32> to vector<8x1xf32>
    %581 = vector.broadcast %580 : vector<8x1xf32> to vector<8x8xf32>
    %582 = arith.divf %578, %581 : vector<8x8xf32>
    %583 = arith.truncf %582 : vector<8x8xf32> to vector<8x8xbf16>
    %cst_256 = arith.constant dense<0.000000e+00> : vector<8x16xf32>
    %584 = tpu.matmul %583, %569, %cst_256 {dimension_numbers = #tpu.dot_dimension_numbers<[1], [0], [0], [1], [0, 0, 1, 1], [], []>} : vector<8x8xbf16>, vector<8x16xbf16>, vector<8x16xf32> -> vector<8x16xf32>
    %585 = arith.truncf %584 : vector<8x16xf32> to vector<8x16xbf16>
    %586 = vector.extract_strided_slice %526 {offsets = [16, 0], sizes = [16, 32], strides = [1, 1]} : vector<32x32xbf16> to vector<16x32xbf16>
    %cst_257 = arith.constant dense<0.000000e+00> : vector<8x32xf32>
    %587 = tpu.matmul %585, %586, %cst_257 {dimension_numbers = #tpu.dot_dimension_numbers<[1], [0], [0], [1], [0, 0, 1, 1], [], []>} : vector<8x16xbf16>, vector<16x32xbf16>, vector<8x32xf32> -> vector<8x32xf32>
    %588 = arith.addf %563, %587 : vector<8x32xf32>
    %589 = arith.addf %520, %588 : vector<8x32xf32>
    %c1_258 = arith.constant 1 : index
    %c0_259 = arith.constant 0 : index
    %c0_260 = arith.constant 0 : index
    %590 = vector.load %arg20[%c1_258, %c0_259, %c0_260] : memref<2x1x32xf32, #tpu.memory_space<vmem>>, vector<1x1x32xf32>
    %591 = vector.shape_cast %590 : vector<1x1x32xf32> to vector<1x32xf32>
    %c1_261 = arith.constant 1 : index
    %c0_262 = arith.constant 0 : index
    %c0_263 = arith.constant 0 : index
    %592 = vector.load %arg21[%c1_261, %c0_262, %c0_263] : memref<2x1x32xf32, #tpu.memory_space<vmem>>, vector<1x1x32xf32>
    %593 = vector.shape_cast %592 : vector<1x1x32xf32> to vector<1x32xf32>
    %cst_264 = arith.constant dense<0.000000e+00> : vector<8xf32>
    %594 = vector.multi_reduction <add>, %589, %cst_264 [1] : vector<8x32xf32> to vector<8xf32>
    %595 = vector.shape_cast %594 : vector<8xf32> to vector<8x1xf32>
    %cst_265 = arith.constant 3.200000e+01 : f32
    %596 = vector.broadcast %cst_265 : f32 to vector<8x1xf32>
    %597 = arith.divf %595, %596 : vector<8x1xf32>
    %598 = vector.broadcast %597 : vector<8x1xf32> to vector<8x32xf32>
    %599 = arith.subf %589, %598 : vector<8x32xf32>
    %600 = arith.mulf %599, %599 : vector<8x32xf32>
    %cst_266 = arith.constant dense<0.000000e+00> : vector<8xf32>
    %601 = vector.multi_reduction <add>, %600, %cst_266 [1] : vector<8x32xf32> to vector<8xf32>
    %602 = vector.shape_cast %601 : vector<8xf32> to vector<8x1xf32>
    %cst_267 = arith.constant 3.200000e+01 : f32
    %603 = vector.broadcast %cst_267 : f32 to vector<8x1xf32>
    %604 = arith.divf %602, %603 : vector<8x1xf32>
    %605 = vector.broadcast %597 : vector<8x1xf32> to vector<8x32xf32>
    %606 = arith.subf %589, %605 : vector<8x32xf32>
    %cst_268 = arith.constant 9.99999974E-6 : f32
    %607 = vector.broadcast %cst_268 : f32 to vector<8x1xf32>
    %608 = arith.addf %604, %607 : vector<8x1xf32>
    %609 = math.rsqrt %608 : vector<8x1xf32>
    %610 = vector.broadcast %609 : vector<8x1xf32> to vector<8x32xf32>
    %611 = arith.mulf %606, %610 : vector<8x32xf32>
    %612 = vector.broadcast %591 : vector<1x32xf32> to vector<8x32xf32>
    %613 = arith.mulf %611, %612 : vector<8x32xf32>
    %614 = vector.broadcast %593 : vector<1x32xf32> to vector<8x32xf32>
    %615 = arith.addf %613, %614 : vector<8x32xf32>
    %c1_269 = arith.constant 1 : index
    %c0_270 = arith.constant 0 : index
    %c0_271 = arith.constant 0 : index
    %616 = vector.load %arg22[%c1_269, %c0_270, %c0_271] : memref<2x32x96xbf16, #tpu.memory_space<vmem>>, vector<1x32x96xbf16>
    %617 = vector.shape_cast %616 : vector<1x32x96xbf16> to vector<32x96xbf16>
    %c1_272 = arith.constant 1 : index
    %c0_273 = arith.constant 0 : index
    %c0_274 = arith.constant 0 : index
    %618 = vector.load %arg23[%c1_272, %c0_273, %c0_274] : memref<2x1x96xf32, #tpu.memory_space<vmem>>, vector<1x1x96xf32>
    %619 = vector.shape_cast %618 : vector<1x1x96xf32> to vector<1x96xf32>
    %c1_275 = arith.constant 1 : index
    %c0_276 = arith.constant 0 : index
    %c0_277 = arith.constant 0 : index
    %620 = vector.load %arg24[%c1_275, %c0_276, %c0_277] : memref<2x32x32xbf16, #tpu.memory_space<vmem>>, vector<1x32x32xbf16>
    %621 = vector.shape_cast %620 : vector<1x32x32xbf16> to vector<32x32xbf16>
    %c1_278 = arith.constant 1 : index
    %c0_279 = arith.constant 0 : index
    %c0_280 = arith.constant 0 : index
    %622 = vector.load %arg25[%c1_278, %c0_279, %c0_280] : memref<2x1x32xf32, #tpu.memory_space<vmem>>, vector<1x1x32xf32>
    %623 = vector.shape_cast %622 : vector<1x1x32xf32> to vector<1x32xf32>
    %624 = vector.extract_strided_slice %617 {offsets = [0, 0], sizes = [32, 32], strides = [1, 1]} : vector<32x96xbf16> to vector<32x32xbf16>
    %625 = vector.extract_strided_slice %619 {offsets = [0, 0], sizes = [1, 32], strides = [1, 1]} : vector<1x96xf32> to vector<1x32xf32>
    %626 = arith.truncf %615 : vector<8x32xf32> to vector<8x32xbf16>
    %cst_281 = arith.constant dense<0.000000e+00> : vector<8x32xf32>
    %627 = tpu.matmul %626, %624, %cst_281 {dimension_numbers = #tpu.dot_dimension_numbers<[1], [0], [0], [1], [0, 0, 1, 1], [], []>} : vector<8x32xbf16>, vector<32x32xbf16>, vector<8x32xf32> -> vector<8x32xf32>
    %628 = vector.broadcast %625 : vector<1x32xf32> to vector<8x32xf32>
    %629 = arith.addf %627, %628 : vector<8x32xf32>
    %630 = vector.extract_strided_slice %617 {offsets = [0, 32], sizes = [32, 64], strides = [1, 1]} : vector<32x96xbf16> to vector<32x64xbf16>
    %631 = vector.extract_strided_slice %619 {offsets = [0, 32], sizes = [1, 64], strides = [1, 1]} : vector<1x96xf32> to vector<1x64xf32>
    %632 = arith.truncf %278 : vector<8x32xf32> to vector<8x32xbf16>
    %cst_282 = arith.constant dense<0.000000e+00> : vector<8x64xf32>
    %633 = tpu.matmul %632, %630, %cst_282 {dimension_numbers = #tpu.dot_dimension_numbers<[1], [0], [0], [1], [0, 0, 1, 1], [], []>} : vector<8x32xbf16>, vector<32x64xbf16>, vector<8x64xf32> -> vector<8x64xf32>
    %634 = vector.broadcast %631 : vector<1x64xf32> to vector<8x64xf32>
    %635 = arith.addf %633, %634 : vector<8x64xf32>
    %636 = vector.extract_strided_slice %635 {offsets = [0, 0], sizes = [8, 32], strides = [1, 1]} : vector<8x64xf32> to vector<8x32xf32>
    %637 = vector.extract_strided_slice %635 {offsets = [0, 32], sizes = [8, 32], strides = [1, 1]} : vector<8x64xf32> to vector<8x32xf32>
    %cst_283 = arith.constant 0.000000e+00 : f32
    %638 = vector.broadcast %cst_283 : f32 to vector<8x32xf32>
    %639 = vector.broadcast %623 : vector<1x32xf32> to vector<8x32xf32>
    %640 = arith.addf %638, %639 : vector<8x32xf32>
    %641 = vector.extract_strided_slice %629 {offsets = [0, 0], sizes = [8, 16], strides = [1, 1]} : vector<8x32xf32> to vector<8x16xf32>
    %642 = arith.truncf %641 : vector<8x16xf32> to vector<8x16xbf16>
    %643 = vector.extract_strided_slice %636 {offsets = [0, 0], sizes = [8, 16], strides = [1, 1]} : vector<8x32xf32> to vector<8x16xf32>
    %644 = arith.truncf %643 : vector<8x16xf32> to vector<8x16xbf16>
    %645 = vector.extract_strided_slice %637 {offsets = [0, 0], sizes = [8, 16], strides = [1, 1]} : vector<8x32xf32> to vector<8x16xf32>
    %646 = arith.truncf %645 : vector<8x16xf32> to vector<8x16xbf16>
    "tpu.trace_start"() <{level = 10 : i32, message = "sd,td->st"}> : () -> ()
    %cst_284 = arith.constant dense<0.000000e+00> : vector<8x8xf32>
    %647 = tpu.matmul %642, %644, %cst_284 {dimension_numbers = #tpu.dot_dimension_numbers<[1], [1], [0], [0], [0, 0, 1, 0], [], []>} : vector<8x16xbf16>, vector<8x16xbf16>, vector<8x8xf32> -> vector<8x8xf32>
    "tpu.trace_stop"() : () -> ()
    %cst_285 = arith.constant 2.500000e-01 : f32
    %648 = vector.broadcast %cst_285 : f32 to vector<8x8xf32>
    %649 = arith.mulf %647, %648 : vector<8x8xf32>
    %cst_286 = arith.constant dense<0xFF800000> : vector<8xf32>
    %650 = vector.multi_reduction <maximumf>, %649, %cst_286 [1] : vector<8x8xf32> to vector<8xf32>
    %651 = vector.shape_cast %650 : vector<8xf32> to vector<8x1xf32>
    %652 = vector.broadcast %651 : vector<8x1xf32> to vector<8x8xf32>
    %653 = arith.subf %649, %652 : vector<8x8xf32>
    %654 = math.exp %653 : vector<8x8xf32>
    %cst_287 = arith.constant dense<0.000000e+00> : vector<8xf32>
    %655 = vector.multi_reduction <add>, %654, %cst_287 [1] : vector<8x8xf32> to vector<8xf32>
    %656 = vector.shape_cast %655 : vector<8xf32> to vector<8x1xf32>
    %657 = vector.broadcast %656 : vector<8x1xf32> to vector<8x8xf32>
    %658 = arith.divf %654, %657 : vector<8x8xf32>
    %659 = arith.truncf %658 : vector<8x8xf32> to vector<8x8xbf16>
    %cst_288 = arith.constant dense<0.000000e+00> : vector<8x16xf32>
    %660 = tpu.matmul %659, %646, %cst_288 {dimension_numbers = #tpu.dot_dimension_numbers<[1], [0], [0], [1], [0, 0, 1, 1], [], []>} : vector<8x8xbf16>, vector<8x16xbf16>, vector<8x16xf32> -> vector<8x16xf32>
    %661 = arith.truncf %660 : vector<8x16xf32> to vector<8x16xbf16>
    %662 = vector.extract_strided_slice %621 {offsets = [0, 0], sizes = [16, 32], strides = [1, 1]} : vector<32x32xbf16> to vector<16x32xbf16>
    %cst_289 = arith.constant dense<0.000000e+00> : vector<8x32xf32>
    %663 = tpu.matmul %661, %662, %cst_289 {dimension_numbers = #tpu.dot_dimension_numbers<[1], [0], [0], [1], [0, 0, 1, 1], [], []>} : vector<8x16xbf16>, vector<16x32xbf16>, vector<8x32xf32> -> vector<8x32xf32>
    %664 = arith.addf %640, %663 : vector<8x32xf32>
    %665 = vector.extract_strided_slice %629 {offsets = [0, 16], sizes = [8, 16], strides = [1, 1]} : vector<8x32xf32> to vector<8x16xf32>
    %666 = arith.truncf %665 : vector<8x16xf32> to vector<8x16xbf16>
    %667 = vector.extract_strided_slice %636 {offsets = [0, 16], sizes = [8, 16], strides = [1, 1]} : vector<8x32xf32> to vector<8x16xf32>
    %668 = arith.truncf %667 : vector<8x16xf32> to vector<8x16xbf16>
    %669 = vector.extract_strided_slice %637 {offsets = [0, 16], sizes = [8, 16], strides = [1, 1]} : vector<8x32xf32> to vector<8x16xf32>
    %670 = arith.truncf %669 : vector<8x16xf32> to vector<8x16xbf16>
    "tpu.trace_start"() <{level = 10 : i32, message = "sd,td->st"}> : () -> ()
    %cst_290 = arith.constant dense<0.000000e+00> : vector<8x8xf32>
    %671 = tpu.matmul %666, %668, %cst_290 {dimension_numbers = #tpu.dot_dimension_numbers<[1], [1], [0], [0], [0, 0, 1, 0], [], []>} : vector<8x16xbf16>, vector<8x16xbf16>, vector<8x8xf32> -> vector<8x8xf32>
    "tpu.trace_stop"() : () -> ()
    %cst_291 = arith.constant 2.500000e-01 : f32
    %672 = vector.broadcast %cst_291 : f32 to vector<8x8xf32>
    %673 = arith.mulf %671, %672 : vector<8x8xf32>
    %cst_292 = arith.constant dense<0xFF800000> : vector<8xf32>
    %674 = vector.multi_reduction <maximumf>, %673, %cst_292 [1] : vector<8x8xf32> to vector<8xf32>
    %675 = vector.shape_cast %674 : vector<8xf32> to vector<8x1xf32>
    %676 = vector.broadcast %675 : vector<8x1xf32> to vector<8x8xf32>
    %677 = arith.subf %673, %676 : vector<8x8xf32>
    %678 = math.exp %677 : vector<8x8xf32>
    %cst_293 = arith.constant dense<0.000000e+00> : vector<8xf32>
    %679 = vector.multi_reduction <add>, %678, %cst_293 [1] : vector<8x8xf32> to vector<8xf32>
    %680 = vector.shape_cast %679 : vector<8xf32> to vector<8x1xf32>
    %681 = vector.broadcast %680 : vector<8x1xf32> to vector<8x8xf32>
    %682 = arith.divf %678, %681 : vector<8x8xf32>
    %683 = arith.truncf %682 : vector<8x8xf32> to vector<8x8xbf16>
    %cst_294 = arith.constant dense<0.000000e+00> : vector<8x16xf32>
    %684 = tpu.matmul %683, %670, %cst_294 {dimension_numbers = #tpu.dot_dimension_numbers<[1], [0], [0], [1], [0, 0, 1, 1], [], []>} : vector<8x8xbf16>, vector<8x16xbf16>, vector<8x16xf32> -> vector<8x16xf32>
    %685 = arith.truncf %684 : vector<8x16xf32> to vector<8x16xbf16>
    %686 = vector.extract_strided_slice %621 {offsets = [16, 0], sizes = [16, 32], strides = [1, 1]} : vector<32x32xbf16> to vector<16x32xbf16>
    %cst_295 = arith.constant dense<0.000000e+00> : vector<8x32xf32>
    %687 = tpu.matmul %685, %686, %cst_295 {dimension_numbers = #tpu.dot_dimension_numbers<[1], [0], [0], [1], [0, 0, 1, 1], [], []>} : vector<8x16xbf16>, vector<16x32xbf16>, vector<8x32xf32> -> vector<8x32xf32>
    %688 = arith.addf %664, %687 : vector<8x32xf32>
    %689 = arith.addf %615, %688 : vector<8x32xf32>
    %c1_296 = arith.constant 1 : index
    %c0_297 = arith.constant 0 : index
    %c0_298 = arith.constant 0 : index
    %690 = vector.load %arg26[%c1_296, %c0_297, %c0_298] : memref<2x1x32xf32, #tpu.memory_space<vmem>>, vector<1x1x32xf32>
    %691 = vector.shape_cast %690 : vector<1x1x32xf32> to vector<1x32xf32>
    %c1_299 = arith.constant 1 : index
    %c0_300 = arith.constant 0 : index
    %c0_301 = arith.constant 0 : index
    %692 = vector.load %arg27[%c1_299, %c0_300, %c0_301] : memref<2x1x32xf32, #tpu.memory_space<vmem>>, vector<1x1x32xf32>
    %693 = vector.shape_cast %692 : vector<1x1x32xf32> to vector<1x32xf32>
    %cst_302 = arith.constant dense<0.000000e+00> : vector<8xf32>
    %694 = vector.multi_reduction <add>, %689, %cst_302 [1] : vector<8x32xf32> to vector<8xf32>
    %695 = vector.shape_cast %694 : vector<8xf32> to vector<8x1xf32>
    %cst_303 = arith.constant 3.200000e+01 : f32
    %696 = vector.broadcast %cst_303 : f32 to vector<8x1xf32>
    %697 = arith.divf %695, %696 : vector<8x1xf32>
    %698 = vector.broadcast %697 : vector<8x1xf32> to vector<8x32xf32>
    %699 = arith.subf %689, %698 : vector<8x32xf32>
    %700 = arith.mulf %699, %699 : vector<8x32xf32>
    %cst_304 = arith.constant dense<0.000000e+00> : vector<8xf32>
    %701 = vector.multi_reduction <add>, %700, %cst_304 [1] : vector<8x32xf32> to vector<8xf32>
    %702 = vector.shape_cast %701 : vector<8xf32> to vector<8x1xf32>
    %cst_305 = arith.constant 3.200000e+01 : f32
    %703 = vector.broadcast %cst_305 : f32 to vector<8x1xf32>
    %704 = arith.divf %702, %703 : vector<8x1xf32>
    %705 = vector.broadcast %697 : vector<8x1xf32> to vector<8x32xf32>
    %706 = arith.subf %689, %705 : vector<8x32xf32>
    %cst_306 = arith.constant 9.99999974E-6 : f32
    %707 = vector.broadcast %cst_306 : f32 to vector<8x1xf32>
    %708 = arith.addf %704, %707 : vector<8x1xf32>
    %709 = math.rsqrt %708 : vector<8x1xf32>
    %710 = vector.broadcast %709 : vector<8x1xf32> to vector<8x32xf32>
    %711 = arith.mulf %706, %710 : vector<8x32xf32>
    %712 = vector.broadcast %691 : vector<1x32xf32> to vector<8x32xf32>
    %713 = arith.mulf %711, %712 : vector<8x32xf32>
    %714 = vector.broadcast %693 : vector<1x32xf32> to vector<8x32xf32>
    %715 = arith.addf %713, %714 : vector<8x32xf32>
    %c1_307 = arith.constant 1 : index
    %c0_308 = arith.constant 0 : index
    %c0_309 = arith.constant 0 : index
    %716 = vector.load %arg28[%c1_307, %c0_308, %c0_309] : memref<2x32x64xbf16, #tpu.memory_space<vmem>>, vector<1x32x64xbf16>
    %717 = vector.shape_cast %716 : vector<1x32x64xbf16> to vector<32x64xbf16>
    %c1_310 = arith.constant 1 : index
    %c0_311 = arith.constant 0 : index
    %c0_312 = arith.constant 0 : index
    %718 = vector.load %arg29[%c1_310, %c0_311, %c0_312] : memref<2x1x64xf32, #tpu.memory_space<vmem>>, vector<1x1x64xf32>
    %719 = vector.shape_cast %718 : vector<1x1x64xf32> to vector<1x64xf32>
    %720 = arith.truncf %715 : vector<8x32xf32> to vector<8x32xbf16>
    %cst_313 = arith.constant dense<0.000000e+00> : vector<8x64xf32>
    %721 = tpu.matmul %720, %717, %cst_313 {dimension_numbers = #tpu.dot_dimension_numbers<[1], [0], [0], [1], [0, 0, 1, 1], [], []>} : vector<8x32xbf16>, vector<32x64xbf16>, vector<8x64xf32> -> vector<8x64xf32>
    %722 = vector.broadcast %719 : vector<1x64xf32> to vector<8x64xf32>
    %723 = arith.addf %721, %722 : vector<8x64xf32>
    %cst_314 = arith.constant 0.000000e+00 : f32
    %724 = vector.broadcast %cst_314 : f32 to vector<8x64xf32>
    %725 = arith.maximumf %723, %724 : vector<8x64xf32>
    %c1_315 = arith.constant 1 : index
    %c0_316 = arith.constant 0 : index
    %c0_317 = arith.constant 0 : index
    %726 = vector.load %arg30[%c1_315, %c0_316, %c0_317] : memref<2x64x32xbf16, #tpu.memory_space<vmem>>, vector<1x64x32xbf16>
    %727 = vector.shape_cast %726 : vector<1x64x32xbf16> to vector<64x32xbf16>
    %c1_318 = arith.constant 1 : index
    %c0_319 = arith.constant 0 : index
    %c0_320 = arith.constant 0 : index
    %728 = vector.load %arg31[%c1_318, %c0_319, %c0_320] : memref<2x1x32xf32, #tpu.memory_space<vmem>>, vector<1x1x32xf32>
    %729 = vector.shape_cast %728 : vector<1x1x32xf32> to vector<1x32xf32>
    %730 = arith.truncf %725 : vector<8x64xf32> to vector<8x64xbf16>
    %cst_321 = arith.constant dense<0.000000e+00> : vector<8x32xf32>
    %731 = tpu.matmul %730, %727, %cst_321 {dimension_numbers = #tpu.dot_dimension_numbers<[1], [0], [0], [1], [0, 0, 1, 1], [], []>} : vector<8x64xbf16>, vector<64x32xbf16>, vector<8x32xf32> -> vector<8x32xf32>
    %732 = vector.broadcast %729 : vector<1x32xf32> to vector<8x32xf32>
    %733 = arith.addf %731, %732 : vector<8x32xf32>
    %734 = arith.addf %715, %733 : vector<8x32xf32>
    %c1_322 = arith.constant 1 : index
    %c0_323 = arith.constant 0 : index
    %c0_324 = arith.constant 0 : index
    %735 = vector.load %arg32[%c1_322, %c0_323, %c0_324] : memref<2x1x32xf32, #tpu.memory_space<vmem>>, vector<1x1x32xf32>
    %736 = vector.shape_cast %735 : vector<1x1x32xf32> to vector<1x32xf32>
    %c1_325 = arith.constant 1 : index
    %c0_326 = arith.constant 0 : index
    %c0_327 = arith.constant 0 : index
    %737 = vector.load %arg33[%c1_325, %c0_326, %c0_327] : memref<2x1x32xf32, #tpu.memory_space<vmem>>, vector<1x1x32xf32>
    %738 = vector.shape_cast %737 : vector<1x1x32xf32> to vector<1x32xf32>
    %cst_328 = arith.constant dense<0.000000e+00> : vector<8xf32>
    %739 = vector.multi_reduction <add>, %734, %cst_328 [1] : vector<8x32xf32> to vector<8xf32>
    %740 = vector.shape_cast %739 : vector<8xf32> to vector<8x1xf32>
    %cst_329 = arith.constant 3.200000e+01 : f32
    %741 = vector.broadcast %cst_329 : f32 to vector<8x1xf32>
    %742 = arith.divf %740, %741 : vector<8x1xf32>
    %743 = vector.broadcast %742 : vector<8x1xf32> to vector<8x32xf32>
    %744 = arith.subf %734, %743 : vector<8x32xf32>
    %745 = arith.mulf %744, %744 : vector<8x32xf32>
    %cst_330 = arith.constant dense<0.000000e+00> : vector<8xf32>
    %746 = vector.multi_reduction <add>, %745, %cst_330 [1] : vector<8x32xf32> to vector<8xf32>
    %747 = vector.shape_cast %746 : vector<8xf32> to vector<8x1xf32>
    %cst_331 = arith.constant 3.200000e+01 : f32
    %748 = vector.broadcast %cst_331 : f32 to vector<8x1xf32>
    %749 = arith.divf %747, %748 : vector<8x1xf32>
    %750 = vector.broadcast %742 : vector<8x1xf32> to vector<8x32xf32>
    %751 = arith.subf %734, %750 : vector<8x32xf32>
    %cst_332 = arith.constant 9.99999974E-6 : f32
    %752 = vector.broadcast %cst_332 : f32 to vector<8x1xf32>
    %753 = arith.addf %749, %752 : vector<8x1xf32>
    %754 = math.rsqrt %753 : vector<8x1xf32>
    %755 = vector.broadcast %754 : vector<8x1xf32> to vector<8x32xf32>
    %756 = arith.mulf %751, %755 : vector<8x32xf32>
    %757 = vector.broadcast %736 : vector<1x32xf32> to vector<8x32xf32>
    %758 = arith.mulf %756, %757 : vector<8x32xf32>
    %759 = vector.broadcast %738 : vector<1x32xf32> to vector<8x32xf32>
    %760 = arith.addf %758, %759 : vector<8x32xf32>
    %c0_333 = arith.constant 0 : index
    %c0_334 = arith.constant 0 : index
    %c0_335 = arith.constant 0 : index
    %761 = vector.load %arg34[%c0_333, %c0_334, %c0_335] : memref<1x8x32xf32, #tpu.memory_space<vmem>>, vector<1x8x32xf32>
    %762 = vector.shape_cast %761 : vector<1x8x32xf32> to vector<8x32xf32>
    %763 = vector.shape_cast %760 : vector<8x32xf32> to vector<1x8x32xf32>
    tpu.vector_store %arg34[%c0_333, %c0_334, %c0_335], %763 {strides = array<i32>} : memref<1x8x32xf32, #tpu.memory_space<vmem>>, vector<1x8x32xf32>,
    return
  }
  func.func @transform_0(%arg0: i32) -> (i32, i32, i32) {
    %c0_i32 = arith.constant 0 : i32
    %c0_i32_0 = arith.constant 0 : i32
    %c0_i32_1 = arith.constant 0 : i32
    return %arg0, %c0_i32, %c0_i32_0 : i32, i32, i32
  }
  func.func @transform_1(%arg0: i32) -> (i32, i32, i32) {
    %c0_i32 = arith.constant 0 : i32
    %c0_i32_0 = arith.constant 0 : i32
    %c0_i32_1 = arith.constant 0 : i32
    return %arg0, %c0_i32, %c0_i32_0 : i32, i32, i32
  }
  func.func @transform_2(%arg0: i32) -> (i32, i32) {
    %c0_i32 = arith.constant 0 : i32
    %c0_i32_0 = arith.constant 0 : i32
    %c0_i32_1 = arith.constant 0 : i32
    return %c0_i32, %c0_i32_0 : i32, i32
  }
  func.func @transform_3(%arg0: i32) -> (i32, i32, i32) {
    %c0_i32 = arith.constant 0 : i32
    %c0_i32_0 = arith.constant 0 : i32
    %c0_i32_1 = arith.constant 0 : i32
    %c0_i32_2 = arith.constant 0 : i32
    return %c0_i32, %c0_i32_0, %c0_i32_1 : i32, i32, i32
  }
  func.func @transform_4(%arg0: i32) -> (i32, i32, i32) {
    %c0_i32 = arith.constant 0 : i32
    %c0_i32_0 = arith.constant 0 : i32
    %c0_i32_1 = arith.constant 0 : i32
    %c0_i32_2 = arith.constant 0 : i32
    return %c0_i32, %c0_i32_0, %c0_i32_1 : i32, i32, i32
  }
  func.func @transform_5(%arg0: i32) -> (i32, i32, i32) {
    %c0_i32 = arith.constant 0 : i32
    %c0_i32_0 = arith.constant 0 : i32
    %c0_i32_1 = arith.constant 0 : i32
    %c0_i32_2 = arith.constant 0 : i32
    return %c0_i32, %c0_i32_0, %c0_i32_1 : i32, i32, i32
  }
  func.func @transform_6(%arg0: i32) -> (i32, i32, i32) {
    %c0_i32 = arith.constant 0 : i32
    %c0_i32_0 = arith.constant 0 : i32
    %c0_i32_1 = arith.constant 0 : i32
    %c0_i32_2 = arith.constant 0 : i32
    return %c0_i32, %c0_i32_0, %c0_i32_1 : i32, i32, i32
  }
  func.func @transform_7(%arg0: i32) -> (i32, i32, i32) {
    %c0_i32 = arith.constant 0 : i32
    %c0_i32_0 = arith.constant 0 : i32
    %c0_i32_1 = arith.constant 0 : i32
    %c0_i32_2 = arith.constant 0 : i32
    return %c0_i32, %c0_i32_0, %c0_i32_1 : i32, i32, i32
  }
  func.func @transform_8(%arg0: i32) -> (i32, i32, i32) {
    %c0_i32 = arith.constant 0 : i32
    %c0_i32_0 = arith.constant 0 : i32
    %c0_i32_1 = arith.constant 0 : i32
    %c0_i32_2 = arith.constant 0 : i32
    return %c0_i32, %c0_i32_0, %c0_i32_1 : i32, i32, i32
  }
  func.func @transform_9(%arg0: i32) -> (i32, i32, i32) {
    %c0_i32 = arith.constant 0 : i32
    %c0_i32_0 = arith.constant 0 : i32
    %c0_i32_1 = arith.constant 0 : i32
    %c0_i32_2 = arith.constant 0 : i32
    return %c0_i32, %c0_i32_0, %c0_i32_1 : i32, i32, i32
  }
  func.func @transform_10(%arg0: i32) -> (i32, i32, i32) {
    %c0_i32 = arith.constant 0 : i32
    %c0_i32_0 = arith.constant 0 : i32
    %c0_i32_1 = arith.constant 0 : i32
    %c0_i32_2 = arith.constant 0 : i32
    return %c0_i32, %c0_i32_0, %c0_i32_1 : i32, i32, i32
  }
  func.func @transform_11(%arg0: i32) -> (i32, i32, i32) {
    %c0_i32 = arith.constant 0 : i32
    %c0_i32_0 = arith.constant 0 : i32
    %c0_i32_1 = arith.constant 0 : i32
    %c0_i32_2 = arith.constant 0 : i32
    return %c0_i32, %c0_i32_0, %c0_i32_1 : i32, i32, i32
  }
  func.func @transform_12(%arg0: i32) -> (i32, i32, i32) {
    %c0_i32 = arith.constant 0 : i32
    %c0_i32_0 = arith.constant 0 : i32
    %c0_i32_1 = arith.constant 0 : i32
    %c0_i32_2 = arith.constant 0 : i32
    return %c0_i32, %c0_i32_0, %c0_i32_1 : i32, i32, i32
  }
  func.func @transform_13(%arg0: i32) -> (i32, i32, i32) {
    %c0_i32 = arith.constant 0 : i32
    %c0_i32_0 = arith.constant 0 : i32
    %c0_i32_1 = arith.constant 0 : i32
    %c0_i32_2 = arith.constant 0 : i32
    return %c0_i32, %c0_i32_0, %c0_i32_1 : i32, i32, i32
  }
  func.func @transform_14(%arg0: i32) -> (i32, i32, i32) {
    %c0_i32 = arith.constant 0 : i32
    %c0_i32_0 = arith.constant 0 : i32
    %c0_i32_1 = arith.constant 0 : i32
    %c0_i32_2 = arith.constant 0 : i32
    return %c0_i32, %c0_i32_0, %c0_i32_1 : i32, i32, i32
  }
  func.func @transform_15(%arg0: i32) -> (i32, i32, i32) {
    %c0_i32 = arith.constant 0 : i32
    %c0_i32_0 = arith.constant 0 : i32
    %c0_i32_1 = arith.constant 0 : i32
    %c0_i32_2 = arith.constant 0 : i32
    return %c0_i32, %c0_i32_0, %c0_i32_1 : i32, i32, i32
  }
  func.func @transform_16(%arg0: i32) -> (i32, i32, i32) {
    %c0_i32 = arith.constant 0 : i32
    %c0_i32_0 = arith.constant 0 : i32
    %c0_i32_1 = arith.constant 0 : i32
    %c0_i32_2 = arith.constant 0 : i32
    return %c0_i32, %c0_i32_0, %c0_i32_1 : i32, i32, i32
  }
  func.func @transform_17(%arg0: i32) -> (i32, i32, i32) {
    %c0_i32 = arith.constant 0 : i32
    %c0_i32_0 = arith.constant 0 : i32
    %c0_i32_1 = arith.constant 0 : i32
    %c0_i32_2 = arith.constant 0 : i32
    return %c0_i32, %c0_i32_0, %c0_i32_1 : i32, i32, i32
  }
  func.func @transform_18(%arg0: i32) -> (i32, i32, i32) {
    %c0_i32 = arith.constant 0 : i32
    %c0_i32_0 = arith.constant 0 : i32
    %c0_i32_1 = arith.constant 0 : i32
    %c0_i32_2 = arith.constant 0 : i32
    return %c0_i32, %c0_i32_0, %c0_i32_1 : i32, i32, i32
  }
  func.func @transform_19(%arg0: i32) -> (i32, i32, i32) {
    %c0_i32 = arith.constant 0 : i32
    %c0_i32_0 = arith.constant 0 : i32
    %c0_i32_1 = arith.constant 0 : i32
    %c0_i32_2 = arith.constant 0 : i32
    return %c0_i32, %c0_i32_0, %c0_i32_1 : i32, i32, i32
  }
  func.func @transform_20(%arg0: i32) -> (i32, i32, i32) {
    %c0_i32 = arith.constant 0 : i32
    %c0_i32_0 = arith.constant 0 : i32
    %c0_i32_1 = arith.constant 0 : i32
    %c0_i32_2 = arith.constant 0 : i32
    return %c0_i32, %c0_i32_0, %c0_i32_1 : i32, i32, i32
  }
  func.func @transform_21(%arg0: i32) -> (i32, i32, i32) {
    %c0_i32 = arith.constant 0 : i32
    %c0_i32_0 = arith.constant 0 : i32
    %c0_i32_1 = arith.constant 0 : i32
    %c0_i32_2 = arith.constant 0 : i32
    return %c0_i32, %c0_i32_0, %c0_i32_1 : i32, i32, i32
  }
  func.func @transform_22(%arg0: i32) -> (i32, i32, i32) {
    %c0_i32 = arith.constant 0 : i32
    %c0_i32_0 = arith.constant 0 : i32
    %c0_i32_1 = arith.constant 0 : i32
    %c0_i32_2 = arith.constant 0 : i32
    return %c0_i32, %c0_i32_0, %c0_i32_1 : i32, i32, i32
  }
  func.func @transform_23(%arg0: i32) -> (i32, i32, i32) {
    %c0_i32 = arith.constant 0 : i32
    %c0_i32_0 = arith.constant 0 : i32
    %c0_i32_1 = arith.constant 0 : i32
    %c0_i32_2 = arith.constant 0 : i32
    return %c0_i32, %c0_i32_0, %c0_i32_1 : i32, i32, i32
  }
  func.func @transform_24(%arg0: i32) -> (i32, i32, i32) {
    %c0_i32 = arith.constant 0 : i32
    %c0_i32_0 = arith.constant 0 : i32
    %c0_i32_1 = arith.constant 0 : i32
    %c0_i32_2 = arith.constant 0 : i32
    return %c0_i32, %c0_i32_0, %c0_i32_1 : i32, i32, i32
  }
  func.func @transform_25(%arg0: i32) -> (i32, i32, i32) {
    %c0_i32 = arith.constant 0 : i32
    %c0_i32_0 = arith.constant 0 : i32
    %c0_i32_1 = arith.constant 0 : i32
    %c0_i32_2 = arith.constant 0 : i32
    return %c0_i32, %c0_i32_0, %c0_i32_1 : i32, i32, i32
  }
  func.func @transform_26(%arg0: i32) -> (i32, i32, i32) {
    %c0_i32 = arith.constant 0 : i32
    %c0_i32_0 = arith.constant 0 : i32
    %c0_i32_1 = arith.constant 0 : i32
    %c0_i32_2 = arith.constant 0 : i32
    return %c0_i32, %c0_i32_0, %c0_i32_1 : i32, i32, i32
  }
  func.func @transform_27(%arg0: i32) -> (i32, i32, i32) {
    %c0_i32 = arith.constant 0 : i32
    %c0_i32_0 = arith.constant 0 : i32
    %c0_i32_1 = arith.constant 0 : i32
    %c0_i32_2 = arith.constant 0 : i32
    return %c0_i32, %c0_i32_0, %c0_i32_1 : i32, i32, i32
  }
  func.func @transform_28(%arg0: i32) -> (i32, i32, i32) {
    %c0_i32 = arith.constant 0 : i32
    %c0_i32_0 = arith.constant 0 : i32
    %c0_i32_1 = arith.constant 0 : i32
    %c0_i32_2 = arith.constant 0 : i32
    return %c0_i32, %c0_i32_0, %c0_i32_1 : i32, i32, i32
  }
  func.func @transform_29(%arg0: i32) -> (i32, i32, i32) {
    %c0_i32 = arith.constant 0 : i32
    %c0_i32_0 = arith.constant 0 : i32
    %c0_i32_1 = arith.constant 0 : i32
    %c0_i32_2 = arith.constant 0 : i32
    return %c0_i32, %c0_i32_0, %c0_i32_1 : i32, i32, i32
  }
  func.func @transform_30(%arg0: i32) -> (i32, i32, i32) {
    %c0_i32 = arith.constant 0 : i32
    %c0_i32_0 = arith.constant 0 : i32
    %c0_i32_1 = arith.constant 0 : i32
    %c0_i32_2 = arith.constant 0 : i32
    return %c0_i32, %c0_i32_0, %c0_i32_1 : i32, i32, i32
  }
  func.func @transform_31(%arg0: i32) -> (i32, i32, i32) {
    %c0_i32 = arith.constant 0 : i32
    %c0_i32_0 = arith.constant 0 : i32
    %c0_i32_1 = arith.constant 0 : i32
    %c0_i32_2 = arith.constant 0 : i32
    return %c0_i32, %c0_i32_0, %c0_i32_1 : i32, i32, i32
  }
  func.func @transform_32(%arg0: i32) -> (i32, i32, i32) {
    %c0_i32 = arith.constant 0 : i32
    %c0_i32_0 = arith.constant 0 : i32
    %c0_i32_1 = arith.constant 0 : i32
    %c0_i32_2 = arith.constant 0 : i32
    return %c0_i32, %c0_i32_0, %c0_i32_1 : i32, i32, i32
  }
  func.func @transform_33(%arg0: i32) -> (i32, i32, i32) {
    %c0_i32 = arith.constant 0 : i32
    %c0_i32_0 = arith.constant 0 : i32
    %c0_i32_1 = arith.constant 0 : i32
    return %arg0, %c0_i32, %c0_i32_0 : i32, i32, i32
  }
}

</mosaic_0001>

<llo_original>
// kernel: transformer_forward.1
$region0: #{transformer_forward.1}
  #allocation0 [shape = 'u32[]', space=smem, size = 0x4, offset = 0x4, fixed_abs, tag = 'smem constant byte address 0x4 - core index']
  #allocation1 [shape = 'u32[72,128]{1,0:T(1,128)}', space=vmem, size = 0x9000, scoped, tag = 'internal scratch']
  %s0 = inlined_call_operand.smem [shape: u32[34], index: -1, kind: input, shape index: {}]
  %s1 = sld [smem:[%s0]]
  %s2 = scalar_lea.smem %s0, 1
  %s3 = sld [smem:[%s2]]
  %s4 = scalar_lea.smem %s0, 2
  %s5 = sld [smem:[%s4]]
  %s6 = scalar_lea.smem %s0, 3
  %s7 = sld [smem:[%s6]]
  %s8 = scalar_lea.smem %s0, 4
  %s9 = sld [smem:[%s8]]
  %s10 = scalar_lea.smem %s0, 5
  %s11 = sld [smem:[%s10]]
  %s12 = scalar_lea.smem %s0, 6
  %s13 = sld [smem:[%s12]]
  %s14 = scalar_lea.smem %s0, 7
  %s15 = sld [smem:[%s14]]
  %s16 = scalar_lea.smem %s0, 8
  %s17 = sld [smem:[%s16]]
  %s18 = scalar_lea.smem %s0, 9
  %s19 = sld [smem:[%s18]]
  %s20 = scalar_lea.smem %s0, 10
  %s21 = sld [smem:[%s20]]
  %s22 = scalar_lea.smem %s0, 11
  %s23 = sld [smem:[%s22]]
  %s24 = scalar_lea.smem %s0, 12
  %s25 = sld [smem:[%s24]]
  %s26 = scalar_lea.smem %s0, 13
  %s27 = sld [smem:[%s26]]
  %s28 = scalar_lea.smem %s0, 14
  %s29 = sld [smem:[%s28]]
  %s30 = scalar_lea.smem %s0, 15
  %s31 = sld [smem:[%s30]]
  %s32 = scalar_lea.smem %s0, 16
  %s33 = sld [smem:[%s32]]
  %s34 = scalar_lea.smem %s0, 17
  %s35 = sld [smem:[%s34]]
  %s36 = scalar_lea.smem %s0, 18
  %s37 = sld [smem:[%s36]]
  %s38 = scalar_lea.smem %s0, 19
  %s39 = sld [smem:[%s38]]
  %s40 = scalar_lea.smem %s0, 20
  %s41 = sld [smem:[%s40]]
  %s42 = scalar_lea.smem %s0, 21
  %s43 = sld [smem:[%s42]]
  %s44 = scalar_lea.smem %s0, 22
  %s45 = sld [smem:[%s44]]
  %s46 = scalar_lea.smem %s0, 23
  %s47 = sld [smem:[%s46]]
  %s48 = scalar_lea.smem %s0, 24
  %s49 = sld [smem:[%s48]]
  %s50 = scalar_lea.smem %s0, 25
  %s51 = sld [smem:[%s50]]
  %s52 = scalar_lea.smem %s0, 26
  %s53 = sld [smem:[%s52]]
  %s54 = scalar_lea.smem %s0, 27
  %s55 = sld [smem:[%s54]]
  %s56 = scalar_lea.smem %s0, 28
  %s57 = sld [smem:[%s56]]
  %s58 = scalar_lea.smem %s0, 29
  %s59 = sld [smem:[%s58]]
  %s60 = scalar_lea.smem %s0, 30
  %s61 = sld [smem:[%s60]]
  %s62 = scalar_lea.smem %s0, 31
  %s63 = sld [smem:[%s62]]
  %s64 = scalar_lea.smem %s0, 32
  %s65 = sld [smem:[%s64]]
  %s66 = scalar_lea.smem %s0, 33
  %s67 = sld [smem:[%s66]]
  %s68 = sld [smem:[#allocation0]]
  $region165: #{transformer_forward.1} parent=0
    _
  %s70 = ssub.s32 1, %s68
  %s71 = scalar_select 0, %s70, %s68
  $region1: #{transformer_forward.1} parent=0
    #allocation2 [shape = 'u8[8192]{0}', space=vmem, size = 0x2000, scoped, tag = 'output window, operand 0']
    #allocation3 [shape = 's32[2]{0}', space=sflag, size = 0x8, scoped, tag = 'scoped memory for transformer_forward.1']
    %72 = vsyncpa [#allocation3], 0
    %s73 = scalar_lea.sflag [#allocation3], 1
    %74 = vsyncpa %s73, 0
    loop: start=0, step=1, limit=4
    $region2: #{transformer_forward.1} parent=1 // loop_pre_header
      _
    $region3: #{transformer_forward.1} parent=1 // loop_header
      %s76 = sphi 0, %s80
      %p77 = scmp.ge.s32.totalorder %s76, 4
      %s86 = sphi 0, %s88
      %s89 = sphi 0, %s86
      %s90 = sphi 0, %s89
      %s106 = sphi 0, %s90
      %s112 = sphi 0, %s114
      %s115 = sphi 0, %s112
      %s116 = sphi 0, %s115
      %s132 = sphi 0, %s116
      %s136 = sphi 0, %s136
      %s138 = sphi 0, %s136
      %s139 = sphi 0, %s138
      %s153 = sphi 0, %s139
      %s157 = sphi 0, %s157
      %s159 = sphi 0, %s157
      %s160 = sphi 0, %s159
      %s174 = sphi 0, %s160
      %s178 = sphi 0, %s178
      %s180 = sphi 0, %s178
      %s181 = sphi 0, %s180
      %s195 = sphi 0, %s181
      %s199 = sphi 0, %s199
      %s201 = sphi 0, %s199
      %s202 = sphi 0, %s201
      %s216 = sphi 0, %s202
      %s220 = sphi 0, %s220
      %s222 = sphi 0, %s220
      %s223 = sphi 0, %s222
      %s237 = sphi 0, %s223
      %s241 = sphi 0, %s241
      %s243 = sphi 0, %s241
      %s244 = sphi 0, %s243
      %s258 = sphi 0, %s244
      %s262 = sphi 0, %s262
      %s264 = sphi 0, %s262
      %s265 = sphi 0, %s264
      %s279 = sphi 0, %s265
      %s283 = sphi 0, %s283
      %s285 = sphi 0, %s283
      %s286 = sphi 0, %s285
      %s300 = sphi 0, %s286
      %s304 = sphi 0, %s304
      %s306 = sphi 0, %s304
      %s307 = sphi 0, %s306
      %s321 = sphi 0, %s307
      %s325 = sphi 0, %s325
      %s327 = sphi 0, %s325
      %s328 = sphi 0, %s327
      %s342 = sphi 0, %s328
      %s346 = sphi 0, %s346
      %s348 = sphi 0, %s346
      %s349 = sphi 0, %s348
      %s363 = sphi 0, %s349
      %s367 = sphi 0, %s367
      %s369 = sphi 0, %s367
      %s370 = sphi 0, %s369
      %s384 = sphi 0, %s370
      %s388 = sphi 0, %s388
      %s390 = sphi 0, %s388
      %s391 = sphi 0, %s390
      %s405 = sphi 0, %s391
      %s409 = sphi 0, %s409
      %s411 = sphi 0, %s409
      %s412 = sphi 0, %s411
      %s426 = sphi 0, %s412
      %s430 = sphi 0, %s430
      %s432 = sphi 0, %s430
      %s433 = sphi 0, %s432
      %s447 = sphi 0, %s433
      %s451 = sphi 0, %s451
      %s453 = sphi 0, %s451
      %s454 = sphi 0, %s453
      %s468 = sphi 0, %s454
      %s472 = sphi 0, %s472
      %s474 = sphi 0, %s472
      %s475 = sphi 0, %s474
      %s489 = sphi 0, %s475
      %s493 = sphi 0, %s493
      %s495 = sphi 0, %s493
      %s496 = sphi 0, %s495
      %s510 = sphi 0, %s496
      %s514 = sphi 0, %s514
      %s516 = sphi 0, %s514
      %s517 = sphi 0, %s516
      %s531 = sphi 0, %s517
      %s535 = sphi 0, %s535
      %s537 = sphi 0, %s535
      %s538 = sphi 0, %s537
      %s552 = sphi 0, %s538
      %s556 = sphi 0, %s556
      %s558 = sphi 0, %s556
      %s559 = sphi 0, %s558
      %s573 = sphi 0, %s559
      %s577 = sphi 0, %s577
      %s579 = sphi 0, %s577
      %s580 = sphi 0, %s579
      %s594 = sphi 0, %s580
      %s598 = sphi 0, %s598
      %s600 = sphi 0, %s598
      %s601 = sphi 0, %s600
      %s615 = sphi 0, %s601
      %s619 = sphi 0, %s619
      %s621 = sphi 0, %s619
      %s622 = sphi 0, %s621
      %s636 = sphi 0, %s622
      %s640 = sphi 0, %s640
      %s642 = sphi 0, %s640
      %s643 = sphi 0, %s642
      %s657 = sphi 0, %s643
      %s661 = sphi 0, %s661
      %s663 = sphi 0, %s661
      %s664 = sphi 0, %s663
      %s678 = sphi 0, %s664
      %s682 = sphi 0, %s682
      %s684 = sphi 0, %s682
      %s685 = sphi 0, %s684
      %s699 = sphi 0, %s685
      %s703 = sphi 0, %s703
      %s705 = sphi 0, %s703
      %s706 = sphi 0, %s705
      %s720 = sphi 0, %s706
      %s724 = sphi 0, %s724
      %s726 = sphi 0, %s724
      %s727 = sphi 0, %s726
      %s741 = sphi 0, %s727
      %s745 = sphi 0, %s745
      %s747 = sphi 0, %s745
      %s748 = sphi 0, %s747
      %s762 = sphi 0, %s748
      %s766 = sphi 0, %s766
      %s768 = sphi 0, %s766
      %s769 = sphi 0, %s768
      %s783 = sphi 0, %s769
      %s789 = sphi 0, %s791
      %s792 = sphi 0, %s789
      %s793 = sphi 0, %s792
      %s809 = sphi 0, %s793
    $region4: #{transformer_forward.1} parent=1 // loop_header_branch
      %79 = sbr.rel (%p77) target = $region8
    $region5: #{transformer_forward.1} parent=1 // loop_body
      %s81 = ssub.s32 %s76, 1
      %s82 = ssub.s32 %s76, 2
      %s83 = sadd.s32 %s76, 1
      %s84 = ssub.s32 %s76, %s83
      %p85 = scmp.eq.s32.totalorder %s84, 0
      %s87 = sadd.s32 %s86, 1
      %s88 = scalar_select %p85, %s86, %s87
      %p91 = pneg %p85
      %p92 = scmp.eq.s32.totalorder %s76, 1
      %p93 = por %p91, %p92
      %p94 = scmp.ne.s32.totalorder %s86, %s89
      %p95 = scmp.eq.s32.totalorder %s76, 0
      %p96 = por %p94, %p95
      %p97 = scmp.ne.s32.totalorder %s86, %s89
      %p98 = scmp.eq.s32.totalorder %s81, 1
      %p99 = por %p97, %p98
      %p100 = scmp.ne.s32.totalorder %s89, %s90
      %p101 = scmp.eq.s32.totalorder %s81, 0
      %p102 = por %p100, %p101
      %p103 = scmp.ne.s32.totalorder %s89, %s90
      %p104 = scmp.eq.s32.totalorder %s82, 1
      %p105 = por %p103, %p104
      %p107 = scmp.ne.s32.totalorder %s90, %s106
      %p108 = scmp.eq.s32.totalorder %s82, 0
      %p109 = por %p107, %p108
      %s110 = ssub.s32 %s76, %s83
      %p111 = scmp.eq.s32.totalorder %s110, 0
      %s113 = sadd.s32 %s112, 1
      %s114 = scalar_select %p111, %s112, %s113
      %p117 = pneg %p111
      %p118 = scmp.eq.s32.totalorder %s76, 1
      %p119 = por %p117, %p118
      %p120 = scmp.ne.s32.totalorder %s112, %s115
      %p121 = scmp.eq.s32.totalorder %s76, 0
      %p122 = por %p120, %p121
      %p123 = scmp.ne.s32.totalorder %s112, %s115
      %p124 = scmp.eq.s32.totalorder %s81, 1
      %p125 = por %p123, %p124
      %p126 = scmp.ne.s32.totalorder %s115, %s116
      %p127 = scmp.eq.s32.totalorder %s81, 0
      %p128 = por %p126, %p127
      %p129 = scmp.ne.s32.totalorder %s115, %s116
      %p130 = scmp.eq.s32.totalorder %s82, 1
      %p131 = por %p129, %p130
      %p133 = scmp.ne.s32.totalorder %s116, %s132
      %p134 = scmp.eq.s32.totalorder %s82, 0
      %p135 = por %p133, %p134
      %s137 = sadd.s32 %s136, 1
      %p140 = scmp.eq.s32.totalorder %s76, 1
      %p141 = scmp.ne.s32.totalorder %s136, %s138
      %p142 = scmp.eq.s32.totalorder %s76, 0
      %p143 = por %p141, %p142
      %p144 = scmp.ne.s32.totalorder %s136, %s138
      %p145 = scmp.eq.s32.totalorder %s81, 1
      %p146 = por %p144, %p145
      %p147 = scmp.ne.s32.totalorder %s138, %s139
      %p148 = scmp.eq.s32.totalorder %s81, 0
      %p149 = por %p147, %p148
      %p150 = scmp.ne.s32.totalorder %s138, %s139
      %p151 = scmp.eq.s32.totalorder %s82, 1
      %p152 = por %p150, %p151
      %p154 = scmp.ne.s32.totalorder %s139, %s153
      %p155 = scmp.eq.s32.totalorder %s82, 0
      %p156 = por %p154, %p155
      %s158 = sadd.s32 %s157, 1
      %p161 = scmp.eq.s32.totalorder %s76, 1
      %p162 = scmp.ne.s32.totalorder %s157, %s159
      %p163 = scmp.eq.s32.totalorder %s76, 0
      %p164 = por %p162, %p163
      %p165 = scmp.ne.s32.totalorder %s157, %s159
      %p166 = scmp.eq.s32.totalorder %s81, 1
      %p167 = por %p165, %p166
      %p168 = scmp.ne.s32.totalorder %s159, %s160
      %p169 = scmp.eq.s32.totalorder %s81, 0
      %p170 = por %p168, %p169
      %p171 = scmp.ne.s32.totalorder %s159, %s160
      %p172 = scmp.eq.s32.totalorder %s82, 1
      %p173 = por %p171, %p172
      %p175 = scmp.ne.s32.totalorder %s160, %s174
      %p176 = scmp.eq.s32.totalorder %s82, 0
      %p177 = por %p175, %p176
      %s179 = sadd.s32 %s178, 1
      %p182 = scmp.eq.s32.totalorder %s76, 1
      %p183 = scmp.ne.s32.totalorder %s178, %s180
      %p184 = scmp.eq.s32.totalorder %s76, 0
      %p185 = por %p183, %p184
      %p186 = scmp.ne.s32.totalorder %s178, %s180
      %p187 = scmp.eq.s32.totalorder %s81, 1
      %p188 = por %p186, %p187
      %p189 = scmp.ne.s32.totalorder %s180, %s181
      %p190 = scmp.eq.s32.totalorder %s81, 0
      %p191 = por %p189, %p190
      %p192 = scmp.ne.s32.totalorder %s180, %s181
      %p193 = scmp.eq.s32.totalorder %s82, 1
      %p194 = por %p192, %p193
      %p196 = scmp.ne.s32.totalorder %s181, %s195
      %p197 = scmp.eq.s32.totalorder %s82, 0
      %p198 = por %p196, %p197
      %s200 = sadd.s32 %s199, 1
      %p203 = scmp.eq.s32.totalorder %s76, 1
      %p204 = scmp.ne.s32.totalorder %s199, %s201
      %p205 = scmp.eq.s32.totalorder %s76, 0
      %p206 = por %p204, %p205
      %p207 = scmp.ne.s32.totalorder %s199, %s201
      %p208 = scmp.eq.s32.totalorder %s81, 1
      %p209 = por %p207, %p208
      %p210 = scmp.ne.s32.totalorder %s201, %s202
      %p211 = scmp.eq.s32.totalorder %s81, 0
      %p212 = por %p210, %p211
      %p213 = scmp.ne.s32.totalorder %s201, %s202
      %p214 = scmp.eq.s32.totalorder %s82, 1
      %p215 = por %p213, %p214
      %p217 = scmp.ne.s32.totalorder %s202, %s216
      %p218 = scmp.eq.s32.totalorder %s82, 0
      %p219 = por %p217, %p218
      %s221 = sadd.s32 %s220, 1
      %p224 = scmp.eq.s32.totalorder %s76, 1
      %p225 = scmp.ne.s32.totalorder %s220, %s222
      %p226 = scmp.eq.s32.totalorder %s76, 0
      %p227 = por %p225, %p226
      %p228 = scmp.ne.s32.totalorder %s220, %s222
      %p229 = scmp.eq.s32.totalorder %s81, 1
      %p230 = por %p228, %p229
      %p231 = scmp.ne.s32.totalorder %s222, %s223
      %p232 = scmp.eq.s32.totalorder %s81, 0
      %p233 = por %p231, %p232
      %p234 = scmp.ne.s32.totalorder %s222, %s223
      %p235 = scmp.eq.s32.totalorder %s82, 1
      %p236 = por %p234, %p235
      %p238 = scmp.ne.s32.totalorder %s223, %s237
      %p239 = scmp.eq.s32.totalorder %s82, 0
      %p240 = por %p238, %p239
      %s242 = sadd.s32 %s241, 1
      %p245 = scmp.eq.s32.totalorder %s76, 1
      %p246 = scmp.ne.s32.totalorder %s241, %s243
      %p247 = scmp.eq.s32.totalorder %s76, 0
      %p248 = por %p246, %p247
      %p249 = scmp.ne.s32.totalorder %s241, %s243
      %p250 = scmp.eq.s32.totalorder %s81, 1
      %p251 = por %p249, %p250
      %p252 = scmp.ne.s32.totalorder %s243, %s244
      %p253 = scmp.eq.s32.totalorder %s81, 0
      %p254 = por %p252, %p253
      %p255 = scmp.ne.s32.totalorder %s243, %s244
      %p256 = scmp.eq.s32.totalorder %s82, 1
      %p257 = por %p255, %p256
      %p259 = scmp.ne.s32.totalorder %s244, %s258
      %p260 = scmp.eq.s32.totalorder %s82, 0
      %p261 = por %p259, %p260
      %s263 = sadd.s32 %s262, 1
      %p266 = scmp.eq.s32.totalorder %s76, 1
      %p267 = scmp.ne.s32.totalorder %s262, %s264
      %p268 = scmp.eq.s32.totalorder %s76, 0
      %p269 = por %p267, %p268
      %p270 = scmp.ne.s32.totalorder %s262, %s264
      %p271 = scmp.eq.s32.totalorder %s81, 1
      %p272 = por %p270, %p271
      %p273 = scmp.ne.s32.totalorder %s264, %s265
      %p274 = scmp.eq.s32.totalorder %s81, 0
      %p275 = por %p273, %p274
      %p276 = scmp.ne.s32.totalorder %s264, %s265
      %p277 = scmp.eq.s32.totalorder %s82, 1
      %p278 = por %p276, %p277
      %p280 = scmp.ne.s32.totalorder %s265, %s279
      %p281 = scmp.eq.s32.totalorder %s82, 0
      %p282 = por %p280, %p281
      %s284 = sadd.s32 %s283, 1
      %p287 = scmp.eq.s32.totalorder %s76, 1
      %p288 = scmp.ne.s32.totalorder %s283, %s285
      %p289 = scmp.eq.s32.totalorder %s76, 0
      %p290 = por %p288, %p289
      %p291 = scmp.ne.s32.totalorder %s283, %s285
      %p292 = scmp.eq.s32.totalorder %s81, 1
      %p293 = por %p291, %p292
      %p294 = scmp.ne.s32.totalorder %s285, %s286
      %p295 = scmp.eq.s32.totalorder %s81, 0
      %p296 = por %p294, %p295
      %p297 = scmp.ne.s32.totalorder %s285, %s286
      %p298 = scmp.eq.s32.totalorder %s82, 1
      %p299 = por %p297, %p298
      %p301 = scmp.ne.s32.totalorder %s286, %s300
      %p302 = scmp.eq.s32.totalorder %s82, 0
      %p303 = por %p301, %p302
      %s305 = sadd.s32 %s304, 1
      %p308 = scmp.eq.s32.totalorder %s76, 1
      %p309 = scmp.ne.s32.totalorder %s304, %s306
      %p310 = scmp.eq.s32.totalorder %s76, 0
      %p311 = por %p309, %p310
      %p312 = scmp.ne.s32.totalorder %s304, %s306
      %p313 = scmp.eq.s32.totalorder %s81, 1
      %p314 = por %p312, %p313
      %p315 = scmp.ne.s32.totalorder %s306, %s307
      %p316 = scmp.eq.s32.totalorder %s81, 0
      %p317 = por %p315, %p316
      %p318 = scmp.ne.s32.totalorder %s306, %s307
      %p319 = scmp.eq.s32.totalorder %s82, 1
      %p320 = por %p318, %p319
      %p322 = scmp.ne.s32.totalorder %s307, %s321
      %p323 = scmp.eq.s32.totalorder %s82, 0
      %p324 = por %p322, %p323
      %s326 = sadd.s32 %s325, 1
      %p329 = scmp.eq.s32.totalorder %s76, 1
      %p330 = scmp.ne.s32.totalorder %s325, %s327
      %p331 = scmp.eq.s32.totalorder %s76, 0
      %p332 = por %p330, %p331
      %p333 = scmp.ne.s32.totalorder %s325, %s327
      %p334 = scmp.eq.s32.totalorder %s81, 1
      %p335 = por %p333, %p334
      %p336 = scmp.ne.s32.totalorder %s327, %s328
      %p337 = scmp.eq.s32.totalorder %s81, 0
      %p338 = por %p336, %p337
      %p339 = scmp.ne.s32.totalorder %s327, %s328
      %p340 = scmp.eq.s32.totalorder %s82, 1
      %p341 = por %p339, %p340
      %p343 = scmp.ne.s32.totalorder %s328, %s342
      %p344 = scmp.eq.s32.totalorder %s82, 0
      %p345 = por %p343, %p344
      %s347 = sadd.s32 %s346, 1
      %p350 = scmp.eq.s32.totalorder %s76, 1
      %p351 = scmp.ne.s32.totalorder %s346, %s348
      %p352 = scmp.eq.s32.totalorder %s76, 0
      %p353 = por %p351, %p352
      %p354 = scmp.ne.s32.totalorder %s346, %s348
      %p355 = scmp.eq.s32.totalorder %s81, 1
      %p356 = por %p354, %p355
      %p357 = scmp.ne.s32.totalorder %s348, %s349
      %p358 = scmp.eq.s32.totalorder %s81, 0
      %p359 = por %p357, %p358
      %p360 = scmp.ne.s32.totalorder %s348, %s349
      %p361 = scmp.eq.s32.totalorder %s82, 1
      %p362 = por %p360, %p361
      %p364 = scmp.ne.s32.totalorder %s349, %s363
      %p365 = scmp.eq.s32.totalorder %s82, 0
      %p366 = por %p364, %p365
      %s368 = sadd.s32 %s367, 1
      %p371 = scmp.eq.s32.totalorder %s76, 1
      %p372 = scmp.ne.s32.totalorder %s367, %s369
      %p373 = scmp.eq.s32.totalorder %s76, 0
      %p374 = por %p372, %p373
      %p375 = scmp.ne.s32.totalorder %s367, %s369
      %p376 = scmp.eq.s32.totalorder %s81, 1
      %p377 = por %p375, %p376
      %p378 = scmp.ne.s32.totalorder %s369, %s370
      %p379 = scmp.eq.s32.totalorder %s81, 0
      %p380 = por %p378, %p379
      %p381 = scmp.ne.s32.totalorder %s369, %s370
      %p382 = scmp.eq.s32.totalorder %s82, 1
      %p383 = por %p381, %p382
      %p385 = scmp.ne.s32.totalorder %s370, %s384
      %p386 = scmp.eq.s32.totalorder %s82, 0
      %p387 = por %p385, %p386
      %s389 = sadd.s32 %s388, 1
      %p392 = scmp.eq.s32.totalorder %s76, 1
      %p393 = scmp.ne.s32.totalorder %s388, %s390
      %p394 = scmp.eq.s32.totalorder %s76, 0
      %p395 = por %p393, %p394
      %p396 = scmp.ne.s32.totalorder %s388, %s390
      %p397 = scmp.eq.s32.totalorder %s81, 1
      %p398 = por %p396, %p397
      %p399 = scmp.ne.s32.totalorder %s390, %s391
      %p400 = scmp.eq.s32.totalorder %s81, 0
      %p401 = por %p399, %p400
      %p402 = scmp.ne.s32.totalorder %s390, %s391
      %p403 = scmp.eq.s32.totalorder %s82, 1
      %p404 = por %p402, %p403
      %p406 = scmp.ne.s32.totalorder %s391, %s405
      %p407 = scmp.eq.s32.totalorder %s82, 0
      %p408 = por %p406, %p407
      %s410 = sadd.s32 %s409, 1
      %p413 = scmp.eq.s32.totalorder %s76, 1
      %p414 = scmp.ne.s32.totalorder %s409, %s411
      %p415 = scmp.eq.s32.totalorder %s76, 0
      %p416 = por %p414, %p415
      %p417 = scmp.ne.s32.totalorder %s409, %s411
      %p418 = scmp.eq.s32.totalorder %s81, 1
      %p419 = por %p417, %p418
      %p420 = scmp.ne.s32.totalorder %s411, %s412
      %p421 = scmp.eq.s32.totalorder %s81, 0
      %p422 = por %p420, %p421
      %p423 = scmp.ne.s32.totalorder %s411, %s412
      %p424 = scmp.eq.s32.totalorder %s82, 1
      %p425 = por %p423, %p424
      %p427 = scmp.ne.s32.totalorder %s412, %s426
      %p428 = scmp.eq.s32.totalorder %s82, 0
      %p429 = por %p427, %p428
      %s431 = sadd.s32 %s430, 1
      %p434 = scmp.eq.s32.totalorder %s76, 1
      %p435 = scmp.ne.s32.totalorder %s430, %s432
      %p436 = scmp.eq.s32.totalorder %s76, 0
      %p437 = por %p435, %p436
      %p438 = scmp.ne.s32.totalorder %s430, %s432
      %p439 = scmp.eq.s32.totalorder %s81, 1
      %p440 = por %p438, %p439
      %p441 = scmp.ne.s32.totalorder %s432, %s433
      %p442 = scmp.eq.s32.totalorder %s81, 0
      %p443 = por %p441, %p442
      %p444 = scmp.ne.s32.totalorder %s432, %s433
      %p445 = scmp.eq.s32.totalorder %s82, 1
      %p446 = por %p444, %p445
      %p448 = scmp.ne.s32.totalorder %s433, %s447
      %p449 = scmp.eq.s32.totalorder %s82, 0
      %p450 = por %p448, %p449
      %s452 = sadd.s32 %s451, 1
      %p455 = scmp.eq.s32.totalorder %s76, 1
      %p456 = scmp.ne.s32.totalorder %s451, %s453
      %p457 = scmp.eq.s32.totalorder %s76, 0
      %p458 = por %p456, %p457
      %p459 = scmp.ne.s32.totalorder %s451, %s453
      %p460 = scmp.eq.s32.totalorder %s81, 1
      %p461 = por %p459, %p460
      %p462 = scmp.ne.s32.totalorder %s453, %s454
      %p463 = scmp.eq.s32.totalorder %s81, 0
      %p464 = por %p462, %p463
      %p465 = scmp.ne.s32.totalorder %s453, %s454
      %p466 = scmp.eq.s32.totalorder %s82, 1
      %p467 = por %p465, %p466
      %p469 = scmp.ne.s32.totalorder %s454, %s468
      %p470 = scmp.eq.s32.totalorder %s82, 0
      %p471 = por %p469, %p470
      %s473 = sadd.s32 %s472, 1
      %p476 = scmp.eq.s32.totalorder %s76, 1
      %p477 = scmp.ne.s32.totalorder %s472, %s474
      %p478 = scmp.eq.s32.totalorder %s76, 0
      %p479 = por %p477, %p478
      %p480 = scmp.ne.s32.totalorder %s472, %s474
      %p481 = scmp.eq.s32.totalorder %s81, 1
      %p482 = por %p480, %p481
      %p483 = scmp.ne.s32.totalorder %s474, %s475
      %p484 = scmp.eq.s32.totalorder %s81, 0
      %p485 = por %p483, %p484
      %p486 = scmp.ne.s32.totalorder %s474, %s475
      %p487 = scmp.eq.s32.totalorder %s82, 1
      %p488 = por %p486, %p487
      %p490 = scmp.ne.s32.totalorder %s475, %s489
      %p491 = scmp.eq.s32.totalorder %s82, 0
      %p492 = por %p490, %p491
      %s494 = sadd.s32 %s493, 1
      %p497 = scmp.eq.s32.totalorder %s76, 1
      %p498 = scmp.ne.s32.totalorder %s493, %s495
      %p499 = scmp.eq.s32.totalorder %s76, 0
      %p500 = por %p498, %p499
      %p501 = scmp.ne.s32.totalorder %s493, %s495
      %p502 = scmp.eq.s32.totalorder %s81, 1
      %p503 = por %p501, %p502
      %p504 = scmp.ne.s32.totalorder %s495, %s496
      %p505 = scmp.eq.s32.totalorder %s81, 0
      %p506 = por %p504, %p505
      %p507 = scmp.ne.s32.totalorder %s495, %s496
      %p508 = scmp.eq.s32.totalorder %s82, 1
      %p509 = por %p507, %p508
      %p511 = scmp.ne.s32.totalorder %s496, %s510
      %p512 = scmp.eq.s32.totalorder %s82, 0
      %p513 = por %p511, %p512
      %s515 = sadd.s32 %s514, 1
      %p518 = scmp.eq.s32.totalorder %s76, 1
      %p519 = scmp.ne.s32.totalorder %s514, %s516
      %p520 = scmp.eq.s32.totalorder %s76, 0
      %p521 = por %p519, %p520
      %p522 = scmp.ne.s32.totalorder %s514, %s516
      %p523 = scmp.eq.s32.totalorder %s81, 1
      %p524 = por %p522, %p523
      %p525 = scmp.ne.s32.totalorder %s516, %s517
      %p526 = scmp.eq.s32.totalorder %s81, 0
      %p527 = por %p525, %p526
      %p528 = scmp.ne.s32.totalorder %s516, %s517
      %p529 = scmp.eq.s32.totalorder %s82, 1
      %p530 = por %p528, %p529
      %p532 = scmp.ne.s32.totalorder %s517, %s531
      %p533 = scmp.eq.s32.totalorder %s82, 0
      %p534 = por %p532, %p533
      %s536 = sadd.s32 %s535, 1
      %p539 = scmp.eq.s32.totalorder %s76, 1
      %p540 = scmp.ne.s32.totalorder %s535, %s537
      %p541 = scmp.eq.s32.totalorder %s76, 0
      %p542 = por %p540, %p541
      %p543 = scmp.ne.s32.totalorder %s535, %s537
      %p544 = scmp.eq.s32.totalorder %s81, 1
      %p545 = por %p543, %p544
      %p546 = scmp.ne.s32.totalorder %s537, %s538
      %p547 = scmp.eq.s32.totalorder %s81, 0
      %p548 = por %p546, %p547
      %p549 = scmp.ne.s32.totalorder %s537, %s538
      %p550 = scmp.eq.s32.totalorder %s82, 1
      %p551 = por %p549, %p550
      %p553 = scmp.ne.s32.totalorder %s538, %s552
      %p554 = scmp.eq.s32.totalorder %s82, 0
      %p555 = por %p553, %p554
      %s557 = sadd.s32 %s556, 1
      %p560 = scmp.eq.s32.totalorder %s76, 1
      %p561 = scmp.ne.s32.totalorder %s556, %s558
      %p562 = scmp.eq.s32.totalorder %s76, 0
      %p563 = por %p561, %p562
      %p564 = scmp.ne.s32.totalorder %s556, %s558
      %p565 = scmp.eq.s32.totalorder %s81, 1
      %p566 = por %p564, %p565
      %p567 = scmp.ne.s32.totalorder %s558, %s559
      %p568 = scmp.eq.s32.totalorder %s81, 0
      %p569 = por %p567, %p568
      %p570 = scmp.ne.s32.totalorder %s558, %s559
      %p571 = scmp.eq.s32.totalorder %s82, 1
      %p572 = por %p570, %p571
      %p574 = scmp.ne.s32.totalorder %s559, %s573
      %p575 = scmp.eq.s32.totalorder %s82, 0
      %p576 = por %p574, %p575
      %s578 = sadd.s32 %s577, 1
      %p581 = scmp.eq.s32.totalorder %s76, 1
      %p582 = scmp.ne.s32.totalorder %s577, %s579
      %p583 = scmp.eq.s32.totalorder %s76, 0
      %p584 = por %p582, %p583
      %p585 = scmp.ne.s32.totalorder %s577, %s579
      %p586 = scmp.eq.s32.totalorder %s81, 1
      %p587 = por %p585, %p586
      %p588 = scmp.ne.s32.totalorder %s579, %s580
      %p589 = scmp.eq.s32.totalorder %s81, 0
      %p590 = por %p588, %p589
      %p591 = scmp.ne.s32.totalorder %s579, %s580
      %p592 = scmp.eq.s32.totalorder %s82, 1
      %p593 = por %p591, %p592
      %p595 = scmp.ne.s32.totalorder %s580, %s594
      %p596 = scmp.eq.s32.totalorder %s82, 0
      %p597 = por %p595, %p596
      %s599 = sadd.s32 %s598, 1
      %p602 = scmp.eq.s32.totalorder %s76, 1
      %p603 = scmp.ne.s32.totalorder %s598, %s600
      %p604 = scmp.eq.s32.totalorder %s76, 0
      %p605 = por %p603, %p604
      %p606 = scmp.ne.s32.totalorder %s598, %s600
      %p607 = scmp.eq.s32.totalorder %s81, 1
      %p608 = por %p606, %p607
      %p609 = scmp.ne.s32.totalorder %s600, %s601
      %p610 = scmp.eq.s32.totalorder %s81, 0
      %p611 = por %p609, %p610
      %p612 = scmp.ne.s32.totalorder %s600, %s601
      %p613 = scmp.eq.s32.totalorder %s82, 1
      %p614 = por %p612, %p613
      %p616 = scmp.ne.s32.totalorder %s601, %s615
      %p617 = scmp.eq.s32.totalorder %s82, 0
      %p618 = por %p616, %p617
      %s620 = sadd.s32 %s619, 1
      %p623 = scmp.eq.s32.totalorder %s76, 1
      %p624 = scmp.ne.s32.totalorder %s619, %s621
      %p625 = scmp.eq.s32.totalorder %s76, 0
      %p626 = por %p624, %p625
      %p627 = scmp.ne.s32.totalorder %s619, %s621
      %p628 = scmp.eq.s32.totalorder %s81, 1
      %p629 = por %p627, %p628
      %p630 = scmp.ne.s32.totalorder %s621, %s622
      %p631 = scmp.eq.s32.totalorder %s81, 0
      %p632 = por %p630, %p631
      %p633 = scmp.ne.s32.totalorder %s621, %s622
      %p634 = scmp.eq.s32.totalorder %s82, 1
      %p635 = por %p633, %p634
      %p637 = scmp.ne.s32.totalorder %s622, %s636
      %p638 = scmp.eq.s32.totalorder %s82, 0
      %p639 = por %p637, %p638
      %s641 = sadd.s32 %s640, 1
      %p644 = scmp.eq.s32.totalorder %s76, 1
      %p645 = scmp.ne.s32.totalorder %s640, %s642
      %p646 = scmp.eq.s32.totalorder %s76, 0
      %p647 = por %p645, %p646
      %p648 = scmp.ne.s32.totalorder %s640, %s642
      %p649 = scmp.eq.s32.totalorder %s81, 1
      %p650 = por %p648, %p649
      %p651 = scmp.ne.s32.totalorder %s642, %s643
      %p652 = scmp.eq.s32.totalorder %s81, 0
      %p653 = por %p651, %p652
      %p654 = scmp.ne.s32.totalorder %s642, %s643
      %p655 = scmp.eq.s32.totalorder %s82, 1
      %p656 = por %p654, %p655
      %p658 = scmp.ne.s32.totalorder %s643, %s657
      %p659 = scmp.eq.s32.totalorder %s82, 0
      %p660 = por %p658, %p659
      %s662 = sadd.s32 %s661, 1
      %p665 = scmp.eq.s32.totalorder %s76, 1
      %p666 = scmp.ne.s32.totalorder %s661, %s663
      %p667 = scmp.eq.s32.totalorder %s76, 0
      %p668 = por %p666, %p667
      %p669 = scmp.ne.s32.totalorder %s661, %s663
      %p670 = scmp.eq.s32.totalorder %s81, 1
      %p671 = por %p669, %p670
      %p672 = scmp.ne.s32.totalorder %s663, %s664
      %p673 = scmp.eq.s32.totalorder %s81, 0
      %p674 = por %p672, %p673
      %p675 = scmp.ne.s32.totalorder %s663, %s664
      %p676 = scmp.eq.s32.totalorder %s82, 1
      %p677 = por %p675, %p676
      %p679 = scmp.ne.s32.totalorder %s664, %s678
      %p680 = scmp.eq.s32.totalorder %s82, 0
      %p681 = por %p679, %p680
      %s683 = sadd.s32 %s682, 1
      %p686 = scmp.eq.s32.totalorder %s76, 1
      %p687 = scmp.ne.s32.totalorder %s682, %s684
      %p688 = scmp.eq.s32.totalorder %s76, 0
      %p689 = por %p687, %p688
      %p690 = scmp.ne.s32.totalorder %s682, %s684
      %p691 = scmp.eq.s32.totalorder %s81, 1
      %p692 = por %p690, %p691
      %p693 = scmp.ne.s32.totalorder %s684, %s685
      %p694 = scmp.eq.s32.totalorder %s81, 0
      %p695 = por %p693, %p694
      %p696 = scmp.ne.s32.totalorder %s684, %s685
      %p697 = scmp.eq.s32.totalorder %s82, 1
      %p698 = por %p696, %p697
      %p700 = scmp.ne.s32.totalorder %s685, %s699
      %p701 = scmp.eq.s32.totalorder %s82, 0
      %p702 = por %p700, %p701
      %s704 = sadd.s32 %s703, 1
      %p707 = scmp.eq.s32.totalorder %s76, 1
      %p708 = scmp.ne.s32.totalorder %s703, %s705
      %p709 = scmp.eq.s32.totalorder %s76, 0
      %p710 = por %p708, %p709
      %p711 = scmp.ne.s32.totalorder %s703, %s705
      %p712 = scmp.eq.s32.totalorder %s81, 1
      %p713 = por %p711, %p712
      %p714 = scmp.ne.s32.totalorder %s705, %s706
      %p715 = scmp.eq.s32.totalorder %s81, 0
      %p716 = por %p714, %p715
      %p717 = scmp.ne.s32.totalorder %s705, %s706
      %p718 = scmp.eq.s32.totalorder %s82, 1
      %p719 = por %p717, %p718
      %p721 = scmp.ne.s32.totalorder %s706, %s720
      %p722 = scmp.eq.s32.totalorder %s82, 0
      %p723 = por %p721, %p722
      %s725 = sadd.s32 %s724, 1
      %p728 = scmp.eq.s32.totalorder %s76, 1
      %p729 = scmp.ne.s32.totalorder %s724, %s726
      %p730 = scmp.eq.s32.totalorder %s76, 0
      %p731 = por %p729, %p730
      %p732 = scmp.ne.s32.totalorder %s724, %s726
      %p733 = scmp.eq.s32.totalorder %s81, 1
      %p734 = por %p732, %p733
      %p735 = scmp.ne.s32.totalorder %s726, %s727
      %p736 = scmp.eq.s32.totalorder %s81, 0
      %p737 = por %p735, %p736
      %p738 = scmp.ne.s32.totalorder %s726, %s727
      %p739 = scmp.eq.s32.totalorder %s82, 1
      %p740 = por %p738, %p739
      %p742 = scmp.ne.s32.totalorder %s727, %s741
      %p743 = scmp.eq.s32.totalorder %s82, 0
      %p744 = por %p742, %p743
      %s746 = sadd.s32 %s745, 1
      %p749 = scmp.eq.s32.totalorder %s76, 1
      %p750 = scmp.ne.s32.totalorder %s745, %s747
      %p751 = scmp.eq.s32.totalorder %s76, 0
      %p752 = por %p750, %p751
      %p753 = scmp.ne.s32.totalorder %s745, %s747
      %p754 = scmp.eq.s32.totalorder %s81, 1
      %p755 = por %p753, %p754
      %p756 = scmp.ne.s32.totalorder %s747, %s748
      %p757 = scmp.eq.s32.totalorder %s81, 0
      %p758 = por %p756, %p757
      %p759 = scmp.ne.s32.totalorder %s747, %s748
      %p760 = scmp.eq.s32.totalorder %s82, 1
      %p761 = por %p759, %p760
      %p763 = scmp.ne.s32.totalorder %s748, %s762
      %p764 = scmp.eq.s32.totalorder %s82, 0
      %p765 = por %p763, %p764
      %s767 = sadd.s32 %s766, 1
      %p770 = scmp.eq.s32.totalorder %s76, 1
      %p771 = scmp.ne.s32.totalorder %s766, %s768
      %p772 = scmp.eq.s32.totalorder %s76, 0
      %p773 = por %p771, %p772
      %p774 = scmp.ne.s32.totalorder %s766, %s768
      %p775 = scmp.eq.s32.totalorder %s81, 1
      %p776 = por %p774, %p775
      %p777 = scmp.ne.s32.totalorder %s768, %s769
      %p778 = scmp.eq.s32.totalorder %s81, 0
      %p779 = por %p777, %p778
      %p780 = scmp.ne.s32.totalorder %s768, %s769
      %p781 = scmp.eq.s32.totalorder %s82, 1
      %p782 = por %p780, %p781
      %p784 = scmp.ne.s32.totalorder %s769, %s783
      %p785 = scmp.eq.s32.totalorder %s82, 0
      %p786 = por %p784, %p785
      %s787 = ssub.s32 %s76, %s83
      %p788 = scmp.eq.s32.totalorder %s787, 0
      %s790 = sadd.s32 %s789, 1
      %s791 = scalar_select %p788, %s789, %s790
      %p794 = pneg %p788
      %p795 = scmp.eq.s32.totalorder %s76, 1
      %p796 = por %p794, %p795
      %p797 = scmp.ne.s32.totalorder %s789, %s792
      %p798 = scmp.eq.s32.totalorder %s76, 0
      %p799 = por %p797, %p798
      %p800 = scmp.ne.s32.totalorder %s789, %s792
      %p801 = scmp.eq.s32.totalorder %s81, 1
      %p802 = por %p800, %p801
      %p803 = scmp.ne.s32.totalorder %s792, %s793
      %p804 = scmp.eq.s32.totalorder %s81, 0
      %p805 = por %p803, %p804
      %p806 = scmp.ne.s32.totalorder %s792, %s793
      %p807 = scmp.eq.s32.totalorder %s82, 1
      %p808 = por %p806, %p807
      %p810 = scmp.ne.s32.totalorder %s793, %s809
      %p811 = scmp.eq.s32.totalorder %s82, 0
      %p812 = por %p810, %p811
      %p813 = scmp.le.s32.totalorder 1, %s76
      %p814 = scmp.lt.s32.totalorder %s76, 3
      %p815 = pnand %p813, %p814
      %p816 = pneg %p815
      // Predicated region
      $region9: #{transformer_forward.1} parent=5 // pred_check
        _
      $region10: #{transformer_forward.1} parent=5 // pred_check_branch
        %818 = sbr.rel (%p815) target = $region12
      $region11: #{transformer_forward.1} parent=5 // pred_region
        %s819 = ssub.s32 %s76, 1
        // Predicated region
        $region13: #{transformer_forward.1} parent=11 // pred_check
          %p820 = pneg %p149
        $region14: #{transformer_forward.1} parent=11 // pred_check_branch
          %822 = sbr.rel (%p820) target = $region16
        $region15: #{transformer_forward.1} parent=11 // pred_region
          _
        $region16: #{transformer_forward.1} parent=11 // pred_fallthru
          _
        // Predicated region
        $region17: #{transformer_forward.1} parent=11 // pred_check
          %p823 = pneg %p170
        $region18: #{transformer_forward.1} parent=11 // pred_check_branch
          %825 = sbr.rel (%p823) target = $region20
        $region19: #{transformer_forward.1} parent=11 // pred_region
          _
        $region20: #{transformer_forward.1} parent=11 // pred_fallthru
          _
        // Predicated region
        $region21: #{transformer_forward.1} parent=11 // pred_check
          %p826 = pneg %p191
        $region22: #{transformer_forward.1} parent=11 // pred_check_branch
          %828 = sbr.rel (%p826) target = $region24
        $region23: #{transformer_forward.1} parent=11 // pred_region
          _
        $region24: #{transformer_forward.1} parent=11 // pred_fallthru
          _
        // Predicated region
        $region25: #{transformer_forward.1} parent=11 // pred_check
          %p829 = pneg %p212
        $region26: #{transformer_forward.1} parent=11 // pred_check_branch
          %831 = sbr.rel (%p829) target = $region28
        $region27: #{transformer_forward.1} parent=11 // pred_region
          _
        $region28: #{transformer_forward.1} parent=11 // pred_fallthru
          _
        // Predicated region
        $region29: #{transformer_forward.1} parent=11 // pred_check
          %p832 = pneg %p233
        $region30: #{transformer_forward.1} parent=11 // pred_check_branch
          %834 = sbr.rel (%p832) target = $region32
        $region31: #{transformer_forward.1} parent=11 // pred_region
          _
        $region32: #{transformer_forward.1} parent=11 // pred_fallthru
          _
        // Predicated region
        $region33: #{transformer_forward.1} parent=11 // pred_check
          %p835 = pneg %p254
        $region34: #{transformer_forward.1} parent=11 // pred_check_branch
          %837 = sbr.rel (%p835) target = $region36
        $region35: #{transformer_forward.1} parent=11 // pred_region
          _
        $region36: #{transformer_forward.1} parent=11 // pred_fallthru
          _
        // Predicated region
        $region37: #{transformer_forward.1} parent=11 // pred_check
          %p838 = pneg %p275
        $region38: #{transformer_forward.1} parent=11 // pred_check_branch
          %840 = sbr.rel (%p838) target = $region40
        $region39: #{transformer_forward.1} parent=11 // pred_region
          _
        $region40: #{transformer_forward.1} parent=11 // pred_fallthru
          _
        // Predicated region
        $region41: #{transformer_forward.1} parent=11 // pred_check
          %p841 = pneg %p296
        $region42: #{transformer_forward.1} parent=11 // pred_check_branch
          %843 = sbr.rel (%p841) target = $region44
        $region43: #{transformer_forward.1} parent=11 // pred_region
          _
        $region44: #{transformer_forward.1} parent=11 // pred_fallthru
          _
        // Predicated region
        $region45: #{transformer_forward.1} parent=11 // pred_check
          %p844 = pneg %p317
        $region46: #{transformer_forward.1} parent=11 // pred_check_branch
          %846 = sbr.rel (%p844) target = $region48
        $region47: #{transformer_forward.1} parent=11 // pred_region
          _
        $region48: #{transformer_forward.1} parent=11 // pred_fallthru
          _
        // Predicated region
        $region49: #{transformer_forward.1} parent=11 // pred_check
          %p847 = pneg %p338
        $region50: #{transformer_forward.1} parent=11 // pred_check_branch
          %849 = sbr.rel (%p847) target = $region52
        $region51: #{transformer_forward.1} parent=11 // pred_region
          _
        $region52: #{transformer_forward.1} parent=11 // pred_fallthru
          _
        // Predicated region
        $region53: #{transformer_forward.1} parent=11 // pred_check
          %p850 = pneg %p359
        $region54: #{transformer_forward.1} parent=11 // pred_check_branch
          %852 = sbr.rel (%p850) target = $region56
        $region55: #{transformer_forward.1} parent=11 // pred_region
          _
        $region56: #{transformer_forward.1} parent=11 // pred_fallthru
          _
        // Predicated region
        $region57: #{transformer_forward.1} parent=11 // pred_check
          %p853 = pneg %p380
        $region58: #{transformer_forward.1} parent=11 // pred_check_branch
          %855 = sbr.rel (%p853) target = $region60
        $region59: #{transformer_forward.1} parent=11 // pred_region
          _
        $region60: #{transformer_forward.1} parent=11 // pred_fallthru
          _
        // Predicated region
        $region61: #{transformer_forward.1} parent=11 // pred_check
          %p856 = pneg %p401
        $region62: #{transformer_forward.1} parent=11 // pred_check_branch
          %858 = sbr.rel (%p856) target = $region64
        $region63: #{transformer_forward.1} parent=11 // pred_region
          _
        $region64: #{transformer_forward.1} parent=11 // pred_fallthru
          _
        // Predicated region
        $region65: #{transformer_forward.1} parent=11 // pred_check
          %p859 = pneg %p422
        $region66: #{transformer_forward.1} parent=11 // pred_check_branch
          %861 = sbr.rel (%p859) target = $region68
        $region67: #{transformer_forward.1} parent=11 // pred_region
          _
        $region68: #{transformer_forward.1} parent=11 // pred_fallthru
          _
        // Predicated region
        $region69: #{transformer_forward.1} parent=11 // pred_check
          %p862 = pneg %p443
        $region70: #{transformer_forward.1} parent=11 // pred_check_branch
          %864 = sbr.rel (%p862) target = $region72
        $region71: #{transformer_forward.1} parent=11 // pred_region
          _
        $region72: #{transformer_forward.1} parent=11 // pred_fallthru
          _
        // Predicated region
        $region73: #{transformer_forward.1} parent=11 // pred_check
          %p865 = pneg %p464
        $region74: #{transformer_forward.1} parent=11 // pred_check_branch
          %867 = sbr.rel (%p865) target = $region76
        $region75: #{transformer_forward.1} parent=11 // pred_region
          _
        $region76: #{transformer_forward.1} parent=11 // pred_fallthru
          _
        // Predicated region
        $region77: #{transformer_forward.1} parent=11 // pred_check
          %p868 = pneg %p485
        $region78: #{transformer_forward.1} parent=11 // pred_check_branch
          %870 = sbr.rel (%p868) target = $region80
        $region79: #{transformer_forward.1} parent=11 // pred_region
          _
        $region80: #{transformer_forward.1} parent=11 // pred_fallthru
          _
        // Predicated region
        $region81: #{transformer_forward.1} parent=11 // pred_check
          %p871 = pneg %p506
        $region82: #{transformer_forward.1} parent=11 // pred_check_branch
          %873 = sbr.rel (%p871) target = $region84
        $region83: #{transformer_forward.1} parent=11 // pred_region
          _
        $region84: #{transformer_forward.1} parent=11 // pred_fallthru
          _
        // Predicated region
        $region85: #{transformer_forward.1} parent=11 // pred_check
          %p874 = pneg %p527
        $region86: #{transformer_forward.1} parent=11 // pred_check_branch
          %876 = sbr.rel (%p874) target = $region88
        $region87: #{transformer_forward.1} parent=11 // pred_region
          _
        $region88: #{transformer_forward.1} parent=11 // pred_fallthru
          _
        // Predicated region
        $region89: #{transformer_forward.1} parent=11 // pred_check
          %p877 = pneg %p548
        $region90: #{transformer_forward.1} parent=11 // pred_check_branch
          %879 = sbr.rel (%p877) target = $region92
        $region91: #{transformer_forward.1} parent=11 // pred_region
          _
        $region92: #{transformer_forward.1} parent=11 // pred_fallthru
          _
        // Predicated region
        $region93: #{transformer_forward.1} parent=11 // pred_check
          %p880 = pneg %p569
        $region94: #{transformer_forward.1} parent=11 // pred_check_branch
          %882 = sbr.rel (%p880) target = $region96
        $region95: #{transformer_forward.1} parent=11 // pred_region
          _
        $region96: #{transformer_forward.1} parent=11 // pred_fallthru
          _
        // Predicated region
        $region97: #{transformer_forward.1} parent=11 // pred_check
          %p883 = pneg %p590
        $region98: #{transformer_forward.1} parent=11 // pred_check_branch
          %885 = sbr.rel (%p883) target = $region100
        $region99: #{transformer_forward.1} parent=11 // pred_region
          _
        $region100: #{transformer_forward.1} parent=11 // pred_fallthru
          _
        // Predicated region
        $region101: #{transformer_forward.1} parent=11 // pred_check
          %p886 = pneg %p611
        $region102: #{transformer_forward.1} parent=11 // pred_check_branch
          %888 = sbr.rel (%p886) target = $region104
        $region103: #{transformer_forward.1} parent=11 // pred_region
          _
        $region104: #{transformer_forward.1} parent=11 // pred_fallthru
          _
        // Predicated region
        $region105: #{transformer_forward.1} parent=11 // pred_check
          %p889 = pneg %p632
        $region106: #{transformer_forward.1} parent=11 // pred_check_branch
          %891 = sbr.rel (%p889) target = $region108
        $region107: #{transformer_forward.1} parent=11 // pred_region
          _
        $region108: #{transformer_forward.1} parent=11 // pred_fallthru
          _
        // Predicated region
        $region109: #{transformer_forward.1} parent=11 // pred_check
          %p892 = pneg %p653
        $region110: #{transformer_forward.1} parent=11 // pred_check_branch
          %894 = sbr.rel (%p892) target = $region112
        $region111: #{transformer_forward.1} parent=11 // pred_region
          _
        $region112: #{transformer_forward.1} parent=11 // pred_fallthru
          _
        // Predicated region
        $region113: #{transformer_forward.1} parent=11 // pred_check
          %p895 = pneg %p674
        $region114: #{transformer_forward.1} parent=11 // pred_check_branch
          %897 = sbr.rel (%p895) target = $region116
        $region115: #{transformer_forward.1} parent=11 // pred_region
          _
        $region116: #{transformer_forward.1} parent=11 // pred_fallthru
          _
        // Predicated region
        $region117: #{transformer_forward.1} parent=11 // pred_check
          %p898 = pneg %p695
        $region118: #{transformer_forward.1} parent=11 // pred_check_branch
          %900 = sbr.rel (%p898) target = $region120
        $region119: #{transformer_forward.1} parent=11 // pred_region
          _
        $region120: #{transformer_forward.1} parent=11 // pred_fallthru
          _
        // Predicated region
        $region121: #{transformer_forward.1} parent=11 // pred_check
          %p901 = pneg %p716
        $region122: #{transformer_forward.1} parent=11 // pred_check_branch
          %903 = sbr.rel (%p901) target = $region124
        $region123: #{transformer_forward.1} parent=11 // pred_region
          _
        $region124: #{transformer_forward.1} parent=11 // pred_fallthru
          _
        // Predicated region
        $region125: #{transformer_forward.1} parent=11 // pred_check
          %p904 = pneg %p737
        $region126: #{transformer_forward.1} parent=11 // pred_check_branch
          %906 = sbr.rel (%p904) target = $region128
        $region127: #{transformer_forward.1} parent=11 // pred_region
          _
        $region128: #{transformer_forward.1} parent=11 // pred_fallthru
          _
        // Predicated region
        $region129: #{transformer_forward.1} parent=11 // pred_check
          %p907 = pneg %p758
        $region130: #{transformer_forward.1} parent=11 // pred_check_branch
          %909 = sbr.rel (%p907) target = $region132
        $region131: #{transformer_forward.1} parent=11 // pred_region
          _
        $region132: #{transformer_forward.1} parent=11 // pred_fallthru
          _
        // Predicated region
        $region133: #{transformer_forward.1} parent=11 // pred_check
          %p910 = pneg %p779
        $region134: #{transformer_forward.1} parent=11 // pred_check_branch
          %912 = sbr.rel (%p910) target = $region136
        $region135: #{transformer_forward.1} parent=11 // pred_region
          _
        $region136: #{transformer_forward.1} parent=11 // pred_fallthru
          _
      $region12: #{transformer_forward.1} parent=5 // pred_fallthru
        _
      %p913 = scmp.lt.s32.totalorder %s76, 2
      // Predicated region
      $region137: #{transformer_forward.1} parent=5 // pred_check
        %p914 = pneg %p913
      $region138: #{transformer_forward.1} parent=5 // pred_check_branch
        %916 = sbr.rel (%p914) target = $region140
      $region139: #{transformer_forward.1} parent=5 // pred_region
        // Predicated region
        $region141: #{transformer_forward.1} parent=139 // pred_check
          %p917 = pneg %p96
        $region142: #{transformer_forward.1} parent=139 // pred_check_branch
          %919 = sbr.rel (%p917) target = $region144
        $region143: #{transformer_forward.1} parent=139 // pred_region
          %p920 = scmp.lt.s32.totalorder %s76, 1
          %s921 = scalar_select %p920, %s76, 1
          %s922 = smul.addr %s921, 8
          %s923 = scalar_lea.vmem %s1, %s922
        $region144: #{transformer_forward.1} parent=139 // pred_fallthru
          _
        // Predicated region
        $region145: #{transformer_forward.1} parent=139 // pred_check
          %p924 = pneg %p122
        $region146: #{transformer_forward.1} parent=139 // pred_check_branch
          %926 = sbr.rel (%p924) target = $region148
        $region147: #{transformer_forward.1} parent=139 // pred_region
          %p927 = scmp.lt.s32.totalorder %s76, 1
          %s928 = scalar_select %p927, %s76, 1
          %s929 = smul.addr %s928, 8
          %s930 = scalar_lea.vmem %s3, %s929
        $region148: #{transformer_forward.1} parent=139 // pred_fallthru
          _
      $region140: #{transformer_forward.1} parent=5 // pred_fallthru
        _
      %p931 = scmp.le.s32.totalorder 1, %s76
      %p932 = scmp.lt.s32.totalorder %s76, 3
      %p933 = pnand %p931, %p932
      %p934 = pneg %p933
      // Predicated region
      $region149: #{transformer_forward.1} parent=5 // pred_check
        _
      $region150: #{transformer_forward.1} parent=5 // pred_check_branch
        %936 = sbr.rel (%p933) target = $region152
      $region151: #{transformer_forward.1} parent=5 // pred_region
        %s937 = ssub.s32 %s76, 1
        %p938 = scmp.lt.s32.totalorder %s81, 1
        %s939 = scalar_select %p938, %s81, 1
        %s940 = smul.addr %s939, 8
        %s941 = scalar_lea.vmem %s1, %s940
        %p942 = pneg %p102
        %p943 = pneg %p99
        %p944 = scmp.lt.s32.totalorder %s81, 1
        %s945 = scalar_select %p944, %s81, 1
        %s946 = smul.addr %s945, 8
        %s947 = scalar_lea.vmem %s3, %s946
        %p948 = pneg %p128
        %p949 = pneg %p125
        %p950 = pneg %p149
        %p951 = pneg %p146
        %p952 = pneg %p170
        %p953 = pneg %p167
        %p954 = pneg %p191
        %p955 = pneg %p188
        %p956 = pneg %p212
        %p957 = pneg %p209
        %p958 = pneg %p233
        %p959 = pneg %p230
        %p960 = pneg %p254
        %p961 = pneg %p251
        %p962 = pneg %p275
        %p963 = pneg %p272
        %p964 = pneg %p296
        %p965 = pneg %p293
        %p966 = pneg %p317
        %p967 = pneg %p314
        %p968 = pneg %p338
        %p969 = pneg %p335
        %p970 = pneg %p359
        %p971 = pneg %p356
        %p972 = pneg %p380
        %p973 = pneg %p377
        %p974 = pneg %p401
        %p975 = pneg %p398
        %p976 = pneg %p422
        %p977 = pneg %p419
        %p978 = pneg %p443
        %p979 = pneg %p440
        %p980 = pneg %p464
        %p981 = pneg %p461
        %p982 = pneg %p485
        %p983 = pneg %p482
        %p984 = pneg %p506
        %p985 = pneg %p503
        %p986 = pneg %p527
        %p987 = pneg %p524
        %p988 = pneg %p548
        %p989 = pneg %p545
        %p990 = pneg %p569
        %p991 = pneg %p566
        %p992 = pneg %p590
        %p993 = pneg %p587
        %p994 = pneg %p611
        %p995 = pneg %p608
        %p996 = pneg %p632
        %p997 = pneg %p629
        %p998 = pneg %p653
        %p999 = pneg %p650
        %p1000 = pneg %p674
        %p1001 = pneg %p671
        %p1002 = pneg %p695
        %p1003 = pneg %p692
        %p1004 = pneg %p716
        %p1005 = pneg %p713
        %p1006 = pneg %p737
        %p1007 = pneg %p734
        %p1008 = pneg %p758
        %p1009 = pneg %p755
        %p1010 = pneg %p779
        %p1011 = pneg %p776
        %p1012 = pneg %p805
        %p1013 = pneg %p802
        %s1014 = sand.u32 %s792, 1
        %s1015 = scalar_lea.sflag [#allocation3], %s1014
        %s1016 = sand.u32 %s792, 1
        %s1017 = smul.addr %s1016, 8
        %s1018 = scalar_lea.vmem [#allocation2], %s1017
        %p1019 = scmp.lt.s32.totalorder %s81, 1
        %s1020 = scalar_select %p1019, %s81, 1
        %s1021 = smul.addr %s1020, 8
        %s1022 = scalar_lea.vmem %s1, %s1021
        %p1023 = scmp.lt.s32.totalorder %s81, 1
        %s1024 = scalar_select %p1023, %s81, 1
        %s1025 = smul.addr %s1024, 8
        %s1026 = scalar_lea.vmem %s3, %s1025
        %v1028 = vld [vmem:[%s5] sm:$0xff]
        %v1029 = vld [vmem:[%s1022] sm:$0xff]
        %v1030 = vld [vmem:[%s7] sm:$0xf]
        %v1031 = vld [vmem:[%s7 + $0x4] sm:$0xf]
        %v1032 = vld [vmem:[%s7 + $0x8] sm:$0xf]
        %v1033 = vld [vmem:[%s7 + $0xc] sm:$0xf]
        %v1034 = vld [vmem:[%s9] sm:$0x1]
        %v1035 = vld [vmem:[%s11] sm:$0xf]
        %v1036 = vld [vmem:[%s11 + $0x4] sm:$0xf]
        %v1037 = vld [vmem:[%s11 + $0x8] sm:$0xf]
        %v1038 = vld [vmem:[%s11 + $0xc] sm:$0xf]
        %v1039 = vld [vmem:[%s13] sm:$0x1]
        %v1040 = vpack.c.bf16 %v1029, %v1029
        %v1042 = vperm.slane %v1034, 0
        %v1048 = vunpack.c.l.b16 %v1030
        %v1049 = vunpack.c.l.b16 %v1031
        %v1050 = vunpack.c.l.b16 %v1032
        %v1051 = vunpack.c.l.b16 %v1033
        %v1052 = vpack.c.b16 %v1049, %v1048
        %v1053 = vpack.c.b16 %v1051, %v1050
        %vm1056 = vcmask 261120
        %v1058 = vsel %vm1056, %v1040, 0
        %1060 = vmatpush.bf16.msra.mxu0 0
        %1061 = vmatpush.bf16.msra.mxu0 0
        %1062 = vmatpush.bf16.msra.mxu0 0
        %1063 = vmatpush.bf16.msra.mxu0 0
        %1064 = vmatpush.bf16.msra.mxu0 0
        %1065 = vmatpush.bf16.msra.mxu0 0
        %1066 = vmatpush.bf16.msra.mxu0 %v1053
        %1067 = vmatpush.bf16.msra.mxu0 %v1052
        %1068 = vmatmul.bf16.gmra.mxu0 %v1058
        %v1069 = vpop.f32.mrf.mxu0
        %v1070 = vadd.f32 %v1042, %v1069
        %v1071 = vpop.f32.mrf.mxu0
        %1072 = vdwg.mxu0
        %v1074 = vperm.slane %v1039, 0
        %v1076 = vadd.f32 %v1074, 0.0
        %v1077 = vpack.c.bf16 %v1070, %v1070
        %1079 = vrot.lane.b32.xlu0 %v1077, 96
        %v1080 = vpop.permute.xlu0 %1079
        %vm1081 = vcmask 130048
        %v1083 = vsel %vm1081, %v1077, 0
        %v1086 = vsel %vm1081, %v1080, 0
        %1088 = vmatpush.bf16.xpose.msra.mxu0 0
        %1089 = vmatpush.bf16.xpose.msra.mxu0 0
        %1090 = vmatpush.bf16.xpose.msra.mxu0 0
        %1091 = vmatpush.bf16.xpose.msra.mxu0 0
        %1092 = vmatpush.bf16.xpose.msra.mxu0 0
        %1093 = vmatpush.bf16.xpose.msra.mxu0 0
        %1094 = vmatpush.bf16.xpose.msra.mxu0 0
        %1095 = vmatpush.bf16.xpose.msra.mxu0 %v1086
        %1096 = vmatmul.bf16.gmra.mxu0 %v1083
        %v1097 = vpop.f32.mrf.mxu0
        %v1098 = vadd.f32 0.0, %v1097
        %v1099 = vpop.f32.mrf.mxu0
        %1100 = vdwg.mxu0
        %v1101 = vmul.f32 %v1098, 0.25
        %vm1102 = vcmask 64512
        %v1103 = vsel %vm1102, %v1101, -inf
        %1104 = vmax.xlane.f32.xlu0 %v1103
        %v1105 = vpop.xlane.xlu0 %1104
        %v1106 = vsub.f32 %v1101, %v1105
        %v1107 = vmul.f32 %v1106, 1.442695
        %v1108 = vpow.pop %v1107
        %v1109 = vsel %vm1102, %v1108, 0.0
        %1110 = vadd.xlane.f32.xlu0 %v1109
        %v1111 = vpop.xlane.xlu0 %1110
        %v1112 = vrcp.pop %v1111
        %v1113 = vmul.f32 %v1111, %v1112
        %v1114 = vsub.f32 1.0, %v1113
        %v1115 = vmul.f32 %v1112, %v1114
        %v1116 = vadd.f32 %v1112, %v1115
        %vm1117 = vweird.f32 %v1111
        %vm1118 = vweird.f32 %v1112
        %vm1119 = vmor %vm1117, %vm1118
        %v1120 = vsel %vm1119, %v1112, %v1116
        %v1121 = vand.u32 2147483647, %v1111
        %vm1122 = vcmp.eq.f32.partialorder %v1121, 8.507059e+37
        %v1123 = vand.u32 %v1111, 2147483648
        %v1124 = vor.u32 1.1754944e-38, %v1123
        %v1125 = vsel %vm1122, %v1124, %v1120
        %v1126 = vmul.f32 %v1108, %v1125
        %v1127 = vpack.c.bf16 %v1126, %v1126
        %1128 = vrot.lane.b32.xlu0 %v1077, 64
        %v1129 = vpop.permute.xlu0 %1128
        %v1131 = vsel %vm1102, %v1127, 0
        %vm1133 = vcmask 1043456
        %v1135 = vsel %vm1133, %v1129, 0
        %1137 = vmatpush.bf16.msra.mxu0 0
        %1138 = vmatpush.bf16.msra.mxu0 0
        %1139 = vmatpush.bf16.msra.mxu0 0
        %1140 = vmatpush.bf16.msra.mxu0 0
        %1141 = vmatpush.bf16.msra.mxu0 0
        %1142 = vmatpush.bf16.msra.mxu0 0
        %1143 = vmatpush.bf16.msra.mxu0 0
        %1144 = vmatpush.bf16.msra.mxu0 %v1135
        %1145 = vmatmul.bf16.gmra.mxu0 %v1131
        %v1146 = vpop.f32.mrf.mxu0
        %v1147 = vadd.f32 0.0, %v1146
        %v1148 = vpop.f32.mrf.mxu0
        %1149 = vdwg.mxu0
        %v1150 = vpack.c.bf16 %v1147, %v1147
        %v1153 = vunpack.c.l.b16 %v1035
        %v1154 = vunpack.c.l.b16 %v1036
        %v1155 = vpack.c.b16 %v1154, %v1153
        %v1158 = vsel %vm1081, %v1150, 0
        %1160 = vmatpush.bf16.msra.mxu0 0
        %1161 = vmatpush.bf16.msra.mxu0 0
        %1162 = vmatpush.bf16.msra.mxu0 0
        %1163 = vmatpush.bf16.msra.mxu0 0
        %1164 = vmatpush.bf16.msra.mxu0 0
        %1165 = vmatpush.bf16.msra.mxu0 0
        %1166 = vmatpush.bf16.msra.mxu0 0
        %1167 = vmatpush.bf16.msra.mxu0 %v1155
        %1168 = vmatmul.bf16.gmra.mxu0 %v1158
        %v1169 = vpop.f32.mrf.mxu0
        %v1170 = vadd.f32 0.0, %v1169
        %v1171 = vpop.f32.mrf.mxu0
        %1172 = vdwg.mxu0
        %v1173 = vadd.f32 %v1076, %v1170
        %1174 = vrot.lane.b32.xlu0 %v1077, 112
        %v1175 = vpop.permute.xlu0 %1174
        %1176 = vrot.lane.b32.xlu0 %v1077, 80
        %v1177 = vpop.permute.xlu0 %1176
        %v1179 = vsel %vm1081, %v1175, 0
        %v1182 = vsel %vm1081, %v1177, 0
        %1184 = vmatpush.bf16.xpose.msra.mxu0 0
        %1185 = vmatpush.bf16.xpose.msra.mxu0 0
        %1186 = vmatpush.bf16.xpose.msra.mxu0 0
        %1187 = vmatpush.bf16.xpose.msra.mxu0 0
        %1188 = vmatpush.bf16.xpose.msra.mxu0 0
        %1189 = vmatpush.bf16.xpose.msra.mxu0 0
        %1190 = vmatpush.bf16.xpose.msra.mxu0 0
        %1191 = vmatpush.bf16.xpose.msra.mxu0 %v1182
        %1192 = vmatmul.bf16.gmra.mxu0 %v1179
        %v1193 = vpop.f32.mrf.mxu0
        %v1194 = vadd.f32 0.0, %v1193
        %v1195 = vpop.f32.mrf.mxu0
        %1196 = vdwg.mxu0
        %v1197 = vmul.f32 %v1194, 0.25
        %v1198 = vsel %vm1102, %v1197, -inf
        %1199 = vmax.xlane.f32.xlu0 %v1198
        %v1200 = vpop.xlane.xlu0 %1199
        %v1201 = vsub.f32 %v1197, %v1200
        %v1202 = vmul.f32 %v1201, 1.442695
        %v1203 = vpow.pop %v1202
        %v1204 = vsel %vm1102, %v1203, 0.0
        %1205 = vadd.xlane.f32.xlu0 %v1204
        %v1206 = vpop.xlane.xlu0 %1205
        %v1207 = vrcp.pop %v1206
        %v1208 = vmul.f32 %v1206, %v1207
        %v1209 = vsub.f32 1.0, %v1208
        %v1210 = vmul.f32 %v1207, %v1209
        %v1211 = vadd.f32 %v1207, %v1210
        %vm1212 = vweird.f32 %v1206
        %vm1213 = vweird.f32 %v1207
        %vm1214 = vmor %vm1212, %vm1213
        %v1215 = vsel %vm1214, %v1207, %v1211
        %v1216 = vand.u32 2147483647, %v1206
        %vm1217 = vcmp.eq.f32.partialorder %v1216, 8.507059e+37
        %v1218 = vand.u32 %v1206, 2147483648
        %v1219 = vor.u32 1.1754944e-38, %v1218
        %v1220 = vsel %vm1217, %v1219, %v1215
        %v1221 = vmul.f32 %v1203, %v1220
        %v1222 = vpack.c.bf16 %v1221, %v1221
        %1223 = vrot.lane.b32.xlu0 %v1077, 48
        %v1224 = vpop.permute.xlu0 %1223
        %v1226 = vsel %vm1102, %v1222, 0
        %v1229 = vsel %vm1133, %v1224, 0
        %1231 = vmatpush.bf16.msra.mxu0 0
        %1232 = vmatpush.bf16.msra.mxu0 0
        %1233 = vmatpush.bf16.msra.mxu0 0
        %1234 = vmatpush.bf16.msra.mxu0 0
        %1235 = vmatpush.bf16.msra.mxu0 0
        %1236 = vmatpush.bf16.msra.mxu0 0
        %1237 = vmatpush.bf16.msra.mxu0 0
        %1238 = vmatpush.bf16.msra.mxu0 %v1229
        %1239 = vmatmul.bf16.gmra.mxu0 %v1226
        %v1240 = vpop.f32.mrf.mxu0
        %v1241 = vadd.f32 0.0, %v1240
        %v1242 = vpop.f32.mrf.mxu0
        %1243 = vdwg.mxu0
        %v1244 = vpack.c.bf16 %v1241, %v1241
        %v1247 = vunpack.c.l.b16 %v1037
        %v1248 = vunpack.c.l.b16 %v1038
        %v1249 = vpack.c.b16 %v1248, %v1247
        %v1252 = vsel %vm1081, %v1244, 0
        %1254 = vmatpush.bf16.msra.mxu0 0
        %1255 = vmatpush.bf16.msra.mxu0 0
        %1256 = vmatpush.bf16.msra.mxu0 0
        %1257 = vmatpush.bf16.msra.mxu0 0
        %1258 = vmatpush.bf16.msra.mxu0 0
        %1259 = vmatpush.bf16.msra.mxu0 0
        %1260 = vmatpush.bf16.msra.mxu0 0
        %1261 = vmatpush.bf16.msra.mxu0 %v1249
        %1262 = vmatmul.bf16.gmra.mxu0 %v1252
        %v1263 = vpop.f32.mrf.mxu0
        %v1264 = vadd.f32 0.0, %v1263
        %v1265 = vpop.f32.mrf.mxu0
        %1266 = vdwg.mxu0
        %v1267 = vadd.f32 %v1173, %v1264
        %v1268 = vadd.f32 %v1029, %v1267
        %v1269 = vld [vmem:[%s15] sm:$0x1]
        %v1270 = vld [vmem:[%s17] sm:$0x1]
        %v1271 = vsel %vm1056, %v1268, 0.0
        %1272 = vadd.xlane.f32.xlu0 %v1271
        %v1273 = vpop.xlane.xlu0 %1272
        %v1274 = vrcp.pop 32.0
        %v1275 = vmul.f32 32.0, %v1274
        %v1276 = vsub.f32 1.0, %v1275
        %v1277 = vmul.f32 %v1274, %v1276
        %v1278 = vadd.f32 %v1274, %v1277
        %vm1279 = vweird.f32 %v1274
        %v1280 = vsel %vm1279, %v1274, %v1278
        %v1281 = vmul.f32 %v1273, %v1280
        %v1282 = vsub.f32 %v1268, %v1281
        %v1283 = vmul.f32 %v1282, %v1282
        %v1284 = vsel %vm1056, %v1283, 0.0
        %1285 = vadd.xlane.f32.xlu0 %v1284
        %v1286 = vpop.xlane.xlu0 %1285
        %v1287 = vmul.f32 %v1286, %v1280
        %v1288 = vadd.f32 %v1287, 1e-05
        %v1289 = vrsqrt.pop %v1288
        %v1290 = vmul.f32 %v1289, %v1288
        %v1291 = vmul.f32 %v1290, %v1289
        %v1292 = vmul.f32 0.5, %v1291
        %v1293 = vsub.f32 1.5, %v1292
        %v1294 = vmul.f32 %v1289, %v1293
        %vm1295 = vweird.f32 %v1288
        %vm1296 = vweird.f32 %v1289
        %vm1297 = vmor %vm1295, %vm1296
        %v1298 = vsel %vm1297, %v1289, %v1294
        %v1299 = vmul.f32 %v1282, %v1298
        %v1301 = vperm.slane %v1269, 0
        %v1303 = vmul.f32 %v1299, %v1301
        %v1305 = vperm.slane %v1270, 0
        %v1307 = vadd.f32 %v1303, %v1305
        %v1308 = vld [vmem:[%s19] sm:$0xf]
        %v1309 = vld [vmem:[%s19 + $0x4] sm:$0xf]
        %v1310 = vld [vmem:[%s19 + $0x8] sm:$0xf]
        %v1311 = vld [vmem:[%s19 + $0xc] sm:$0xf]
        %v1312 = vld [vmem:[%s21] sm:$0x1]
        %v1313 = vpack.c.bf16 %v1307, %v1307
        %v1315 = vperm.slane %v1312, 0
        %v1321 = vunpack.c.l.b16 %v1308
        %v1322 = vunpack.c.l.b16 %v1309
        %v1323 = vunpack.c.l.b16 %v1310
        %v1324 = vunpack.c.l.b16 %v1311
        %v1325 = vpack.c.b16 %v1322, %v1321
        %v1326 = vpack.c.b16 %v1324, %v1323
        %v1330 = vsel %vm1056, %v1313, 0
        %1332 = vmatpush.bf16.msra.mxu0 0
        %1333 = vmatpush.bf16.msra.mxu0 0
        %1334 = vmatpush.bf16.msra.mxu0 0
        %1335 = vmatpush.bf16.msra.mxu0 0
        %1336 = vmatpush.bf16.msra.mxu0 0
        %1337 = vmatpush.bf16.msra.mxu0 0
        %1338 = vmatpush.bf16.msra.mxu0 %v1326
        %1339 = vmatpush.bf16.msra.mxu0 %v1325
        %1340 = vmatmul.bf16.gmra.mxu0 %v1330
        %v1341 = vpop.f32.mrf.mxu0
        %v1342 = vadd.f32 %v1315, %v1341
        %v1343 = vpop.f32.mrf.mxu0
        %1344 = vdwg.mxu0
        %v1345 = vmax.f32 %v1342, 0.0
        %v1346 = vld [vmem:[%s23] sm:$0xf]
        %v1347 = vld [vmem:[%s23 + $0x4] sm:$0xf]
        %v1348 = vld [vmem:[%s23 + $0x8] sm:$0xf]
        %v1349 = vld [vmem:[%s23 + $0xc] sm:$0xf]
        %v1350 = vld [vmem:[%s23 + $0x10] sm:$0xf]
        %v1351 = vld [vmem:[%s23 + $0x14] sm:$0xf]
        %v1352 = vld [vmem:[%s23 + $0x18] sm:$0xf]
        %v1353 = vld [vmem:[%s23 + $0x1c] sm:$0xf]
        %v1354 = vld [vmem:[%s25] sm:$0x1]
        %v1355 = vpack.c.bf16 %v1345, %v1345
        %v1357 = vperm.slane %v1354, 0
        %v1367 = vunpack.c.l.b16 %v1346
        %v1368 = vunpack.c.l.b16 %v1347
        %v1369 = vunpack.c.l.b16 %v1348
        %v1370 = vunpack.c.l.b16 %v1349
        %v1371 = vunpack.c.l.b16 %v1350
        %v1372 = vunpack.c.l.b16 %v1351
        %v1373 = vunpack.c.l.b16 %v1352
        %v1374 = vunpack.c.l.b16 %v1353
        %v1375 = vpack.c.b16 %v1368, %v1367
        %v1376 = vpack.c.b16 %v1370, %v1369
        %v1377 = vpack.c.b16 %v1372, %v1371
        %v1378 = vpack.c.b16 %v1374, %v1373
        %vm1383 = vcmask 523264
        %v1385 = vsel %vm1383, %v1355, 0
        %1387 = vmatpush.bf16.msra.mxu0 0
        %1388 = vmatpush.bf16.msra.mxu0 0
        %1389 = vmatpush.bf16.msra.mxu0 0
        %1390 = vmatpush.bf16.msra.mxu0 0
        %1391 = vmatpush.bf16.msra.mxu0 %v1378
        %1392 = vmatpush.bf16.msra.mxu0 %v1377
        %1393 = vmatpush.bf16.msra.mxu0 %v1376
        %1394 = vmatpush.bf16.msra.mxu0 %v1375
        %1395 = vmatmul.bf16.gmra.mxu0 %v1385
        %v1396 = vpop.f32.mrf.mxu0
        %v1397 = vadd.f32 %v1357, %v1396
        %v1398 = vpop.f32.mrf.mxu0
        %1399 = vdwg.mxu0
        %v1400 = vadd.f32 %v1307, %v1397
        %v1401 = vld [vmem:[%s27] sm:$0x1]
        %v1402 = vld [vmem:[%s29] sm:$0x1]
        %v1403 = vsel %vm1056, %v1400, 0.0
        %1404 = vadd.xlane.f32.xlu0 %v1403
        %v1405 = vpop.xlane.xlu0 %1404
        %v1406 = vmul.f32 %v1405, %v1280
        %v1407 = vsub.f32 %v1400, %v1406
        %v1408 = vmul.f32 %v1407, %v1407
        %v1409 = vsel %vm1056, %v1408, 0.0
        %1410 = vadd.xlane.f32.xlu0 %v1409
        %v1411 = vpop.xlane.xlu0 %1410
        %v1412 = vmul.f32 %v1411, %v1280
        %v1413 = vadd.f32 %v1412, 1e-05
        %v1414 = vrsqrt.pop %v1413
        %v1415 = vmul.f32 %v1414, %v1413
        %v1416 = vmul.f32 %v1415, %v1414
        %v1417 = vmul.f32 0.5, %v1416
        %v1418 = vsub.f32 1.5, %v1417
        %v1419 = vmul.f32 %v1414, %v1418
        %vm1420 = vweird.f32 %v1413
        %vm1421 = vweird.f32 %v1414
        %vm1422 = vmor %vm1420, %vm1421
        %v1423 = vsel %vm1422, %v1414, %v1419
        %v1424 = vmul.f32 %v1407, %v1423
        %v1426 = vperm.slane %v1401, 0
        %v1428 = vmul.f32 %v1424, %v1426
        %v1430 = vperm.slane %v1402, 0
        %v1432 = vadd.f32 %v1428, %v1430
        %s1433 = scalar_lea.vmem %s7, 16
        %v1434 = vld [vmem:[%s1433] sm:$0xf]
        %v1435 = vld [vmem:[%s1433 + $0x4] sm:$0xf]
        %v1436 = vld [vmem:[%s1433 + $0x8] sm:$0xf]
        %v1437 = vld [vmem:[%s1433 + $0xc] sm:$0xf]
        %s1438 = scalar_lea.vmem %s9, 1
        %v1439 = vld [vmem:[%s1438] sm:$0x1]
        %s1440 = scalar_lea.vmem %s11, 16
        %v1441 = vld [vmem:[%s1440] sm:$0xf]
        %v1442 = vld [vmem:[%s1440 + $0x4] sm:$0xf]
        %v1443 = vld [vmem:[%s1440 + $0x8] sm:$0xf]
        %v1444 = vld [vmem:[%s1440 + $0xc] sm:$0xf]
        %s1445 = scalar_lea.vmem %s13, 1
        %v1446 = vld [vmem:[%s1445] sm:$0x1]
        %v1447 = vpack.c.bf16 %v1432, %v1432
        %v1449 = vperm.slane %v1439, 0
        %v1455 = vunpack.c.l.b16 %v1434
        %v1456 = vunpack.c.l.b16 %v1435
        %v1457 = vunpack.c.l.b16 %v1436
        %v1458 = vunpack.c.l.b16 %v1437
        %v1459 = vpack.c.b16 %v1456, %v1455
        %v1460 = vpack.c.b16 %v1458, %v1457
        %v1464 = vsel %vm1056, %v1447, 0
        %1466 = vmatpush.bf16.msra.mxu0 0
        %1467 = vmatpush.bf16.msra.mxu0 0
        %1468 = vmatpush.bf16.msra.mxu0 0
        %1469 = vmatpush.bf16.msra.mxu0 0
        %1470 = vmatpush.bf16.msra.mxu0 0
        %1471 = vmatpush.bf16.msra.mxu0 0
        %1472 = vmatpush.bf16.msra.mxu0 %v1460
        %1473 = vmatpush.bf16.msra.mxu0 %v1459
        %1474 = vmatmul.bf16.gmra.mxu0 %v1464
        %v1475 = vpop.f32.mrf.mxu0
        %v1476 = vadd.f32 %v1449, %v1475
        %v1477 = vpop.f32.mrf.mxu0
        %1478 = vdwg.mxu0
        %v1480 = vperm.slane %v1446, 0
        %v1482 = vadd.f32 %v1480, 0.0
        %v1483 = vpack.c.bf16 %v1476, %v1476
        %1485 = vrot.lane.b32.xlu0 %v1483, 96
        %v1486 = vpop.permute.xlu0 %1485
        %v1488 = vsel %vm1081, %v1483, 0
        %v1491 = vsel %vm1081, %v1486, 0
        %1493 = vmatpush.bf16.xpose.msra.mxu0 0
        %1494 = vmatpush.bf16.xpose.msra.mxu0 0
        %1495 = vmatpush.bf16.xpose.msra.mxu0 0
        %1496 = vmatpush.bf16.xpose.msra.mxu0 0
        %1497 = vmatpush.bf16.xpose.msra.mxu0 0
        %1498 = vmatpush.bf16.xpose.msra.mxu0 0
        %1499 = vmatpush.bf16.xpose.msra.mxu0 0
        %1500 = vmatpush.bf16.xpose.msra.mxu0 %v1491
        %1501 = vmatmul.bf16.gmra.mxu0 %v1488
        %v1502 = vpop.f32.mrf.mxu0
        %v1503 = vadd.f32 0.0, %v1502
        %v1504 = vpop.f32.mrf.mxu0
        %1505 = vdwg.mxu0
        %v1506 = vmul.f32 %v1503, 0.25
        %v1507 = vsel %vm1102, %v1506, -inf
        %1508 = vmax.xlane.f32.xlu0 %v1507
        %v1509 = vpop.xlane.xlu0 %1508
        %v1510 = vsub.f32 %v1506, %v1509
        %v1511 = vmul.f32 %v1510, 1.442695
        %v1512 = vpow.pop %v1511
        %v1513 = vsel %vm1102, %v1512, 0.0
        %1514 = vadd.xlane.f32.xlu0 %v1513
        %v1515 = vpop.xlane.xlu0 %1514
        %v1516 = vrcp.pop %v1515
        %v1517 = vmul.f32 %v1515, %v1516
        %v1518 = vsub.f32 1.0, %v1517
        %v1519 = vmul.f32 %v1516, %v1518
        %v1520 = vadd.f32 %v1516, %v1519
        %vm1521 = vweird.f32 %v1515
        %vm1522 = vweird.f32 %v1516
        %vm1523 = vmor %vm1521, %vm1522
        %v1524 = vsel %vm1523, %v1516, %v1520
        %v1525 = vand.u32 2147483647, %v1515
        %vm1526 = vcmp.eq.f32.partialorder %v1525, 8.507059e+37
        %v1527 = vand.u32 %v1515, 2147483648
        %v1528 = vor.u32 1.1754944e-38, %v1527
        %v1529 = vsel %vm1526, %v1528, %v1524
        %v1530 = vmul.f32 %v1512, %v1529
        %v1531 = vpack.c.bf16 %v1530, %v1530
        %1532 = vrot.lane.b32.xlu0 %v1483, 64
        %v1533 = vpop.permute.xlu0 %1532
        %v1535 = vsel %vm1102, %v1531, 0
        %v1538 = vsel %vm1133, %v1533, 0
        %1540 = vmatpush.bf16.msra.mxu0 0
        %1541 = vmatpush.bf16.msra.mxu0 0
        %1542 = vmatpush.bf16.msra.mxu0 0
        %1543 = vmatpush.bf16.msra.mxu0 0
        %1544 = vmatpush.bf16.msra.mxu0 0
        %1545 = vmatpush.bf16.msra.mxu0 0
        %1546 = vmatpush.bf16.msra.mxu0 0
        %1547 = vmatpush.bf16.msra.mxu0 %v1538
        %1548 = vmatmul.bf16.gmra.mxu0 %v1535
        %v1549 = vpop.f32.mrf.mxu0
        %v1550 = vadd.f32 0.0, %v1549
        %v1551 = vpop.f32.mrf.mxu0
        %1552 = vdwg.mxu0
        %v1553 = vpack.c.bf16 %v1550, %v1550
        %v1556 = vunpack.c.l.b16 %v1441
        %v1557 = vunpack.c.l.b16 %v1442
        %v1558 = vpack.c.b16 %v1557, %v1556
        %v1561 = vsel %vm1081, %v1553, 0
        %1563 = vmatpush.bf16.msra.mxu0 0
        %1564 = vmatpush.bf16.msra.mxu0 0
        %1565 = vmatpush.bf16.msra.mxu0 0
        %1566 = vmatpush.bf16.msra.mxu0 0
        %1567 = vmatpush.bf16.msra.mxu0 0
        %1568 = vmatpush.bf16.msra.mxu0 0
        %1569 = vmatpush.bf16.msra.mxu0 0
        %1570 = vmatpush.bf16.msra.mxu0 %v1558
        %1571 = vmatmul.bf16.gmra.mxu0 %v1561
        %v1572 = vpop.f32.mrf.mxu0
        %v1573 = vadd.f32 0.0, %v1572
        %v1574 = vpop.f32.mrf.mxu0
        %1575 = vdwg.mxu0
        %v1576 = vadd.f32 %v1482, %v1573
        %1577 = vrot.lane.b32.xlu0 %v1483, 112
        %v1578 = vpop.permute.xlu0 %1577
        %1579 = vrot.lane.b32.xlu0 %v1483, 80
        %v1580 = vpop.permute.xlu0 %1579
        %v1582 = vsel %vm1081, %v1578, 0
        %v1585 = vsel %vm1081, %v1580, 0
        %1587 = vmatpush.bf16.xpose.msra.mxu0 0
        %1588 = vmatpush.bf16.xpose.msra.mxu0 0
        %1589 = vmatpush.bf16.xpose.msra.mxu0 0
        %1590 = vmatpush.bf16.xpose.msra.mxu0 0
        %1591 = vmatpush.bf16.xpose.msra.mxu0 0
        %1592 = vmatpush.bf16.xpose.msra.mxu0 0
        %1593 = vmatpush.bf16.xpose.msra.mxu0 0
        %1594 = vmatpush.bf16.xpose.msra.mxu0 %v1585
        %1595 = vmatmul.bf16.gmra.mxu0 %v1582
        %v1596 = vpop.f32.mrf.mxu0
        %v1597 = vadd.f32 0.0, %v1596
        %v1598 = vpop.f32.mrf.mxu0
        %1599 = vdwg.mxu0
        %v1600 = vmul.f32 %v1597, 0.25
        %v1601 = vsel %vm1102, %v1600, -inf
        %1602 = vmax.xlane.f32.xlu0 %v1601
        %v1603 = vpop.xlane.xlu0 %1602
        %v1604 = vsub.f32 %v1600, %v1603
        %v1605 = vmul.f32 %v1604, 1.442695
        %v1606 = vpow.pop %v1605
        %v1607 = vsel %vm1102, %v1606, 0.0
        %1608 = vadd.xlane.f32.xlu0 %v1607
        %v1609 = vpop.xlane.xlu0 %1608
        %v1610 = vrcp.pop %v1609
        %v1611 = vmul.f32 %v1609, %v1610
        %v1612 = vsub.f32 1.0, %v1611
        %v1613 = vmul.f32 %v1610, %v1612
        %v1614 = vadd.f32 %v1610, %v1613
        %vm1615 = vweird.f32 %v1609
        %vm1616 = vweird.f32 %v1610
        %vm1617 = vmor %vm1615, %vm1616
        %v1618 = vsel %vm1617, %v1610, %v1614
        %v1619 = vand.u32 2147483647, %v1609
        %vm1620 = vcmp.eq.f32.partialorder %v1619, 8.507059e+37
        %v1621 = vand.u32 %v1609, 2147483648
        %v1622 = vor.u32 1.1754944e-38, %v1621
        %v1623 = vsel %vm1620, %v1622, %v1618
        %v1624 = vmul.f32 %v1606, %v1623
        %v1625 = vpack.c.bf16 %v1624, %v1624
        %1626 = vrot.lane.b32.xlu0 %v1483, 48
        %v1627 = vpop.permute.xlu0 %1626
        %v1629 = vsel %vm1102, %v1625, 0
        %v1632 = vsel %vm1133, %v1627, 0
        %1634 = vmatpush.bf16.msra.mxu0 0
        %1635 = vmatpush.bf16.msra.mxu0 0
        %1636 = vmatpush.bf16.msra.mxu0 0
        %1637 = vmatpush.bf16.msra.mxu0 0
        %1638 = vmatpush.bf16.msra.mxu0 0
        %1639 = vmatpush.bf16.msra.mxu0 0
        %1640 = vmatpush.bf16.msra.mxu0 0
        %1641 = vmatpush.bf16.msra.mxu0 %v1632
        %1642 = vmatmul.bf16.gmra.mxu0 %v1629
        %v1643 = vpop.f32.mrf.mxu0
        %v1644 = vadd.f32 0.0, %v1643
        %v1645 = vpop.f32.mrf.mxu0
        %1646 = vdwg.mxu0
        %v1647 = vpack.c.bf16 %v1644, %v1644
        %v1650 = vunpack.c.l.b16 %v1443
        %v1651 = vunpack.c.l.b16 %v1444
        %v1652 = vpack.c.b16 %v1651, %v1650
        %v1655 = vsel %vm1081, %v1647, 0
        %1657 = vmatpush.bf16.msra.mxu0 0
        %1658 = vmatpush.bf16.msra.mxu0 0
        %1659 = vmatpush.bf16.msra.mxu0 0
        %1660 = vmatpush.bf16.msra.mxu0 0
        %1661 = vmatpush.bf16.msra.mxu0 0
        %1662 = vmatpush.bf16.msra.mxu0 0
        %1663 = vmatpush.bf16.msra.mxu0 0
        %1664 = vmatpush.bf16.msra.mxu0 %v1652
        %1665 = vmatmul.bf16.gmra.mxu0 %v1655
        %v1666 = vpop.f32.mrf.mxu0
        %v1667 = vadd.f32 0.0, %v1666
        %v1668 = vpop.f32.mrf.mxu0
        %1669 = vdwg.mxu0
        %v1670 = vadd.f32 %v1576, %v1667
        %v1671 = vadd.f32 %v1432, %v1670
        %s1672 = scalar_lea.vmem %s15, 1
        %v1673 = vld [vmem:[%s1672] sm:$0x1]
        %s1674 = scalar_lea.vmem %s17, 1
        %v1675 = vld [vmem:[%s1674] sm:$0x1]
        %v1676 = vsel %vm1056, %v1671, 0.0
        %1677 = vadd.xlane.f32.xlu0 %v1676
        %v1678 = vpop.xlane.xlu0 %1677
        %v1679 = vmul.f32 %v1678, %v1280
        %v1680 = vsub.f32 %v1671, %v1679
        %v1681 = vmul.f32 %v1680, %v1680
        %v1682 = vsel %vm1056, %v1681, 0.0
        %1683 = vadd.xlane.f32.xlu0 %v1682
        %v1684 = vpop.xlane.xlu0 %1683
        %v1685 = vmul.f32 %v1684, %v1280
        %v1686 = vadd.f32 %v1685, 1e-05
        %v1687 = vrsqrt.pop %v1686
        %v1688 = vmul.f32 %v1687, %v1686
        %v1689 = vmul.f32 %v1688, %v1687
        %v1690 = vmul.f32 0.5, %v1689
        %v1691 = vsub.f32 1.5, %v1690
        %v1692 = vmul.f32 %v1687, %v1691
        %vm1693 = vweird.f32 %v1686
        %vm1694 = vweird.f32 %v1687
        %vm1695 = vmor %vm1693, %vm1694
        %v1696 = vsel %vm1695, %v1687, %v1692
        %v1697 = vmul.f32 %v1680, %v1696
        %v1699 = vperm.slane %v1673, 0
        %v1701 = vmul.f32 %v1697, %v1699
        %v1703 = vperm.slane %v1675, 0
        %v1705 = vadd.f32 %v1701, %v1703
        %s1706 = scalar_lea.vmem %s19, 16
        %v1707 = vld [vmem:[%s1706] sm:$0xf]
        %v1708 = vld [vmem:[%s1706 + $0x4] sm:$0xf]
        %v1709 = vld [vmem:[%s1706 + $0x8] sm:$0xf]
        %v1710 = vld [vmem:[%s1706 + $0xc] sm:$0xf]
        %s1711 = scalar_lea.vmem %s21, 1
        %v1712 = vld [vmem:[%s1711] sm:$0x1]
        %v1713 = vpack.c.bf16 %v1705, %v1705
        %v1715 = vperm.slane %v1712, 0
        %v1721 = vunpack.c.l.b16 %v1707
        %v1722 = vunpack.c.l.b16 %v1708
        %v1723 = vunpack.c.l.b16 %v1709
        %v1724 = vunpack.c.l.b16 %v1710
        %v1725 = vpack.c.b16 %v1722, %v1721
        %v1726 = vpack.c.b16 %v1724, %v1723
        %v1730 = vsel %vm1056, %v1713, 0
        %1732 = vmatpush.bf16.msra.mxu0 0
        %1733 = vmatpush.bf16.msra.mxu0 0
        %1734 = vmatpush.bf16.msra.mxu0 0
        %1735 = vmatpush.bf16.msra.mxu0 0
        %1736 = vmatpush.bf16.msra.mxu0 0
        %1737 = vmatpush.bf16.msra.mxu0 0
        %1738 = vmatpush.bf16.msra.mxu0 %v1726
        %1739 = vmatpush.bf16.msra.mxu0 %v1725
        %1740 = vmatmul.bf16.gmra.mxu0 %v1730
        %v1741 = vpop.f32.mrf.mxu0
        %v1742 = vadd.f32 %v1715, %v1741
        %v1743 = vpop.f32.mrf.mxu0
        %1744 = vdwg.mxu0
        %v1745 = vmax.f32 %v1742, 0.0
        %s1746 = scalar_lea.vmem %s23, 32
        %v1747 = vld [vmem:[%s1746] sm:$0xf]
        %v1748 = vld [vmem:[%s1746 + $0x4] sm:$0xf]
        %v1749 = vld [vmem:[%s1746 + $0x8] sm:$0xf]
        %v1750 = vld [vmem:[%s1746 + $0xc] sm:$0xf]
        %v1751 = vld [vmem:[%s1746 + $0x10] sm:$0xf]
        %v1752 = vld [vmem:[%s1746 + $0x14] sm:$0xf]
        %v1753 = vld [vmem:[%s1746 + $0x18] sm:$0xf]
        %v1754 = vld [vmem:[%s1746 + $0x1c] sm:$0xf]
        %s1755 = scalar_lea.vmem %s25, 1
        %v1756 = vld [vmem:[%s1755] sm:$0x1]
        %v1757 = vpack.c.bf16 %v1745, %v1745
        %v1759 = vperm.slane %v1756, 0
        %v1769 = vunpack.c.l.b16 %v1747
        %v1770 = vunpack.c.l.b16 %v1748
        %v1771 = vunpack.c.l.b16 %v1749
        %v1772 = vunpack.c.l.b16 %v1750
        %v1773 = vunpack.c.l.b16 %v1751
        %v1774 = vunpack.c.l.b16 %v1752
        %v1775 = vunpack.c.l.b16 %v1753
        %v1776 = vunpack.c.l.b16 %v1754
        %v1777 = vpack.c.b16 %v1770, %v1769
        %v1778 = vpack.c.b16 %v1772, %v1771
        %v1779 = vpack.c.b16 %v1774, %v1773
        %v1780 = vpack.c.b16 %v1776, %v1775
        %v1786 = vsel %vm1383, %v1757, 0
        %1788 = vmatpush.bf16.msra.mxu0 0
        %1789 = vmatpush.bf16.msra.mxu0 0
        %1790 = vmatpush.bf16.msra.mxu0 0
        %1791 = vmatpush.bf16.msra.mxu0 0
        %1792 = vmatpush.bf16.msra.mxu0 %v1780
        %1793 = vmatpush.bf16.msra.mxu0 %v1779
        %1794 = vmatpush.bf16.msra.mxu0 %v1778
        %1795 = vmatpush.bf16.msra.mxu0 %v1777
        %1796 = vmatmul.bf16.gmra.mxu0 %v1786
        %v1797 = vpop.f32.mrf.mxu0
        %v1798 = vadd.f32 %v1759, %v1797
        %v1799 = vpop.f32.mrf.mxu0
        %1800 = vdwg.mxu0
        %v1801 = vadd.f32 %v1705, %v1798
        %s1802 = scalar_lea.vmem %s27, 1
        %v1803 = vld [vmem:[%s1802] sm:$0x1]
        %s1804 = scalar_lea.vmem %s29, 1
        %v1805 = vld [vmem:[%s1804] sm:$0x1]
        %v1806 = vsel %vm1056, %v1801, 0.0
        %1807 = vadd.xlane.f32.xlu0 %v1806
        %v1808 = vpop.xlane.xlu0 %1807
        %v1809 = vmul.f32 %v1808, %v1280
        %v1810 = vsub.f32 %v1801, %v1809
        %v1811 = vmul.f32 %v1810, %v1810
        %v1812 = vsel %vm1056, %v1811, 0.0
        %1813 = vadd.xlane.f32.xlu0 %v1812
        %v1814 = vpop.xlane.xlu0 %1813
        %v1815 = vmul.f32 %v1814, %v1280
        %v1816 = vadd.f32 %v1815, 1e-05
        %v1817 = vrsqrt.pop %v1816
        %v1818 = vmul.f32 %v1817, %v1816
        %v1819 = vmul.f32 %v1818, %v1817
        %v1820 = vmul.f32 0.5, %v1819
        %v1821 = vsub.f32 1.5, %v1820
        %v1822 = vmul.f32 %v1817, %v1821
        %vm1823 = vweird.f32 %v1816
        %vm1824 = vweird.f32 %v1817
        %vm1825 = vmor %vm1823, %vm1824
        %v1826 = vsel %vm1825, %v1817, %v1822
        %v1827 = vmul.f32 %v1810, %v1826
        %v1829 = vperm.slane %v1803, 0
        %v1831 = vmul.f32 %v1827, %v1829
        %v1833 = vperm.slane %v1805, 0
        %v1835 = vadd.f32 %v1831, %v1833
        %v1836 = vld [vmem:[%s1026] sm:$0xff]
        %v1837 = vld [vmem:[%s31] sm:$0xf]
        %v1838 = vld [vmem:[%s31 + $0x4] sm:$0xf]
        %v1839 = vld [vmem:[%s31 + $0x8] sm:$0xf]
        %v1840 = vld [vmem:[%s31 + $0xc] sm:$0xf]
        %v1841 = vld [vmem:[%s33] sm:$0x1]
        %v1842 = vld [vmem:[%s35] sm:$0xf]
        %v1843 = vld [vmem:[%s35 + $0x4] sm:$0xf]
        %v1844 = vld [vmem:[%s35 + $0x8] sm:$0xf]
        %v1845 = vld [vmem:[%s35 + $0xc] sm:$0xf]
        %v1846 = vld [vmem:[%s37] sm:$0x1]
        %v1847 = vpack.c.bf16 %v1836, %v1836
        %v1849 = vperm.slane %v1841, 0
        %v1855 = vunpack.c.l.b16 %v1837
        %v1856 = vunpack.c.l.b16 %v1838
        %v1857 = vunpack.c.l.b16 %v1839
        %v1858 = vunpack.c.l.b16 %v1840
        %v1859 = vpack.c.b16 %v1856, %v1855
        %v1860 = vpack.c.b16 %v1858, %v1857
        %v1864 = vsel %vm1056, %v1847, 0
        %1866 = vmatpush.bf16.msra.mxu0 0
        %1867 = vmatpush.bf16.msra.mxu0 0
        %1868 = vmatpush.bf16.msra.mxu0 0
        %1869 = vmatpush.bf16.msra.mxu0 0
        %1870 = vmatpush.bf16.msra.mxu0 0
        %1871 = vmatpush.bf16.msra.mxu0 0
        %1872 = vmatpush.bf16.msra.mxu0 %v1860
        %1873 = vmatpush.bf16.msra.mxu0 %v1859
        %1874 = vmatmul.bf16.gmra.mxu0 %v1864
        %v1875 = vpop.f32.mrf.mxu0
        %v1876 = vadd.f32 %v1849, %v1875
        %v1877 = vpop.f32.mrf.mxu0
        %1878 = vdwg.mxu0
        %v1880 = vperm.slane %v1846, 0
        %v1882 = vadd.f32 %v1880, 0.0
        %v1883 = vpack.c.bf16 %v1876, %v1876
        %1885 = vrot.lane.b32.xlu0 %v1883, 96
        %v1886 = vpop.permute.xlu0 %1885
        %v1888 = vsel %vm1081, %v1883, 0
        %v1891 = vsel %vm1081, %v1886, 0
        %1893 = vmatpush.bf16.xpose.msra.mxu0 0
        %1894 = vmatpush.bf16.xpose.msra.mxu0 0
        %1895 = vmatpush.bf16.xpose.msra.mxu0 0
        %1896 = vmatpush.bf16.xpose.msra.mxu0 0
        %1897 = vmatpush.bf16.xpose.msra.mxu0 0
        %1898 = vmatpush.bf16.xpose.msra.mxu0 0
        %1899 = vmatpush.bf16.xpose.msra.mxu0 0
        %1900 = vmatpush.bf16.xpose.msra.mxu0 %v1891
        %1901 = vmatmul.bf16.gmra.mxu0 %v1888
        %v1902 = vpop.f32.mrf.mxu0
        %v1903 = vadd.f32 0.0, %v1902
        %v1904 = vpop.f32.mrf.mxu0
        %1905 = vdwg.mxu0
        %v1906 = vmul.f32 %v1903, 0.25
        %v1907 = vadd.f32 %v1906, %v1028
        %v1908 = vsel %vm1102, %v1907, -inf
        %1909 = vmax.xlane.f32.xlu0 %v1908
        %v1910 = vpop.xlane.xlu0 %1909
        %v1911 = vsub.f32 %v1907, %v1910
        %v1912 = vmul.f32 %v1911, 1.442695
        %v1913 = vpow.pop %v1912
        %v1914 = vsel %vm1102, %v1913, 0.0
        %1915 = vadd.xlane.f32.xlu0 %v1914
        %v1916 = vpop.xlane.xlu0 %1915
        %v1917 = vrcp.pop %v1916
        %v1918 = vmul.f32 %v1916, %v1917
        %v1919 = vsub.f32 1.0, %v1918
        %v1920 = vmul.f32 %v1917, %v1919
        %v1921 = vadd.f32 %v1917, %v1920
        %vm1922 = vweird.f32 %v1916
        %vm1923 = vweird.f32 %v1917
        %vm1924 = vmor %vm1922, %vm1923
        %v1925 = vsel %vm1924, %v1917, %v1921
        %v1926 = vand.u32 2147483647, %v1916
        %vm1927 = vcmp.eq.f32.partialorder %v1926, 8.507059e+37
        %v1928 = vand.u32 %v1916, 2147483648
        %v1929 = vor.u32 1.1754944e-38, %v1928
        %v1930 = vsel %vm1927, %v1929, %v1925
        %v1931 = vmul.f32 %v1913, %v1930
        %v1932 = vpack.c.bf16 %v1931, %v1931
        %1933 = vrot.lane.b32.xlu0 %v1883, 64
        %v1934 = vpop.permute.xlu0 %1933
        %v1936 = vsel %vm1102, %v1932, 0
        %v1939 = vsel %vm1133, %v1934, 0
        %1941 = vmatpush.bf16.msra.mxu0 0
        %1942 = vmatpush.bf16.msra.mxu0 0
        %1943 = vmatpush.bf16.msra.mxu0 0
        %1944 = vmatpush.bf16.msra.mxu0 0
        %1945 = vmatpush.bf16.msra.mxu0 0
        %1946 = vmatpush.bf16.msra.mxu0 0
        %1947 = vmatpush.bf16.msra.mxu0 0
        %1948 = vmatpush.bf16.msra.mxu0 %v1939
        %1949 = vmatmul.bf16.gmra.mxu0 %v1936
        %v1950 = vpop.f32.mrf.mxu0
        %v1951 = vadd.f32 0.0, %v1950
        %v1952 = vpop.f32.mrf.mxu0
        %1953 = vdwg.mxu0
        %v1954 = vpack.c.bf16 %v1951, %v1951
        %v1957 = vunpack.c.l.b16 %v1842
        %v1958 = vunpack.c.l.b16 %v1843
        %v1959 = vpack.c.b16 %v1958, %v1957
        %v1962 = vsel %vm1081, %v1954, 0
        %1964 = vmatpush.bf16.msra.mxu0 0
        %1965 = vmatpush.bf16.msra.mxu0 0
        %1966 = vmatpush.bf16.msra.mxu0 0
        %1967 = vmatpush.bf16.msra.mxu0 0
        %1968 = vmatpush.bf16.msra.mxu0 0
        %1969 = vmatpush.bf16.msra.mxu0 0
        %1970 = vmatpush.bf16.msra.mxu0 0
        %1971 = vmatpush.bf16.msra.mxu0 %v1959
        %1972 = vmatmul.bf16.gmra.mxu0 %v1962
        %v1973 = vpop.f32.mrf.mxu0
        %v1974 = vadd.f32 0.0, %v1973
        %v1975 = vpop.f32.mrf.mxu0
        %1976 = vdwg.mxu0
        %v1977 = vadd.f32 %v1882, %v1974
        %1978 = vrot.lane.b32.xlu0 %v1883, 112
        %v1979 = vpop.permute.xlu0 %1978
        %1980 = vrot.lane.b32.xlu0 %v1883, 80
        %v1981 = vpop.permute.xlu0 %1980
        %v1983 = vsel %vm1081, %v1979, 0
        %v1986 = vsel %vm1081, %v1981, 0
        %1988 = vmatpush.bf16.xpose.msra.mxu0 0
        %1989 = vmatpush.bf16.xpose.msra.mxu0 0
        %1990 = vmatpush.bf16.xpose.msra.mxu0 0
        %1991 = vmatpush.bf16.xpose.msra.mxu0 0
        %1992 = vmatpush.bf16.xpose.msra.mxu0 0
        %1993 = vmatpush.bf16.xpose.msra.mxu0 0
        %1994 = vmatpush.bf16.xpose.msra.mxu0 0
        %1995 = vmatpush.bf16.xpose.msra.mxu0 %v1986
        %1996 = vmatmul.bf16.gmra.mxu0 %v1983
        %v1997 = vpop.f32.mrf.mxu0
        %v1998 = vadd.f32 0.0, %v1997
        %v1999 = vpop.f32.mrf.mxu0
        %2000 = vdwg.mxu0
        %v2001 = vmul.f32 %v1998, 0.25
        %v2002 = vadd.f32 %v2001, %v1028
        %v2003 = vsel %vm1102, %v2002, -inf
        %2004 = vmax.xlane.f32.xlu0 %v2003
        %v2005 = vpop.xlane.xlu0 %2004
        %v2006 = vsub.f32 %v2002, %v2005
        %v2007 = vmul.f32 %v2006, 1.442695
        %v2008 = vpow.pop %v2007
        %v2009 = vsel %vm1102, %v2008, 0.0
        %2010 = vadd.xlane.f32.xlu0 %v2009
        %v2011 = vpop.xlane.xlu0 %2010
        %v2012 = vrcp.pop %v2011
        %v2013 = vmul.f32 %v2011, %v2012
        %v2014 = vsub.f32 1.0, %v2013
        %v2015 = vmul.f32 %v2012, %v2014
        %v2016 = vadd.f32 %v2012, %v2015
        %vm2017 = vweird.f32 %v2011
        %vm2018 = vweird.f32 %v2012
        %vm2019 = vmor %vm2017, %vm2018
        %v2020 = vsel %vm2019, %v2012, %v2016
        %v2021 = vand.u32 2147483647, %v2011
        %vm2022 = vcmp.eq.f32.partialorder %v2021, 8.507059e+37
        %v2023 = vand.u32 %v2011, 2147483648
        %v2024 = vor.u32 1.1754944e-38, %v2023
        %v2025 = vsel %vm2022, %v2024, %v2020
        %v2026 = vmul.f32 %v2008, %v2025
        %v2027 = vpack.c.bf16 %v2026, %v2026
        %2028 = vrot.lane.b32.xlu0 %v1883, 48
        %v2029 = vpop.permute.xlu0 %2028
        %v2031 = vsel %vm1102, %v2027, 0
        %v2034 = vsel %vm1133, %v2029, 0
        %2036 = vmatpush.bf16.msra.mxu0 0
        %2037 = vmatpush.bf16.msra.mxu0 0
        %2038 = vmatpush.bf16.msra.mxu0 0
        %2039 = vmatpush.bf16.msra.mxu0 0
        %2040 = vmatpush.bf16.msra.mxu0 0
        %2041 = vmatpush.bf16.msra.mxu0 0
        %2042 = vmatpush.bf16.msra.mxu0 0
        %2043 = vmatpush.bf16.msra.mxu0 %v2034
        %2044 = vmatmul.bf16.gmra.mxu0 %v2031
        %v2045 = vpop.f32.mrf.mxu0
        %v2046 = vadd.f32 0.0, %v2045
        %v2047 = vpop.f32.mrf.mxu0
        %2048 = vdwg.mxu0
        %v2049 = vpack.c.bf16 %v2046, %v2046
        %v2052 = vunpack.c.l.b16 %v1844
        %v2053 = vunpack.c.l.b16 %v1845
        %v2054 = vpack.c.b16 %v2053, %v2052
        %v2057 = vsel %vm1081, %v2049, 0
        %2059 = vmatpush.bf16.msra.mxu0 0
        %2060 = vmatpush.bf16.msra.mxu0 0
        %2061 = vmatpush.bf16.msra.mxu0 0
        %2062 = vmatpush.bf16.msra.mxu0 0
        %2063 = vmatpush.bf16.msra.mxu0 0
        %2064 = vmatpush.bf16.msra.mxu0 0
        %2065 = vmatpush.bf16.msra.mxu0 0
        %2066 = vmatpush.bf16.msra.mxu0 %v2054
        %2067 = vmatmul.bf16.gmra.mxu0 %v2057
        %v2068 = vpop.f32.mrf.mxu0
        %v2069 = vadd.f32 0.0, %v2068
        %v2070 = vpop.f32.mrf.mxu0
        %2071 = vdwg.mxu0
        %v2072 = vadd.f32 %v1977, %v2069
        %v2073 = vadd.f32 %v1836, %v2072
        %v2074 = vld [vmem:[%s39] sm:$0x1]
        %v2075 = vld [vmem:[%s41] sm:$0x1]
        %v2076 = vsel %vm1056, %v2073, 0.0
        %2077 = vadd.xlane.f32.xlu0 %v2076
        %v2078 = vpop.xlane.xlu0 %2077
        %v2079 = vmul.f32 %v2078, %v1280
        %v2080 = vsub.f32 %v2073, %v2079
        %v2081 = vmul.f32 %v2080, %v2080
        %v2082 = vsel %vm1056, %v2081, 0.0
        %2083 = vadd.xlane.f32.xlu0 %v2082
        %v2084 = vpop.xlane.xlu0 %2083
        %v2085 = vmul.f32 %v2084, %v1280
        %v2086 = vadd.f32 %v2085, 1e-05
        %v2087 = vrsqrt.pop %v2086
        %v2088 = vmul.f32 %v2087, %v2086
        %v2089 = vmul.f32 %v2088, %v2087
        %v2090 = vmul.f32 0.5, %v2089
        %v2091 = vsub.f32 1.5, %v2090
        %v2092 = vmul.f32 %v2087, %v2091
        %vm2093 = vweird.f32 %v2086
        %vm2094 = vweird.f32 %v2087
        %vm2095 = vmor %vm2093, %vm2094
        %v2096 = vsel %vm2095, %v2087, %v2092
        %v2097 = vmul.f32 %v2080, %v2096
        %v2099 = vperm.slane %v2074, 0
        %v2101 = vmul.f32 %v2097, %v2099
        %v2103 = vperm.slane %v2075, 0
        %v2105 = vadd.f32 %v2101, %v2103
        %v2106 = vld [vmem:[%s43] sm:$0xf]
        %v2107 = vld [vmem:[%s43 + $0x4] sm:$0xf]
        %v2108 = vld [vmem:[%s43 + $0x8] sm:$0xf]
        %v2109 = vld [vmem:[%s43 + $0xc] sm:$0xf]
        %v2110 = vld [vmem:[%s45] sm:$0x1]
        %v2111 = vld [vmem:[%s47] sm:$0xf]
        %v2112 = vld [vmem:[%s47 + $0x4] sm:$0xf]
        %v2113 = vld [vmem:[%s47 + $0x8] sm:$0xf]
        %v2114 = vld [vmem:[%s47 + $0xc] sm:$0xf]
        %v2115 = vld [vmem:[%s49] sm:$0x1]
        %v2116 = vpack.c.bf16 %v2105, %v2105
        %v2118 = vperm.slane %v2110, 0
        %v2124 = vunpack.c.l.b16 %v2106
        %v2125 = vunpack.c.l.b16 %v2107
        %v2126 = vunpack.c.l.b16 %v2108
        %v2127 = vunpack.c.l.b16 %v2109
        %v2128 = vpack.c.b16 %v2125, %v2124
        %v2129 = vpack.c.b16 %v2127, %v2126
        %v2133 = vsel %vm1056, %v2116, 0
        %2135 = vmatpush.bf16.msra.mxu0 0
        %2136 = vmatpush.bf16.msra.mxu0 0
        %2137 = vmatpush.bf16.msra.mxu0 0
        %2138 = vmatpush.bf16.msra.mxu0 0
        %2139 = vmatpush.bf16.msra.mxu0 0
        %2140 = vmatpush.bf16.msra.mxu0 0
        %2141 = vmatpush.bf16.msra.mxu0 %v2129
        %2142 = vmatpush.bf16.msra.mxu0 %v2128
        %2143 = vmatmul.bf16.gmra.mxu0 %v2133
        %v2144 = vpop.f32.mrf.mxu0
        %v2145 = vadd.f32 %v2118, %v2144
        %v2146 = vpop.f32.mrf.mxu0
        %2147 = vdwg.mxu0
        %v2148 = vpack.c.bf16 %v1835, %v1835
        %2149 = vrot.lane.b32.xlu0 %v2128, 96
        %v2150 = vpop.permute.xlu0 %2149
        %2151 = vrot.lane.b32.xlu0 %v2129, 96
        %v2152 = vpop.permute.xlu0 %2151
        %2155 = vrot.lane.b32.xlu0 %v2118, 96
        %v2156 = vpop.permute.xlu0 %2155
        %v2159 = vsel %vm1056, %v2148, 0
        %2161 = vmatpush.bf16.msra.mxu0 0
        %2162 = vmatpush.bf16.msra.mxu0 0
        %2163 = vmatpush.bf16.msra.mxu0 0
        %2164 = vmatpush.bf16.msra.mxu0 0
        %2165 = vmatpush.bf16.msra.mxu0 0
        %2166 = vmatpush.bf16.msra.mxu0 0
        %2167 = vmatpush.bf16.msra.mxu0 %v2152
        %2168 = vmatpush.bf16.msra.mxu0 %v2150
        %2169 = vmatmul.bf16.gmra.mxu0 %v2159
        %v2170 = vpop.f32.mrf.mxu0
        %v2171 = vadd.f32 %v2156, %v2170
        %v2172 = vpop.f32.mrf.mxu0
        %2173 = vdwg.mxu0
        %v2175 = vperm.slane %v2115, 0
        %v2177 = vadd.f32 %v2175, 0.0
        %v2178 = vpack.c.bf16 %v2145, %v2145
        %v2179 = vpack.c.bf16 %v2171, %v2171
        %v2181 = vsel %vm1081, %v2178, 0
        %v2184 = vsel %vm1081, %v2179, 0
        %2186 = vmatpush.bf16.xpose.msra.mxu0 0
        %2187 = vmatpush.bf16.xpose.msra.mxu0 0
        %2188 = vmatpush.bf16.xpose.msra.mxu0 0
        %2189 = vmatpush.bf16.xpose.msra.mxu0 0
        %2190 = vmatpush.bf16.xpose.msra.mxu0 0
        %2191 = vmatpush.bf16.xpose.msra.mxu0 0
        %2192 = vmatpush.bf16.xpose.msra.mxu0 0
        %2193 = vmatpush.bf16.xpose.msra.mxu0 %v2184
        %2194 = vmatmul.bf16.gmra.mxu0 %v2181
        %v2195 = vpop.f32.mrf.mxu0
        %v2196 = vadd.f32 0.0, %v2195
        %v2197 = vpop.f32.mrf.mxu0
        %2198 = vdwg.mxu0
        %v2199 = vmul.f32 %v2196, 0.25
        %v2200 = vsel %vm1102, %v2199, -inf
        %2201 = vmax.xlane.f32.xlu0 %v2200
        %v2202 = vpop.xlane.xlu0 %2201
        %v2203 = vsub.f32 %v2199, %v2202
        %v2204 = vmul.f32 %v2203, 1.442695
        %v2205 = vpow.pop %v2204
        %v2206 = vsel %vm1102, %v2205, 0.0
        %2207 = vadd.xlane.f32.xlu0 %v2206
        %v2208 = vpop.xlane.xlu0 %2207
        %v2209 = vrcp.pop %v2208
        %v2210 = vmul.f32 %v2208, %v2209
        %v2211 = vsub.f32 1.0, %v2210
        %v2212 = vmul.f32 %v2209, %v2211
        %v2213 = vadd.f32 %v2209, %v2212
        %vm2214 = vweird.f32 %v2208
        %vm2215 = vweird.f32 %v2209
        %vm2216 = vmor %vm2214, %vm2215
        %v2217 = vsel %vm2216, %v2209, %v2213
        %v2218 = vand.u32 2147483647, %v2208
        %vm2219 = vcmp.eq.f32.partialorder %v2218, 8.507059e+37
        %v2220 = vand.u32 %v2208, 2147483648
        %v2221 = vor.u32 1.1754944e-38, %v2220
        %v2222 = vsel %vm2219, %v2221, %v2217
        %v2223 = vmul.f32 %v2205, %v2222
        %v2224 = vpack.c.bf16 %v2223, %v2223
        %2226 = vrot.lane.b32.xlu0 %v2179, 96
        %v2227 = vpop.permute.xlu0 %2226
        %v2229 = vsel %vm1102, %v2224, 0
        %v2232 = vsel %vm1133, %v2227, 0
        %2234 = vmatpush.bf16.msra.mxu0 0
        %2235 = vmatpush.bf16.msra.mxu0 0
        %2236 = vmatpush.bf16.msra.mxu0 0
        %2237 = vmatpush.bf16.msra.mxu0 0
        %2238 = vmatpush.bf16.msra.mxu0 0
        %2239 = vmatpush.bf16.msra.mxu0 0
        %2240 = vmatpush.bf16.msra.mxu0 0
        %2241 = vmatpush.bf16.msra.mxu0 %v2232
        %2242 = vmatmul.bf16.gmra.mxu0 %v2229
        %v2243 = vpop.f32.mrf.mxu0
        %v2244 = vadd.f32 0.0, %v2243
        %v2245 = vpop.f32.mrf.mxu0
        %2246 = vdwg.mxu0
        %v2247 = vpack.c.bf16 %v2244, %v2244
        %v2250 = vunpack.c.l.b16 %v2111
        %v2251 = vunpack.c.l.b16 %v2112
        %v2252 = vpack.c.b16 %v2251, %v2250
        %v2255 = vsel %vm1081, %v2247, 0
        %2257 = vmatpush.bf16.msra.mxu0 0
        %2258 = vmatpush.bf16.msra.mxu0 0
        %2259 = vmatpush.bf16.msra.mxu0 0
        %2260 = vmatpush.bf16.msra.mxu0 0
        %2261 = vmatpush.bf16.msra.mxu0 0
        %2262 = vmatpush.bf16.msra.mxu0 0
        %2263 = vmatpush.bf16.msra.mxu0 0
        %2264 = vmatpush.bf16.msra.mxu0 %v2252
        %2265 = vmatmul.bf16.gmra.mxu0 %v2255
        %v2266 = vpop.f32.mrf.mxu0
        %v2267 = vadd.f32 0.0, %v2266
        %v2268 = vpop.f32.mrf.mxu0
        %2269 = vdwg.mxu0
        %v2270 = vadd.f32 %v2177, %v2267
        %2272 = vrot.lane.b32.xlu0 %v2178, 112
        %v2273 = vpop.permute.xlu0 %2272
        %2274 = vrot.lane.b32.xlu0 %v2179, 112
        %v2275 = vpop.permute.xlu0 %2274
        %v2277 = vsel %vm1081, %v2273, 0
        %v2280 = vsel %vm1081, %v2275, 0
        %2282 = vmatpush.bf16.xpose.msra.mxu0 0
        %2283 = vmatpush.bf16.xpose.msra.mxu0 0
        %2284 = vmatpush.bf16.xpose.msra.mxu0 0
        %2285 = vmatpush.bf16.xpose.msra.mxu0 0
        %2286 = vmatpush.bf16.xpose.msra.mxu0 0
        %2287 = vmatpush.bf16.xpose.msra.mxu0 0
        %2288 = vmatpush.bf16.xpose.msra.mxu0 0
        %2289 = vmatpush.bf16.xpose.msra.mxu0 %v2280
        %2290 = vmatmul.bf16.gmra.mxu0 %v2277
        %v2291 = vpop.f32.mrf.mxu0
        %v2292 = vadd.f32 0.0, %v2291
        %v2293 = vpop.f32.mrf.mxu0
        %2294 = vdwg.mxu0
        %v2295 = vmul.f32 %v2292, 0.25
        %v2296 = vsel %vm1102, %v2295, -inf
        %2297 = vmax.xlane.f32.xlu0 %v2296
        %v2298 = vpop.xlane.xlu0 %2297
        %v2299 = vsub.f32 %v2295, %v2298
        %v2300 = vmul.f32 %v2299, 1.442695
        %v2301 = vpow.pop %v2300
        %v2302 = vsel %vm1102, %v2301, 0.0
        %2303 = vadd.xlane.f32.xlu0 %v2302
        %v2304 = vpop.xlane.xlu0 %2303
        %v2305 = vrcp.pop %v2304
        %v2306 = vmul.f32 %v2304, %v2305
        %v2307 = vsub.f32 1.0, %v2306
        %v2308 = vmul.f32 %v2305, %v2307
        %v2309 = vadd.f32 %v2305, %v2308
        %vm2310 = vweird.f32 %v2304
        %vm2311 = vweird.f32 %v2305
        %vm2312 = vmor %vm2310, %vm2311
        %v2313 = vsel %vm2312, %v2305, %v2309
        %v2314 = vand.u32 2147483647, %v2304
        %vm2315 = vcmp.eq.f32.partialorder %v2314, 8.507059e+37
        %v2316 = vand.u32 %v2304, 2147483648
        %v2317 = vor.u32 1.1754944e-38, %v2316
        %v2318 = vsel %vm2315, %v2317, %v2313
        %v2319 = vmul.f32 %v2301, %v2318
        %v2320 = vpack.c.bf16 %v2319, %v2319
        %2321 = vrot.lane.b32.xlu0 %v2179, 80
        %v2322 = vpop.permute.xlu0 %2321
        %v2324 = vsel %vm1102, %v2320, 0
        %v2327 = vsel %vm1133, %v2322, 0
        %2329 = vmatpush.bf16.msra.mxu0 0
        %2330 = vmatpush.bf16.msra.mxu0 0
        %2331 = vmatpush.bf16.msra.mxu0 0
        %2332 = vmatpush.bf16.msra.mxu0 0
        %2333 = vmatpush.bf16.msra.mxu0 0
        %2334 = vmatpush.bf16.msra.mxu0 0
        %2335 = vmatpush.bf16.msra.mxu0 0
        %2336 = vmatpush.bf16.msra.mxu0 %v2327
        %2337 = vmatmul.bf16.gmra.mxu0 %v2324
        %v2338 = vpop.f32.mrf.mxu0
        %v2339 = vadd.f32 0.0, %v2338
        %v2340 = vpop.f32.mrf.mxu0
        %2341 = vdwg.mxu0
        %v2342 = vpack.c.bf16 %v2339, %v2339
        %v2345 = vunpack.c.l.b16 %v2113
        %v2346 = vunpack.c.l.b16 %v2114
        %v2347 = vpack.c.b16 %v2346, %v2345
        %v2350 = vsel %vm1081, %v2342, 0
        %2352 = vmatpush.bf16.msra.mxu0 0
        %2353 = vmatpush.bf16.msra.mxu0 0
        %2354 = vmatpush.bf16.msra.mxu0 0
        %2355 = vmatpush.bf16.msra.mxu0 0
        %2356 = vmatpush.bf16.msra.mxu0 0
        %2357 = vmatpush.bf16.msra.mxu0 0
        %2358 = vmatpush.bf16.msra.mxu0 0
        %2359 = vmatpush.bf16.msra.mxu0 %v2347
        %2360 = vmatmul.bf16.gmra.mxu0 %v2350
        %v2361 = vpop.f32.mrf.mxu0
        %v2362 = vadd.f32 0.0, %v2361
        %v2363 = vpop.f32.mrf.mxu0
        %2364 = vdwg.mxu0
        %v2365 = vadd.f32 %v2270, %v2362
        %v2366 = vadd.f32 %v2105, %v2365
        %v2367 = vld [vmem:[%s51] sm:$0x1]
        %v2368 = vld [vmem:[%s53] sm:$0x1]
        %v2369 = vsel %vm1056, %v2366, 0.0
        %2370 = vadd.xlane.f32.xlu0 %v2369
        %v2371 = vpop.xlane.xlu0 %2370
        %v2372 = vmul.f32 %v2371, %v1280
        %v2373 = vsub.f32 %v2366, %v2372
        %v2374 = vmul.f32 %v2373, %v2373
        %v2375 = vsel %vm1056, %v2374, 0.0
        %2376 = vadd.xlane.f32.xlu0 %v2375
        %v2377 = vpop.xlane.xlu0 %2376
        %v2378 = vmul.f32 %v2377, %v1280
        %v2379 = vadd.f32 %v2378, 1e-05
        %v2380 = vrsqrt.pop %v2379
        %v2381 = vmul.f32 %v2380, %v2379
        %v2382 = vmul.f32 %v2381, %v2380
        %v2383 = vmul.f32 0.5, %v2382
        %v2384 = vsub.f32 1.5, %v2383
        %v2385 = vmul.f32 %v2380, %v2384
        %vm2386 = vweird.f32 %v2379
        %vm2387 = vweird.f32 %v2380
        %vm2388 = vmor %vm2386, %vm2387
        %v2389 = vsel %vm2388, %v2380, %v2385
        %v2390 = vmul.f32 %v2373, %v2389
        %v2392 = vperm.slane %v2367, 0
        %v2394 = vmul.f32 %v2390, %v2392
        %v2396 = vperm.slane %v2368, 0
        %v2398 = vadd.f32 %v2394, %v2396
        %v2399 = vld [vmem:[%s55] sm:$0xf]
        %v2400 = vld [vmem:[%s55 + $0x4] sm:$0xf]
        %v2401 = vld [vmem:[%s55 + $0x8] sm:$0xf]
        %v2402 = vld [vmem:[%s55 + $0xc] sm:$0xf]
        %v2403 = vld [vmem:[%s57] sm:$0x1]
        %v2404 = vpack.c.bf16 %v2398, %v2398
        %v2406 = vperm.slane %v2403, 0
        %v2412 = vunpack.c.l.b16 %v2399
        %v2413 = vunpack.c.l.b16 %v2400
        %v2414 = vunpack.c.l.b16 %v2401
        %v2415 = vunpack.c.l.b16 %v2402
        %v2416 = vpack.c.b16 %v2413, %v2412
        %v2417 = vpack.c.b16 %v2415, %v2414
        %v2421 = vsel %vm1056, %v2404, 0
        %2423 = vmatpush.bf16.msra.mxu0 0
        %2424 = vmatpush.bf16.msra.mxu0 0
        %2425 = vmatpush.bf16.msra.mxu0 0
        %2426 = vmatpush.bf16.msra.mxu0 0
        %2427 = vmatpush.bf16.msra.mxu0 0
        %2428 = vmatpush.bf16.msra.mxu0 0
        %2429 = vmatpush.bf16.msra.mxu0 %v2417
        %2430 = vmatpush.bf16.msra.mxu0 %v2416
        %2431 = vmatmul.bf16.gmra.mxu0 %v2421
        %v2432 = vpop.f32.mrf.mxu0
        %v2433 = vadd.f32 %v2406, %v2432
        %v2434 = vpop.f32.mrf.mxu0
        %2435 = vdwg.mxu0
        %v2436 = vmax.f32 %v2433, 0.0
        %v2437 = vld [vmem:[%s59] sm:$0xf]
        %v2438 = vld [vmem:[%s59 + $0x4] sm:$0xf]
        %v2439 = vld [vmem:[%s59 + $0x8] sm:$0xf]
        %v2440 = vld [vmem:[%s59 + $0xc] sm:$0xf]
        %v2441 = vld [vmem:[%s59 + $0x10] sm:$0xf]
        %v2442 = vld [vmem:[%s59 + $0x14] sm:$0xf]
        %v2443 = vld [vmem:[%s59 + $0x18] sm:$0xf]
        %v2444 = vld [vmem:[%s59 + $0x1c] sm:$0xf]
        %v2445 = vld [vmem:[%s61] sm:$0x1]
        %v2446 = vpack.c.bf16 %v2436, %v2436
        %v2448 = vperm.slane %v2445, 0
        %v2458 = vunpack.c.l.b16 %v2437
        %v2459 = vunpack.c.l.b16 %v2438
        %v2460 = vunpack.c.l.b16 %v2439
        %v2461 = vunpack.c.l.b16 %v2440
        %v2462 = vunpack.c.l.b16 %v2441
        %v2463 = vunpack.c.l.b16 %v2442
        %v2464 = vunpack.c.l.b16 %v2443
        %v2465 = vunpack.c.l.b16 %v2444
        %v2466 = vpack.c.b16 %v2459, %v2458
        %v2467 = vpack.c.b16 %v2461, %v2460
        %v2468 = vpack.c.b16 %v2463, %v2462
        %v2469 = vpack.c.b16 %v2465, %v2464
        %v2475 = vsel %vm1383, %v2446, 0
        %2477 = vmatpush.bf16.msra.mxu0 0
        %2478 = vmatpush.bf16.msra.mxu0 0
        %2479 = vmatpush.bf16.msra.mxu0 0
        %2480 = vmatpush.bf16.msra.mxu0 0
        %2481 = vmatpush.bf16.msra.mxu0 %v2469
        %2482 = vmatpush.bf16.msra.mxu0 %v2468
        %2483 = vmatpush.bf16.msra.mxu0 %v2467
        %2484 = vmatpush.bf16.msra.mxu0 %v2466
        %2485 = vmatmul.bf16.gmra.mxu0 %v2475
        %v2486 = vpop.f32.mrf.mxu0
        %v2487 = vadd.f32 %v2448, %v2486
        %v2488 = vpop.f32.mrf.mxu0
        %2489 = vdwg.mxu0
        %v2490 = vadd.f32 %v2398, %v2487
        %v2491 = vld [vmem:[%s63] sm:$0x1]
        %v2492 = vld [vmem:[%s65] sm:$0x1]
        %v2493 = vsel %vm1056, %v2490, 0.0
        %2494 = vadd.xlane.f32.xlu0 %v2493
        %v2495 = vpop.xlane.xlu0 %2494
        %v2496 = vmul.f32 %v2495, %v1280
        %v2497 = vsub.f32 %v2490, %v2496
        %v2498 = vmul.f32 %v2497, %v2497
        %v2499 = vsel %vm1056, %v2498, 0.0
        %2500 = vadd.xlane.f32.xlu0 %v2499
        %v2501 = vpop.xlane.xlu0 %2500
        %v2502 = vmul.f32 %v2501, %v1280
        %v2503 = vadd.f32 %v2502, 1e-05
        %v2504 = vrsqrt.pop %v2503
        %v2505 = vmul.f32 %v2504, %v2503
        %v2506 = vmul.f32 %v2505, %v2504
        %v2507 = vmul.f32 0.5, %v2506
        %v2508 = vsub.f32 1.5, %v2507
        %v2509 = vmul.f32 %v2504, %v2508
        %vm2510 = vweird.f32 %v2503
        %vm2511 = vweird.f32 %v2504
        %vm2512 = vmor %vm2510, %vm2511
        %v2513 = vsel %vm2512, %v2504, %v2509
        %v2514 = vmul.f32 %v2497, %v2513
        %v2516 = vperm.slane %v2491, 0
        %v2518 = vmul.f32 %v2514, %v2516
        %v2520 = vperm.slane %v2492, 0
        %v2522 = vadd.f32 %v2518, %v2520
        %s2523 = scalar_lea.vmem %s31, 16
        %v2524 = vld [vmem:[%s2523] sm:$0xf]
        %v2525 = vld [vmem:[%s2523 + $0x4] sm:$0xf]
        %v2526 = vld [vmem:[%s2523 + $0x8] sm:$0xf]
        %v2527 = vld [vmem:[%s2523 + $0xc] sm:$0xf]
        %s2528 = scalar_lea.vmem %s33, 1
        %v2529 = vld [vmem:[%s2528] sm:$0x1]
        %s2530 = scalar_lea.vmem %s35, 16
        %v2531 = vld [vmem:[%s2530] sm:$0xf]
        %v2532 = vld [vmem:[%s2530 + $0x4] sm:$0xf]
        %v2533 = vld [vmem:[%s2530 + $0x8] sm:$0xf]
        %v2534 = vld [vmem:[%s2530 + $0xc] sm:$0xf]
        %s2535 = scalar_lea.vmem %s37, 1
        %v2536 = vld [vmem:[%s2535] sm:$0x1]
        %v2537 = vpack.c.bf16 %v2522, %v2522
        %v2539 = vperm.slane %v2529, 0
        %v2545 = vunpack.c.l.b16 %v2524
        %v2546 = vunpack.c.l.b16 %v2525
        %v2547 = vunpack.c.l.b16 %v2526
        %v2548 = vunpack.c.l.b16 %v2527
        %v2549 = vpack.c.b16 %v2546, %v2545
        %v2550 = vpack.c.b16 %v2548, %v2547
        %v2554 = vsel %vm1056, %v2537, 0
        %2556 = vmatpush.bf16.msra.mxu0 0
        %2557 = vmatpush.bf16.msra.mxu0 0
        %2558 = vmatpush.bf16.msra.mxu0 0
        %2559 = vmatpush.bf16.msra.mxu0 0
        %2560 = vmatpush.bf16.msra.mxu0 0
        %2561 = vmatpush.bf16.msra.mxu0 0
        %2562 = vmatpush.bf16.msra.mxu0 %v2550
        %2563 = vmatpush.bf16.msra.mxu0 %v2549
        %2564 = vmatmul.bf16.gmra.mxu0 %v2554
        %v2565 = vpop.f32.mrf.mxu0
        %v2566 = vadd.f32 %v2539, %v2565
        %v2567 = vpop.f32.mrf.mxu0
        %2568 = vdwg.mxu0
        %v2570 = vperm.slane %v2536, 0
        %v2572 = vadd.f32 %v2570, 0.0
        %v2573 = vpack.c.bf16 %v2566, %v2566
        %2575 = vrot.lane.b32.xlu0 %v2573, 96
        %v2576 = vpop.permute.xlu0 %2575
        %v2578 = vsel %vm1081, %v2573, 0
        %v2581 = vsel %vm1081, %v2576, 0
        %2583 = vmatpush.bf16.xpose.msra.mxu0 0
        %2584 = vmatpush.bf16.xpose.msra.mxu0 0
        %2585 = vmatpush.bf16.xpose.msra.mxu0 0
        %2586 = vmatpush.bf16.xpose.msra.mxu0 0
        %2587 = vmatpush.bf16.xpose.msra.mxu0 0
        %2588 = vmatpush.bf16.xpose.msra.mxu0 0
        %2589 = vmatpush.bf16.xpose.msra.mxu0 0
        %2590 = vmatpush.bf16.xpose.msra.mxu0 %v2581
        %2591 = vmatmul.bf16.gmra.mxu0 %v2578
        %v2592 = vpop.f32.mrf.mxu0
        %v2593 = vadd.f32 0.0, %v2592
        %v2594 = vpop.f32.mrf.mxu0
        %2595 = vdwg.mxu0
        %v2596 = vmul.f32 %v2593, 0.25
        %v2597 = vadd.f32 %v2596, %v1028
        %v2598 = vsel %vm1102, %v2597, -inf
        %2599 = vmax.xlane.f32.xlu0 %v2598
        %v2600 = vpop.xlane.xlu0 %2599
        %v2601 = vsub.f32 %v2597, %v2600
        %v2602 = vmul.f32 %v2601, 1.442695
        %v2603 = vpow.pop %v2602
        %v2604 = vsel %vm1102, %v2603, 0.0
        %2605 = vadd.xlane.f32.xlu0 %v2604
        %v2606 = vpop.xlane.xlu0 %2605
        %v2607 = vrcp.pop %v2606
        %v2608 = vmul.f32 %v2606, %v2607
        %v2609 = vsub.f32 1.0, %v2608
        %v2610 = vmul.f32 %v2607, %v2609
        %v2611 = vadd.f32 %v2607, %v2610
        %vm2612 = vweird.f32 %v2606
        %vm2613 = vweird.f32 %v2607
        %vm2614 = vmor %vm2612, %vm2613
        %v2615 = vsel %vm2614, %v2607, %v2611
        %v2616 = vand.u32 2147483647, %v2606
        %vm2617 = vcmp.eq.f32.partialorder %v2616, 8.507059e+37
        %v2618 = vand.u32 %v2606, 2147483648
        %v2619 = vor.u32 1.1754944e-38, %v2618
        %v2620 = vsel %vm2617, %v2619, %v2615
        %v2621 = vmul.f32 %v2603, %v2620
        %v2622 = vpack.c.bf16 %v2621, %v2621
        %2623 = vrot.lane.b32.xlu0 %v2573, 64
        %v2624 = vpop.permute.xlu0 %2623
        %v2626 = vsel %vm1102, %v2622, 0
        %v2629 = vsel %vm1133, %v2624, 0
        %2631 = vmatpush.bf16.msra.mxu0 0
        %2632 = vmatpush.bf16.msra.mxu0 0
        %2633 = vmatpush.bf16.msra.mxu0 0
        %2634 = vmatpush.bf16.msra.mxu0 0
        %2635 = vmatpush.bf16.msra.mxu0 0
        %2636 = vmatpush.bf16.msra.mxu0 0
        %2637 = vmatpush.bf16.msra.mxu0 0
        %2638 = vmatpush.bf16.msra.mxu0 %v2629
        %2639 = vmatmul.bf16.gmra.mxu0 %v2626
        %v2640 = vpop.f32.mrf.mxu0
        %v2641 = vadd.f32 0.0, %v2640
        %v2642 = vpop.f32.mrf.mxu0
        %2643 = vdwg.mxu0
        %v2644 = vpack.c.bf16 %v2641, %v2641
        %v2647 = vunpack.c.l.b16 %v2531
        %v2648 = vunpack.c.l.b16 %v2532
        %v2649 = vpack.c.b16 %v2648, %v2647
        %v2652 = vsel %vm1081, %v2644, 0
        %2654 = vmatpush.bf16.msra.mxu0 0
        %2655 = vmatpush.bf16.msra.mxu0 0
        %2656 = vmatpush.bf16.msra.mxu0 0
        %2657 = vmatpush.bf16.msra.mxu0 0
        %2658 = vmatpush.bf16.msra.mxu0 0
        %2659 = vmatpush.bf16.msra.mxu0 0
        %2660 = vmatpush.bf16.msra.mxu0 0
        %2661 = vmatpush.bf16.msra.mxu0 %v2649
        %2662 = vmatmul.bf16.gmra.mxu0 %v2652
        %v2663 = vpop.f32.mrf.mxu0
        %v2664 = vadd.f32 0.0, %v2663
        %v2665 = vpop.f32.mrf.mxu0
        %2666 = vdwg.mxu0
        %v2667 = vadd.f32 %v2572, %v2664
        %2668 = vrot.lane.b32.xlu0 %v2573, 112
        %v2669 = vpop.permute.xlu0 %2668
        %2670 = vrot.lane.b32.xlu0 %v2573, 80
        %v2671 = vpop.permute.xlu0 %2670
        %v2673 = vsel %vm1081, %v2669, 0
        %v2676 = vsel %vm1081, %v2671, 0
        %2678 = vmatpush.bf16.xpose.msra.mxu0 0
        %2679 = vmatpush.bf16.xpose.msra.mxu0 0
        %2680 = vmatpush.bf16.xpose.msra.mxu0 0
        %2681 = vmatpush.bf16.xpose.msra.mxu0 0
        %2682 = vmatpush.bf16.xpose.msra.mxu0 0
        %2683 = vmatpush.bf16.xpose.msra.mxu0 0
        %2684 = vmatpush.bf16.xpose.msra.mxu0 0
        %2685 = vmatpush.bf16.xpose.msra.mxu0 %v2676
        %2686 = vmatmul.bf16.gmra.mxu0 %v2673
        %v2687 = vpop.f32.mrf.mxu0
        %v2688 = vadd.f32 0.0, %v2687
        %v2689 = vpop.f32.mrf.mxu0
        %2690 = vdwg.mxu0
        %v2691 = vmul.f32 %v2688, 0.25
        %v2692 = vadd.f32 %v2691, %v1028
        %v2693 = vsel %vm1102, %v2692, -inf
        %2694 = vmax.xlane.f32.xlu0 %v2693
        %v2695 = vpop.xlane.xlu0 %2694
        %v2696 = vsub.f32 %v2692, %v2695
        %v2697 = vmul.f32 %v2696, 1.442695
        %v2698 = vpow.pop %v2697
        %v2699 = vsel %vm1102, %v2698, 0.0
        %2700 = vadd.xlane.f32.xlu0 %v2699
        %v2701 = vpop.xlane.xlu0 %2700
        %v2702 = vrcp.pop %v2701
        %v2703 = vmul.f32 %v2701, %v2702
        %v2704 = vsub.f32 1.0, %v2703
        %v2705 = vmul.f32 %v2702, %v2704
        %v2706 = vadd.f32 %v2702, %v2705
        %vm2707 = vweird.f32 %v2701
        %vm2708 = vweird.f32 %v2702
        %vm2709 = vmor %vm2707, %vm2708
        %v2710 = vsel %vm2709, %v2702, %v2706
        %v2711 = vand.u32 2147483647, %v2701
        %vm2712 = vcmp.eq.f32.partialorder %v2711, 8.507059e+37
        %v2713 = vand.u32 %v2701, 2147483648
        %v2714 = vor.u32 1.1754944e-38, %v2713
        %v2715 = vsel %vm2712, %v2714, %v2710
        %v2716 = vmul.f32 %v2698, %v2715
        %v2717 = vpack.c.bf16 %v2716, %v2716
        %2718 = vrot.lane.b32.xlu0 %v2573, 48
        %v2719 = vpop.permute.xlu0 %2718
        %v2721 = vsel %vm1102, %v2717, 0
        %v2724 = vsel %vm1133, %v2719, 0
        %2726 = vmatpush.bf16.msra.mxu0 0
        %2727 = vmatpush.bf16.msra.mxu0 0
        %2728 = vmatpush.bf16.msra.mxu0 0
        %2729 = vmatpush.bf16.msra.mxu0 0
        %2730 = vmatpush.bf16.msra.mxu0 0
        %2731 = vmatpush.bf16.msra.mxu0 0
        %2732 = vmatpush.bf16.msra.mxu0 0
        %2733 = vmatpush.bf16.msra.mxu0 %v2724
        %2734 = vmatmul.bf16.gmra.mxu0 %v2721
        %v2735 = vpop.f32.mrf.mxu0
        %v2736 = vadd.f32 0.0, %v2735
        %v2737 = vpop.f32.mrf.mxu0
        %2738 = vdwg.mxu0
        %v2739 = vpack.c.bf16 %v2736, %v2736
        %v2742 = vunpack.c.l.b16 %v2533
        %v2743 = vunpack.c.l.b16 %v2534
        %v2744 = vpack.c.b16 %v2743, %v2742
        %v2747 = vsel %vm1081, %v2739, 0
        %2749 = vmatpush.bf16.msra.mxu0 0
        %2750 = vmatpush.bf16.msra.mxu0 0
        %2751 = vmatpush.bf16.msra.mxu0 0
        %2752 = vmatpush.bf16.msra.mxu0 0
        %2753 = vmatpush.bf16.msra.mxu0 0
        %2754 = vmatpush.bf16.msra.mxu0 0
        %2755 = vmatpush.bf16.msra.mxu0 0
        %2756 = vmatpush.bf16.msra.mxu0 %v2744
        %2757 = vmatmul.bf16.gmra.mxu0 %v2747
        %v2758 = vpop.f32.mrf.mxu0
        %v2759 = vadd.f32 0.0, %v2758
        %v2760 = vpop.f32.mrf.mxu0
        %2761 = vdwg.mxu0
        %v2762 = vadd.f32 %v2667, %v2759
        %v2763 = vadd.f32 %v2522, %v2762
        %s2764 = scalar_lea.vmem %s39, 1
        %v2765 = vld [vmem:[%s2764] sm:$0x1]
        %s2766 = scalar_lea.vmem %s41, 1
        %v2767 = vld [vmem:[%s2766] sm:$0x1]
        %v2768 = vsel %vm1056, %v2763, 0.0
        %2769 = vadd.xlane.f32.xlu0 %v2768
        %v2770 = vpop.xlane.xlu0 %2769
        %v2771 = vmul.f32 %v2770, %v1280
        %v2772 = vsub.f32 %v2763, %v2771
        %v2773 = vmul.f32 %v2772, %v2772
        %v2774 = vsel %vm1056, %v2773, 0.0
        %2775 = vadd.xlane.f32.xlu0 %v2774
        %v2776 = vpop.xlane.xlu0 %2775
        %v2777 = vmul.f32 %v2776, %v1280
        %v2778 = vadd.f32 %v2777, 1e-05
        %v2779 = vrsqrt.pop %v2778
        %v2780 = vmul.f32 %v2779, %v2778
        %v2781 = vmul.f32 %v2780, %v2779
        %v2782 = vmul.f32 0.5, %v2781
        %v2783 = vsub.f32 1.5, %v2782
        %v2784 = vmul.f32 %v2779, %v2783
        %vm2785 = vweird.f32 %v2778
        %vm2786 = vweird.f32 %v2779
        %vm2787 = vmor %vm2785, %vm2786
        %v2788 = vsel %vm2787, %v2779, %v2784
        %v2789 = vmul.f32 %v2772, %v2788
        %v2791 = vperm.slane %v2765, 0
        %v2793 = vmul.f32 %v2789, %v2791
        %v2795 = vperm.slane %v2767, 0
        %v2797 = vadd.f32 %v2793, %v2795
        %s2798 = scalar_lea.vmem %s43, 16
        %v2799 = vld [vmem:[%s2798] sm:$0xf]
        %v2800 = vld [vmem:[%s2798 + $0x4] sm:$0xf]
        %v2801 = vld [vmem:[%s2798 + $0x8] sm:$0xf]
        %v2802 = vld [vmem:[%s2798 + $0xc] sm:$0xf]
        %s2803 = scalar_lea.vmem %s45, 1
        %v2804 = vld [vmem:[%s2803] sm:$0x1]
        %s2805 = scalar_lea.vmem %s47, 16
        %v2806 = vld [vmem:[%s2805] sm:$0xf]
        %v2807 = vld [vmem:[%s2805 + $0x4] sm:$0xf]
        %v2808 = vld [vmem:[%s2805 + $0x8] sm:$0xf]
        %v2809 = vld [vmem:[%s2805 + $0xc] sm:$0xf]
        %s2810 = scalar_lea.vmem %s49, 1
        %v2811 = vld [vmem:[%s2810] sm:$0x1]
        %v2812 = vpack.c.bf16 %v2797, %v2797
        %v2814 = vperm.slane %v2804, 0
        %v2820 = vunpack.c.l.b16 %v2799
        %v2821 = vunpack.c.l.b16 %v2800
        %v2822 = vunpack.c.l.b16 %v2801
        %v2823 = vunpack.c.l.b16 %v2802
        %v2824 = vpack.c.b16 %v2821, %v2820
        %v2825 = vpack.c.b16 %v2823, %v2822
        %v2829 = vsel %vm1056, %v2812, 0
        %2831 = vmatpush.bf16.msra.mxu0 0
        %2832 = vmatpush.bf16.msra.mxu0 0
        %2833 = vmatpush.bf16.msra.mxu0 0
        %2834 = vmatpush.bf16.msra.mxu0 0
        %2835 = vmatpush.bf16.msra.mxu0 0
        %2836 = vmatpush.bf16.msra.mxu0 0
        %2837 = vmatpush.bf16.msra.mxu0 %v2825
        %2838 = vmatpush.bf16.msra.mxu0 %v2824
        %2839 = vmatmul.bf16.gmra.mxu0 %v2829
        %v2840 = vpop.f32.mrf.mxu0
        %v2841 = vadd.f32 %v2814, %v2840
        %v2842 = vpop.f32.mrf.mxu0
        %2843 = vdwg.mxu0
        %2844 = vrot.lane.b32.xlu0 %v2824, 96
        %v2845 = vpop.permute.xlu0 %2844
        %2846 = vrot.lane.b32.xlu0 %v2825, 96
        %v2847 = vpop.permute.xlu0 %2846
        %2850 = vrot.lane.b32.xlu0 %v2814, 96
        %v2851 = vpop.permute.xlu0 %2850
        %2853 = vmatpush.bf16.msra.mxu0 0
        %2854 = vmatpush.bf16.msra.mxu0 0
        %2855 = vmatpush.bf16.msra.mxu0 0
        %2856 = vmatpush.bf16.msra.mxu0 0
        %2857 = vmatpush.bf16.msra.mxu0 0
        %2858 = vmatpush.bf16.msra.mxu0 0
        %2859 = vmatpush.bf16.msra.mxu0 %v2847
        %2860 = vmatpush.bf16.msra.mxu0 %v2845
        %2861 = vmatmul.bf16.gmra.mxu0 %v2159
        %v2862 = vpop.f32.mrf.mxu0
        %v2863 = vadd.f32 %v2851, %v2862
        %v2864 = vpop.f32.mrf.mxu0
        %2865 = vdwg.mxu0
        %v2867 = vperm.slane %v2811, 0
        %v2869 = vadd.f32 %v2867, 0.0
        %v2870 = vpack.c.bf16 %v2841, %v2841
        %v2871 = vpack.c.bf16 %v2863, %v2863
        %v2873 = vsel %vm1081, %v2870, 0
        %v2876 = vsel %vm1081, %v2871, 0
        %2878 = vmatpush.bf16.xpose.msra.mxu0 0
        %2879 = vmatpush.bf16.xpose.msra.mxu0 0
        %2880 = vmatpush.bf16.xpose.msra.mxu0 0
        %2881 = vmatpush.bf16.xpose.msra.mxu0 0
        %2882 = vmatpush.bf16.xpose.msra.mxu0 0
        %2883 = vmatpush.bf16.xpose.msra.mxu0 0
        %2884 = vmatpush.bf16.xpose.msra.mxu0 0
        %2885 = vmatpush.bf16.xpose.msra.mxu0 %v2876
        %2886 = vmatmul.bf16.gmra.mxu0 %v2873
        %v2887 = vpop.f32.mrf.mxu0
        %v2888 = vadd.f32 0.0, %v2887
        %v2889 = vpop.f32.mrf.mxu0
        %2890 = vdwg.mxu0
        %v2891 = vmul.f32 %v2888, 0.25
        %v2892 = vsel %vm1102, %v2891, -inf
        %2893 = vmax.xlane.f32.xlu0 %v2892
        %v2894 = vpop.xlane.xlu0 %2893
        %v2895 = vsub.f32 %v2891, %v2894
        %v2896 = vmul.f32 %v2895, 1.442695
        %v2897 = vpow.pop %v2896
        %v2898 = vsel %vm1102, %v2897, 0.0
        %2899 = vadd.xlane.f32.xlu0 %v2898
        %v2900 = vpop.xlane.xlu0 %2899
        %v2901 = vrcp.pop %v2900
        %v2902 = vmul.f32 %v2900, %v2901
        %v2903 = vsub.f32 1.0, %v2902
        %v2904 = vmul.f32 %v2901, %v2903
        %v2905 = vadd.f32 %v2901, %v2904
        %vm2906 = vweird.f32 %v2900
        %vm2907 = vweird.f32 %v2901
        %vm2908 = vmor %vm2906, %vm2907
        %v2909 = vsel %vm2908, %v2901, %v2905
        %v2910 = vand.u32 2147483647, %v2900
        %vm2911 = vcmp.eq.f32.partialorder %v2910, 8.507059e+37
        %v2912 = vand.u32 %v2900, 2147483648
        %v2913 = vor.u32 1.1754944e-38, %v2912
        %v2914 = vsel %vm2911, %v2913, %v2909
        %v2915 = vmul.f32 %v2897, %v2914
        %v2916 = vpack.c.bf16 %v2915, %v2915
        %2918 = vrot.lane.b32.xlu0 %v2871, 96
        %v2919 = vpop.permute.xlu0 %2918
        %v2921 = vsel %vm1102, %v2916, 0
        %v2924 = vsel %vm1133, %v2919, 0
        %2926 = vmatpush.bf16.msra.mxu0 0
        %2927 = vmatpush.bf16.msra.mxu0 0
        %2928 = vmatpush.bf16.msra.mxu0 0
        %2929 = vmatpush.bf16.msra.mxu0 0
        %2930 = vmatpush.bf16.msra.mxu0 0
        %2931 = vmatpush.bf16.msra.mxu0 0
        %2932 = vmatpush.bf16.msra.mxu0 0
        %2933 = vmatpush.bf16.msra.mxu0 %v2924
        %2934 = vmatmul.bf16.gmra.mxu0 %v2921
        %v2935 = vpop.f32.mrf.mxu0
        %v2936 = vadd.f32 0.0, %v2935
        %v2937 = vpop.f32.mrf.mxu0
        %2938 = vdwg.mxu0
        %v2939 = vpack.c.bf16 %v2936, %v2936
        %v2942 = vunpack.c.l.b16 %v2806
        %v2943 = vunpack.c.l.b16 %v2807
        %v2944 = vpack.c.b16 %v2943, %v2942
        %v2947 = vsel %vm1081, %v2939, 0
        %2949 = vmatpush.bf16.msra.mxu0 0
        %2950 = vmatpush.bf16.msra.mxu0 0
        %2951 = vmatpush.bf16.msra.mxu0 0
        %2952 = vmatpush.bf16.msra.mxu0 0
        %2953 = vmatpush.bf16.msra.mxu0 0
        %2954 = vmatpush.bf16.msra.mxu0 0
        %2955 = vmatpush.bf16.msra.mxu0 0
        %2956 = vmatpush.bf16.msra.mxu0 %v2944
        %2957 = vmatmul.bf16.gmra.mxu0 %v2947
        %v2958 = vpop.f32.mrf.mxu0
        %v2959 = vadd.f32 0.0, %v2958
        %v2960 = vpop.f32.mrf.mxu0
        %2961 = vdwg.mxu0
        %v2962 = vadd.f32 %v2869, %v2959
        %2964 = vrot.lane.b32.xlu0 %v2870, 112
        %v2965 = vpop.permute.xlu0 %2964
        %2966 = vrot.lane.b32.xlu0 %v2871, 112
        %v2967 = vpop.permute.xlu0 %2966
        %v2969 = vsel %vm1081, %v2965, 0
        %v2972 = vsel %vm1081, %v2967, 0
        %2974 = vmatpush.bf16.xpose.msra.mxu0 0
        %2975 = vmatpush.bf16.xpose.msra.mxu0 0
        %2976 = vmatpush.bf16.xpose.msra.mxu0 0
        %2977 = vmatpush.bf16.xpose.msra.mxu0 0
        %2978 = vmatpush.bf16.xpose.msra.mxu0 0
        %2979 = vmatpush.bf16.xpose.msra.mxu0 0
        %2980 = vmatpush.bf16.xpose.msra.mxu0 0
        %2981 = vmatpush.bf16.xpose.msra.mxu0 %v2972
        %2982 = vmatmul.bf16.gmra.mxu0 %v2969
        %v2983 = vpop.f32.mrf.mxu0
        %v2984 = vadd.f32 0.0, %v2983
        %v2985 = vpop.f32.mrf.mxu0
        %2986 = vdwg.mxu0
        %v2987 = vmul.f32 %v2984, 0.25
        %v2988 = vsel %vm1102, %v2987, -inf
        %2989 = vmax.xlane.f32.xlu0 %v2988
        %v2990 = vpop.xlane.xlu0 %2989
        %v2991 = vsub.f32 %v2987, %v2990
        %v2992 = vmul.f32 %v2991, 1.442695
        %v2993 = vpow.pop %v2992
        %v2994 = vsel %vm1102, %v2993, 0.0
        %2995 = vadd.xlane.f32.xlu0 %v2994
        %v2996 = vpop.xlane.xlu0 %2995
        %v2997 = vrcp.pop %v2996
        %v2998 = vmul.f32 %v2996, %v2997
        %v2999 = vsub.f32 1.0, %v2998
        %v3000 = vmul.f32 %v2997, %v2999
        %v3001 = vadd.f32 %v2997, %v3000
        %vm3002 = vweird.f32 %v2996
        %vm3003 = vweird.f32 %v2997
        %vm3004 = vmor %vm3002, %vm3003
        %v3005 = vsel %vm3004, %v2997, %v3001
        %v3006 = vand.u32 2147483647, %v2996
        %vm3007 = vcmp.eq.f32.partialorder %v3006, 8.507059e+37
        %v3008 = vand.u32 %v2996, 2147483648
        %v3009 = vor.u32 1.1754944e-38, %v3008
        %v3010 = vsel %vm3007, %v3009, %v3005
        %v3011 = vmul.f32 %v2993, %v3010
        %v3012 = vpack.c.bf16 %v3011, %v3011
        %3013 = vrot.lane.b32.xlu0 %v2871, 80
        %v3014 = vpop.permute.xlu0 %3013
        %v3016 = vsel %vm1102, %v3012, 0
        %v3019 = vsel %vm1133, %v3014, 0
        %3021 = vmatpush.bf16.msra.mxu0 0
        %3022 = vmatpush.bf16.msra.mxu0 0
        %3023 = vmatpush.bf16.msra.mxu0 0
        %3024 = vmatpush.bf16.msra.mxu0 0
        %3025 = vmatpush.bf16.msra.mxu0 0
        %3026 = vmatpush.bf16.msra.mxu0 0
        %3027 = vmatpush.bf16.msra.mxu0 0
        %3028 = vmatpush.bf16.msra.mxu0 %v3019
        %3029 = vmatmul.bf16.gmra.mxu0 %v3016
        %v3030 = vpop.f32.mrf.mxu0
        %v3031 = vadd.f32 0.0, %v3030
        %v3032 = vpop.f32.mrf.mxu0
        %3033 = vdwg.mxu0
        %v3034 = vpack.c.bf16 %v3031, %v3031
        %v3037 = vunpack.c.l.b16 %v2808
        %v3038 = vunpack.c.l.b16 %v2809
        %v3039 = vpack.c.b16 %v3038, %v3037
        %v3042 = vsel %vm1081, %v3034, 0
        %3044 = vmatpush.bf16.msra.mxu0 0
        %3045 = vmatpush.bf16.msra.mxu0 0
        %3046 = vmatpush.bf16.msra.mxu0 0
        %3047 = vmatpush.bf16.msra.mxu0 0
        %3048 = vmatpush.bf16.msra.mxu0 0
        %3049 = vmatpush.bf16.msra.mxu0 0
        %3050 = vmatpush.bf16.msra.mxu0 0
        %3051 = vmatpush.bf16.msra.mxu0 %v3039
        %3052 = vmatmul.bf16.gmra.mxu0 %v3042
        %v3053 = vpop.f32.mrf.mxu0
        %v3054 = vadd.f32 0.0, %v3053
        %v3055 = vpop.f32.mrf.mxu0
        %3056 = vdwg.mxu0
        %v3057 = vadd.f32 %v2962, %v3054
        %v3058 = vadd.f32 %v2797, %v3057
        %s3059 = scalar_lea.vmem %s51, 1
        %v3060 = vld [vmem:[%s3059] sm:$0x1]
        %s3061 = scalar_lea.vmem %s53, 1
        %v3062 = vld [vmem:[%s3061] sm:$0x1]
        %v3063 = vsel %vm1056, %v3058, 0.0
        %3064 = vadd.xlane.f32.xlu0 %v3063
        %v3065 = vpop.xlane.xlu0 %3064
        %v3066 = vmul.f32 %v3065, %v1280
        %v3067 = vsub.f32 %v3058, %v3066
        %v3068 = vmul.f32 %v3067, %v3067
        %v3069 = vsel %vm1056, %v3068, 0.0
        %3070 = vadd.xlane.f32.xlu0 %v3069
        %v3071 = vpop.xlane.xlu0 %3070
        %v3072 = vmul.f32 %v3071, %v1280
        %v3073 = vadd.f32 %v3072, 1e-05
        %v3074 = vrsqrt.pop %v3073
        %v3075 = vmul.f32 %v3074, %v3073
        %v3076 = vmul.f32 %v3075, %v3074
        %v3077 = vmul.f32 0.5, %v3076
        %v3078 = vsub.f32 1.5, %v3077
        %v3079 = vmul.f32 %v3074, %v3078
        %vm3080 = vweird.f32 %v3073
        %vm3081 = vweird.f32 %v3074
        %vm3082 = vmor %vm3080, %vm3081
        %v3083 = vsel %vm3082, %v3074, %v3079
        %v3084 = vmul.f32 %v3067, %v3083
        %v3086 = vperm.slane %v3060, 0
        %v3088 = vmul.f32 %v3084, %v3086
        %v3090 = vperm.slane %v3062, 0
        %v3092 = vadd.f32 %v3088, %v3090
        %s3093 = scalar_lea.vmem %s55, 16
        %v3094 = vld [vmem:[%s3093] sm:$0xf]
        %v3095 = vld [vmem:[%s3093 + $0x4] sm:$0xf]
        %v3096 = vld [vmem:[%s3093 + $0x8] sm:$0xf]
        %v3097 = vld [vmem:[%s3093 + $0xc] sm:$0xf]
        %s3098 = scalar_lea.vmem %s57, 1
        %v3099 = vld [vmem:[%s3098] sm:$0x1]
        %v3100 = vpack.c.bf16 %v3092, %v3092
        %v3102 = vperm.slane %v3099, 0
        %v3108 = vunpack.c.l.b16 %v3094
        %v3109 = vunpack.c.l.b16 %v3095
        %v3110 = vunpack.c.l.b16 %v3096
        %v3111 = vunpack.c.l.b16 %v3097
        %v3112 = vpack.c.b16 %v3109, %v3108
        %v3113 = vpack.c.b16 %v3111, %v3110
        %v3117 = vsel %vm1056, %v3100, 0
        %3119 = vmatpush.bf16.msra.mxu0 0
        %3120 = vmatpush.bf16.msra.mxu0 0
        %3121 = vmatpush.bf16.msra.mxu0 0
        %3122 = vmatpush.bf16.msra.mxu0 0
        %3123 = vmatpush.bf16.msra.mxu0 0
        %3124 = vmatpush.bf16.msra.mxu0 0
        %3125 = vmatpush.bf16.msra.mxu0 %v3113
        %3126 = vmatpush.bf16.msra.mxu0 %v3112
        %3127 = vmatmul.bf16.gmra.mxu0 %v3117
        %v3128 = vpop.f32.mrf.mxu0
        %v3129 = vadd.f32 %v3102, %v3128
        %v3130 = vpop.f32.mrf.mxu0
        %3131 = vdwg.mxu0
        %v3132 = vmax.f32 %v3129, 0.0
        %s3133 = scalar_lea.vmem %s59, 32
        %v3134 = vld [vmem:[%s3133] sm:$0xf]
        %v3135 = vld [vmem:[%s3133 + $0x4] sm:$0xf]
        %v3136 = vld [vmem:[%s3133 + $0x8] sm:$0xf]
        %v3137 = vld [vmem:[%s3133 + $0xc] sm:$0xf]
        %v3138 = vld [vmem:[%s3133 + $0x10] sm:$0xf]
        %v3139 = vld [vmem:[%s3133 + $0x14] sm:$0xf]
        %v3140 = vld [vmem:[%s3133 + $0x18] sm:$0xf]
        %v3141 = vld [vmem:[%s3133 + $0x1c] sm:$0xf]
        %s3142 = scalar_lea.vmem %s61, 1
        %v3143 = vld [vmem:[%s3142] sm:$0x1]
        %v3144 = vpack.c.bf16 %v3132, %v3132
        %v3146 = vperm.slane %v3143, 0
        %v3156 = vunpack.c.l.b16 %v3134
        %v3157 = vunpack.c.l.b16 %v3135
        %v3158 = vunpack.c.l.b16 %v3136
        %v3159 = vunpack.c.l.b16 %v3137
        %v3160 = vunpack.c.l.b16 %v3138
        %v3161 = vunpack.c.l.b16 %v3139
        %v3162 = vunpack.c.l.b16 %v3140
        %v3163 = vunpack.c.l.b16 %v3141
        %v3164 = vpack.c.b16 %v3157, %v3156
        %v3165 = vpack.c.b16 %v3159, %v3158
        %v3166 = vpack.c.b16 %v3161, %v3160
        %v3167 = vpack.c.b16 %v3163, %v3162
        %v3173 = vsel %vm1383, %v3144, 0
        %3175 = vmatpush.bf16.msra.mxu0 0
        %3176 = vmatpush.bf16.msra.mxu0 0
        %3177 = vmatpush.bf16.msra.mxu0 0
        %3178 = vmatpush.bf16.msra.mxu0 0
        %3179 = vmatpush.bf16.msra.mxu0 %v3167
        %3180 = vmatpush.bf16.msra.mxu0 %v3166
        %3181 = vmatpush.bf16.msra.mxu0 %v3165
        %3182 = vmatpush.bf16.msra.mxu0 %v3164
        %3183 = vmatmul.bf16.gmra.mxu0 %v3173
        %v3184 = vpop.f32.mrf.mxu0
        %v3185 = vadd.f32 %v3146, %v3184
        %v3186 = vpop.f32.mrf.mxu0
        %3187 = vdwg.mxu0
        %v3188 = vadd.f32 %v3092, %v3185
        %s3189 = scalar_lea.vmem %s63, 1
        %v3190 = vld [vmem:[%s3189] sm:$0x1]
        %s3191 = scalar_lea.vmem %s65, 1
        %v3192 = vld [vmem:[%s3191] sm:$0x1]
        %v3193 = vsel %vm1056, %v3188, 0.0
        %3194 = vadd.xlane.f32.xlu0 %v3193
        %v3195 = vpop.xlane.xlu0 %3194
        %v3196 = vmul.f32 %v3195, %v1280
        %v3197 = vsub.f32 %v3188, %v3196
        %v3198 = vmul.f32 %v3197, %v3197
        %v3199 = vsel %vm1056, %v3198, 0.0
        %3200 = vadd.xlane.f32.xlu0 %v3199
        %v3201 = vpop.xlane.xlu0 %3200
        %v3202 = vmul.f32 %v3201, %v1280
        %v3203 = vadd.f32 %v3202, 1e-05
        %v3204 = vrsqrt.pop %v3203
        %v3205 = vmul.f32 %v3204, %v3203
        %v3206 = vmul.f32 %v3205, %v3204
        %v3207 = vmul.f32 0.5, %v3206
        %v3208 = vsub.f32 1.5, %v3207
        %v3209 = vmul.f32 %v3204, %v3208
        %vm3210 = vweird.f32 %v3203
        %vm3211 = vweird.f32 %v3204
        %vm3212 = vmor %vm3210, %vm3211
        %v3213 = vsel %vm3212, %v3204, %v3209
        %v3214 = vmul.f32 %v3197, %v3213
        %v3216 = vperm.slane %v3190, 0
        %v3218 = vmul.f32 %v3214, %v3216
        %v3220 = vperm.slane %v3192, 0
        %v3222 = vadd.f32 %v3218, %v3220
        %3223 = vst.msk [vmem:[%s1018] sm:$0xff] %vm1056, %v3222
        %s3224 = sand.u32 %s792, 1
        %s3225 = scalar_lea.sflag [#allocation3], %s3224
        %s3226 = sand.u32 %s792, 1
        %s3227 = smul.addr %s3226, 8
        %s3228 = scalar_lea.vmem [#allocation2], %s3227
        // Predicated region
        $region153: #{transformer_forward.1} parent=151 // pred_check
          %p3229 = pneg %p802
        $region154: #{transformer_forward.1} parent=151 // pred_check_branch
          %3231 = sbr.rel (%p3229) target = $region156
        $region155: #{transformer_forward.1} parent=151 // pred_region
          %3233 = vsyncadd %s3225, 0
          %s3234 = smul.addr %s81, 8
          %s3235 = scalar_lea.hbm %s67, %s3234
          %s3237 = sshll.u32 %s3228, 4
          %s3238 = int_to_ptr.vmem [resolvable:$true] %s3237
          %s3239 = sshll.u32 %s3235, 4
          %s3240 = int_to_ptr.hbm [resolvable:$true] %s3239
          %3242 = dma.vmem_to_hbm [thread:$0]  %s3238, 128, %s3240, %s3225
        $region156: #{transformer_forward.1} parent=151 // pred_fallthru
          _
      $region152: #{transformer_forward.1} parent=5 // pred_fallthru
        _
      %p3243 = scmp.le.s32.totalorder 2, %s76
      // Predicated region
      $region157: #{transformer_forward.1} parent=5 // pred_check
        %p3244 = pneg %p3243
      $region158: #{transformer_forward.1} parent=5 // pred_check_branch
        %3246 = sbr.rel (%p3244) target = $region160
      $region159: #{transformer_forward.1} parent=5 // pred_region
        %s3247 = ssub.s32 %s76, 2
        // Predicated region
        $region161: #{transformer_forward.1} parent=159 // pred_check
          %p3248 = pneg %p808
        $region162: #{transformer_forward.1} parent=159 // pred_check_branch
          %3250 = sbr.rel (%p3248) target = $region164
        $region163: #{transformer_forward.1} parent=159 // pred_region
          %s3251 = sand.u32 %s793, 1
          %s3252 = scalar_lea.sflag [#allocation3], %s3251
          %s3253 = sand.u32 %s793, 1
          %s3254 = smul.addr %s3253, 8
          %s3255 = scalar_lea.vmem [#allocation2], %s3254
          %3257 = dma.done %s3252, 128
        $region164: #{transformer_forward.1} parent=159 // pred_fallthru
          _
      $region160: #{transformer_forward.1} parent=5 // pred_fallthru
        _
    $region6: #{transformer_forward.1} parent=1 // loop_footer
      %s80 = sadd.s32 1, %s76
    $region7: #{transformer_forward.1} parent=1 // loop_footer_branch
      %75 = sbr.rel target = $region3
    $region8: #{transformer_forward.1} parent=1 // loop_exit
      _
    %3258 = vsyncpa [#allocation3], 1
    %s3259 = scalar_lea.sflag [#allocation3], 1
    %3260 = vsyncpa %s3259, 1

</llo_original>
